<compile_context>
chip_gen: v6e
topology: v6e:2x2x1
jax: 0.10.0
libtpu: 0.0.40
codegen_flags: <defaults>
</compile_context>

<pallas_src>
import numpy as np
import jax
import jax.numpy as jnp
from jax.experimental import pallas as pl
from jax.experimental.pallas import tpu as pltpu


def _spectral_axis_op(n_in: int, n_out: int) -> np.ndarray:
    """Complex (n_out, n_in) operator: ifft ∘ ifftshift ∘ center-crop ∘ fftshift ∘ fft."""
    F = np.fft.fft(np.eye(n_in), axis=0)                 # F @ x == fft(x)
    Fs = np.fft.fftshift(F, axes=0)
    s = (n_in - n_out) // 2
    Fc = np.fft.ifftshift(Fs[s:s + n_out], axes=0)       # cropped, un-shifted rows
    return np.fft.ifft(Fc, axis=0)                       # (n_out, n_in) complex


def _make_operators(H, W, Ho, Wo, k):
    """Host-side constant operands.

    Returns:
      KT : (H*W, Ho*Wo) f32 — spectral pool as a right-matmul: sp = x_flat @ KT
      SEL: (k*k, H*W, Ho*Wo) f32 — one-hot gathers of the k*k window elements.
    """
    HW, P = H * W, Ho * Wo
    Ah = _spectral_axis_op(H, Ho)                        # (Ho, H)
    Aw = _spectral_axis_op(W, Wo)                        # (Wo, W)
    # x real => real(A_h X A_w^T) == real(kron(A_h, A_w)) @ vec(X)
    KT = np.real(np.kron(Ah, Aw)).T.astype(np.float32)   # (HW, P)

    SEL = np.zeros((k * k, HW, P), dtype=np.float32)
    for i in range(k):
        for j in range(k):
            t = i * k + j
            for ho in range(Ho):
                for wo in range(Wo):
                    SEL[t, (ho * k + i) * W + (wo * k + j), ho * Wo + wo] = 1.0
    return jnp.asarray(KT), jnp.asarray(SEL)


def hyd_pool2d(x, conv_w, conv_b, kernel_size: int):
    """x: (N, C, H, W) f32; conv_w: (C, 2C, 1, 1); conv_b: (C,)."""
    N, C, H, W = x.shape
    k = kernel_size
    assert H % k == 0 and W % k == 0, (H, W, k)
    Ho, Wo = H // k, W // k
    HW, P = H * W, Ho * Wo
    Co = conv_w.shape[0]
    k2 = k * k

    # ---- host-side operand prep (all free / tiny) ----------------------------------
    x_flat = x.reshape(N, C, HW)                              # contiguous -> free reshape
    KT, SEL = _make_operators(H, W, Ho, Wo, k)
    w2d = conv_w.reshape(Co, 2 * C).astype(jnp.float32)
    wm = w2d[:, :C]                                           # weights for max-pool feats
    ws = w2d[:, C:]                                           # weights for spectral feats
    b2 = conv_b.astype(jnp.float32).reshape(Co, 1)

    def kernel(x_ref, sel_ref, kt_ref, wm_ref, ws_ref, b_ref, o_ref):
        xv = x_ref[0]                                         # (C, HW) lane-dense

        # -- max pool: gather each of the k*k window offsets (exact one-hot matmul),
        #    then elementwise max over the offsets (vectorized over all channels). ----
        mp = jnp.dot(xv, sel_ref[0], preferred_element_type=jnp.float32,
                     precision=jax.lax.Precision.HIGHEST)     # exact 0/1 selection
        for t in range(1, k2):
            mp = jnp.maximum(
                mp, jnp.dot(xv, sel_ref[t], preferred_element_type=jnp.float32,
                            precision=jax.lax.Precision.HIGHEST))   # (C, P)

        # -- spectral pool: one MXU matmul for all channels (default precision). ------
        sp = jnp.dot(xv, kt_ref[...], preferred_element_type=jnp.float32)   # (C, P)

        # -- 1x1 conv over [max-pool | spectral] features: two MXU matmuls + bias. ----
        out = (jnp.dot(wm_ref[...], mp, preferred_element_type=jnp.float32)
               + jnp.dot(ws_ref[...], sp, preferred_element_type=jnp.float32)
               + b_ref[...])                                  # (Co, P)
        o_ref[0] = out.astype(o_ref.dtype)

    out = pl.pallas_call(
        kernel,
        out_shape=jax.ShapeDtypeStruct((N, Co, P), x.dtype),
        grid=(N,),
        in_specs=[
            pl.BlockSpec((1, C, HW), lambda n: (n, 0, 0)),    # x (lane-dense)
            pl.BlockSpec((k2, HW, P), lambda n: (0, 0, 0)),   # window selectors
            pl.BlockSpec((HW, P), lambda n: (0, 0)),          # spectral operator
            pl.BlockSpec((Co, C), lambda n: (0, 0)),          # conv weights (max-pool half)
            pl.BlockSpec((Co, C), lambda n: (0, 0)),          # conv weights (spectral half)
            pl.BlockSpec((Co, 1), lambda n: (0, 0)),          # conv bias
        ],
        out_specs=pl.BlockSpec((1, Co, P), lambda n: (n, 0, 0)),
        compiler_params=pltpu.CompilerParams(
            dimension_semantics=("parallel",)),
    )(x_flat, SEL, KT, wm, ws, b2)

    return out.reshape(N, Co, Ho, Wo)


if __name__ == "__main__":
    N, C, H, W, k = 2, 4, 16, 16, 2
    Ho, Wo = H // k, W // k

    key = jax.random.PRNGKey(0)
    kx, kw, kb = jax.random.split(key, 3)
    x = jax.random.normal(kx, (N, C, H, W), dtype=jnp.float32)
    conv_w = jax.random.normal(kw, (C, 2 * C, 1, 1), dtype=jnp.float32) * 0.1
    conv_b = jax.random.normal(kb, (C,), dtype=jnp.float32) * 0.1

    out = jax.block_until_ready(hyd_pool2d(x, conv_w, conv_b, k))
    assert out.shape == (N, C, Ho, Wo), out.shape

    # -------- pure-numpy reference (fft-based spectral pool) --------
    x_np = np.asarray(x)
    mp = x_np.reshape(N, C, Ho, k, Wo, k).max(axis=(3, 5))
    Xf = np.fft.fft2(x_np)
    Xs = np.fft.fftshift(Xf, axes=(-2, -1))
    sh, sw = (H - Ho) // 2, (W - Wo) // 2
    crop = Xs[..., sh:sh + Ho, sw:sw + Wo]
    sp = np.real(np.fft.ifft2(np.fft.ifftshift(crop, axes=(-2, -1))))
    cat = np.concatenate([mp, sp], axis=1)                         # (N, 2C, Ho, Wo)
    w2d_np = np.asarray(conv_w).reshape(C, 2 * C)
    ref = np.einsum("oi,nihw->nohw", w2d_np, cat) + np.asarray(conv_b)[None, :, None, None]

    assert np.allclose(np.asarray(out), ref, rtol=2e-2, atol=2e-2), (
        float(np.max(np.abs(np.asarray(out) - ref))))
    print("KERNEL_OK")
</pallas_src>

<mosaic_0001>
module attributes {stable_mosaic.version = 11 : i64} {
  func.func @kernel(%arg0: i32, %arg1: memref<1x4x256xf32, #tpu.memory_space<vmem>>, %arg2: memref<4x256x64xf32, #tpu.memory_space<vmem>>, %arg3: memref<256x64xf32, #tpu.memory_space<vmem>>, %arg4: memref<4x4xf32, #tpu.memory_space<vmem>>, %arg5: memref<4x4xf32, #tpu.memory_space<vmem>>, %arg6: memref<4x1xf32, #tpu.memory_space<vmem>>, %arg7: memref<1x4x64xf32, #tpu.memory_space<vmem>>) attributes {dimension_semantics = [#tpu.dimension_semantics<parallel>], iteration_bounds = array<i64: 2>, scalar_prefetch = 0 : i64, scratch_operands = 0 : i64, tpu.core_type = #tpu.core_type<tc>, window_params = [{transform_indices = @transform_0, window_bounds = array<i64: 1, 4, 256>}, {pipeline_mode = #tpu.pipeline_mode<synchronous>, transform_indices = @transform_1, window_bounds = array<i64: 4, 256, 64>}, {pipeline_mode = #tpu.pipeline_mode<synchronous>, transform_indices = @transform_2, window_bounds = array<i64: 256, 64>}, {pipeline_mode = #tpu.pipeline_mode<synchronous>, transform_indices = @transform_3, window_bounds = array<i64: 4, 4>}, {pipeline_mode = #tpu.pipeline_mode<synchronous>, transform_indices = @transform_4, window_bounds = array<i64: 4, 4>}, {pipeline_mode = #tpu.pipeline_mode<synchronous>, transform_indices = @transform_5, window_bounds = array<i64: 4, 1>}, {transform_indices = @transform_6, window_bounds = array<i64: 1, 4, 64>}]} {
    %c0 = arith.constant 0 : index
    %c0_0 = arith.constant 0 : index
    %c0_1 = arith.constant 0 : index
    %0 = vector.load %arg1[%c0, %c0_0, %c0_1] : memref<1x4x256xf32, #tpu.memory_space<vmem>>, vector<1x4x256xf32>
    %1 = vector.shape_cast %0 : vector<1x4x256xf32> to vector<4x256xf32>
    %c0_2 = arith.constant 0 : index
    %c0_3 = arith.constant 0 : index
    %c0_4 = arith.constant 0 : index
    %2 = vector.load %arg2[%c0_2, %c0_3, %c0_4] : memref<4x256x64xf32, #tpu.memory_space<vmem>>, vector<1x256x64xf32>
    %3 = vector.shape_cast %2 : vector<1x256x64xf32> to vector<256x64xf32>
    %cst = arith.constant dense<0.000000e+00> : vector<4x64xf32>
    %4 = tpu.matmul %1, %3, %cst {dimension_numbers = #tpu.dot_dimension_numbers<[1], [0], [0], [1], [0, 0, 1, 1], [], []>, precision = #tpu.contract_precision<fp32>} : vector<4x256xf32>, vector<256x64xf32>, vector<4x64xf32> -> vector<4x64xf32>
    %c1 = arith.constant 1 : index
    %c0_5 = arith.constant 0 : index
    %c0_6 = arith.constant 0 : index
    %5 = vector.load %arg2[%c1, %c0_5, %c0_6] : memref<4x256x64xf32, #tpu.memory_space<vmem>>, vector<1x256x64xf32>
    %6 = vector.shape_cast %5 : vector<1x256x64xf32> to vector<256x64xf32>
    %cst_7 = arith.constant dense<0.000000e+00> : vector<4x64xf32>
    %7 = tpu.matmul %1, %6, %cst_7 {dimension_numbers = #tpu.dot_dimension_numbers<[1], [0], [0], [1], [0, 0, 1, 1], [], []>, precision = #tpu.contract_precision<fp32>} : vector<4x256xf32>, vector<256x64xf32>, vector<4x64xf32> -> vector<4x64xf32>
    %8 = arith.maximumf %4, %7 : vector<4x64xf32>
    %c2 = arith.constant 2 : index
    %c0_8 = arith.constant 0 : index
    %c0_9 = arith.constant 0 : index
    %9 = vector.load %arg2[%c2, %c0_8, %c0_9] : memref<4x256x64xf32, #tpu.memory_space<vmem>>, vector<1x256x64xf32>
    %10 = vector.shape_cast %9 : vector<1x256x64xf32> to vector<256x64xf32>
    %cst_10 = arith.constant dense<0.000000e+00> : vector<4x64xf32>
    %11 = tpu.matmul %1, %10, %cst_10 {dimension_numbers = #tpu.dot_dimension_numbers<[1], [0], [0], [1], [0, 0, 1, 1], [], []>, precision = #tpu.contract_precision<fp32>} : vector<4x256xf32>, vector<256x64xf32>, vector<4x64xf32> -> vector<4x64xf32>
    %12 = arith.maximumf %8, %11 : vector<4x64xf32>
    %c3 = arith.constant 3 : index
    %c0_11 = arith.constant 0 : index
    %c0_12 = arith.constant 0 : index
    %13 = vector.load %arg2[%c3, %c0_11, %c0_12] : memref<4x256x64xf32, #tpu.memory_space<vmem>>, vector<1x256x64xf32>
    %14 = vector.shape_cast %13 : vector<1x256x64xf32> to vector<256x64xf32>
    %cst_13 = arith.constant dense<0.000000e+00> : vector<4x64xf32>
    %15 = tpu.matmul %1, %14, %cst_13 {dimension_numbers = #tpu.dot_dimension_numbers<[1], [0], [0], [1], [0, 0, 1, 1], [], []>, precision = #tpu.contract_precision<fp32>} : vector<4x256xf32>, vector<256x64xf32>, vector<4x64xf32> -> vector<4x64xf32>
    %16 = arith.maximumf %12, %15 : vector<4x64xf32>
    %c0_14 = arith.constant 0 : index
    %c0_15 = arith.constant 0 : index
    %17 = vector.load %arg3[%c0_14, %c0_15] : memref<256x64xf32, #tpu.memory_space<vmem>>, vector<256x64xf32>
    %cst_16 = arith.constant dense<0.000000e+00> : vector<4x64xf32>
    %18 = tpu.matmul %1, %17, %cst_16 {dimension_numbers = #tpu.dot_dimension_numbers<[1], [0], [0], [1], [0, 0, 1, 1], [], []>} : vector<4x256xf32>, vector<256x64xf32>, vector<4x64xf32> -> vector<4x64xf32>
    %c0_17 = arith.constant 0 : index
    %c0_18 = arith.constant 0 : index
    %19 = vector.load %arg4[%c0_17, %c0_18] : memref<4x4xf32, #tpu.memory_space<vmem>>, vector<4x4xf32>
    %cst_19 = arith.constant dense<0.000000e+00> : vector<4x64xf32>
    %20 = tpu.matmul %19, %16, %cst_19 {dimension_numbers = #tpu.dot_dimension_numbers<[1], [0], [0], [1], [0, 0, 1, 1], [], []>} : vector<4x4xf32>, vector<4x64xf32>, vector<4x64xf32> -> vector<4x64xf32>
    %c0_20 = arith.constant 0 : index
    %c0_21 = arith.constant 0 : index
    %21 = vector.load %arg5[%c0_20, %c0_21] : memref<4x4xf32, #tpu.memory_space<vmem>>, vector<4x4xf32>
    %cst_22 = arith.constant dense<0.000000e+00> : vector<4x64xf32>
    %22 = tpu.matmul %21, %18, %cst_22 {dimension_numbers = #tpu.dot_dimension_numbers<[1], [0], [0], [1], [0, 0, 1, 1], [], []>} : vector<4x4xf32>, vector<4x64xf32>, vector<4x64xf32> -> vector<4x64xf32>
    %23 = arith.addf %20, %22 : vector<4x64xf32>
    %c0_23 = arith.constant 0 : index
    %c0_24 = arith.constant 0 : index
    %24 = vector.load %arg6[%c0_23, %c0_24] : memref<4x1xf32, #tpu.memory_space<vmem>>, vector<4x1xf32>
    %25 = vector.broadcast %24 : vector<4x1xf32> to vector<4x64xf32>
    %26 = arith.addf %23, %25 : vector<4x64xf32>
    %c0_25 = arith.constant 0 : index
    %c0_26 = arith.constant 0 : index
    %c0_27 = arith.constant 0 : index
    %27 = vector.load %arg7[%c0_25, %c0_26, %c0_27] : memref<1x4x64xf32, #tpu.memory_space<vmem>>, vector<1x4x64xf32>
    %28 = vector.shape_cast %27 : vector<1x4x64xf32> to vector<4x64xf32>
    %29 = vector.shape_cast %26 : vector<4x64xf32> to vector<1x4x64xf32>
    tpu.vector_store %arg7[%c0_25, %c0_26, %c0_27], %29 {strides = array<i32>} : memref<1x4x64xf32, #tpu.memory_space<vmem>>, vector<1x4x64xf32>,
    return
  }
  func.func @transform_0(%arg0: i32) -> (i32, i32, i32) {
    %c0_i32 = arith.constant 0 : i32
    %c0_i32_0 = arith.constant 0 : i32
    %c0_i32_1 = arith.constant 0 : i32
    return %arg0, %c0_i32, %c0_i32_0 : i32, i32, i32
  }
  func.func @transform_1(%arg0: i32) -> (i32, i32, i32) {
    %c0_i32 = arith.constant 0 : i32
    %c0_i32_0 = arith.constant 0 : i32
    %c0_i32_1 = arith.constant 0 : i32
    %c0_i32_2 = arith.constant 0 : i32
    return %c0_i32, %c0_i32_0, %c0_i32_1 : i32, i32, i32
  }
  func.func @transform_2(%arg0: i32) -> (i32, i32) {
    %c0_i32 = arith.constant 0 : i32
    %c0_i32_0 = arith.constant 0 : i32
    %c0_i32_1 = arith.constant 0 : i32
    return %c0_i32, %c0_i32_0 : i32, i32
  }
  func.func @transform_3(%arg0: i32) -> (i32, i32) {
    %c0_i32 = arith.constant 0 : i32
    %c0_i32_0 = arith.constant 0 : i32
    %c0_i32_1 = arith.constant 0 : i32
    return %c0_i32, %c0_i32_0 : i32, i32
  }
  func.func @transform_4(%arg0: i32) -> (i32, i32) {
    %c0_i32 = arith.constant 0 : i32
    %c0_i32_0 = arith.constant 0 : i32
    %c0_i32_1 = arith.constant 0 : i32
    return %c0_i32, %c0_i32_0 : i32, i32
  }
  func.func @transform_5(%arg0: i32) -> (i32, i32) {
    %c0_i32 = arith.constant 0 : i32
    %c0_i32_0 = arith.constant 0 : i32
    %c0_i32_1 = arith.constant 0 : i32
    return %c0_i32, %c0_i32_0 : i32, i32
  }
  func.func @transform_6(%arg0: i32) -> (i32, i32, i32) {
    %c0_i32 = arith.constant 0 : i32
    %c0_i32_0 = arith.constant 0 : i32
    %c0_i32_1 = arith.constant 0 : i32
    return %arg0, %c0_i32, %c0_i32_0 : i32, i32, i32
  }
}

</mosaic_0001>

<llo_original>
// kernel: tpu_custom_call.1
$region0: #{tpu_custom_call.1}
  #allocation0 [shape = 'u32[]', space=smem, size = 0x4, offset = 0x4, fixed_abs, tag = 'smem constant byte address 0x4 - core index']
  #allocation1 [shape = 'u32[144,128]{1,0:T(1,128)}', space=vmem, size = 0x12000, scoped, tag = 'internal scratch']
  %s0 = inlined_call_operand.vmem [shape: f32[2,4,256], index: 0, kind: input, shape index: {}]
  %s1 = inlined_call_operand.vmem [shape: f32[4,256,64], index: 1, kind: input, shape index: {}]
  %s2 = inlined_call_operand.vmem [shape: f32[256,64], index: 2, kind: input, shape index: {}]
  %s3 = inlined_call_operand.vmem [shape: f32[4,4], index: 3, kind: input, shape index: {}]
  %s4 = inlined_call_operand.vmem [shape: f32[4,4], index: 4, kind: input, shape index: {}]
  %s5 = inlined_call_operand.vmem [shape: f32[4,1], index: 5, kind: input, shape index: {}]
  %s6 = inlined_call_operand.hbm [shape: f32[2,4,64], index: 6, kind: output, shape index: {}]
  %s7 = sld [smem:[#allocation0]]
  $region57: #{tpu_custom_call.1} parent=0
    _
  %s9 = ssub.s32 1, %s7
  %s10 = scalar_select 0, %s9, %s7
  $region1: #{tpu_custom_call.1} parent=0
    #allocation2 [shape = 'u8[4096]{0}', space=vmem, size = 0x1000, scoped, tag = 'output window, operand 0']
    #allocation3 [shape = 's32[2]{0}', space=sflag, size = 0x8, scoped, tag = 'scoped memory for tpu_custom_call.1']
    %11 = vsyncpa [#allocation3], 0
    %s12 = scalar_lea.sflag [#allocation3], 1
    %13 = vsyncpa %s12, 0
    loop: start=0, step=1, limit=4
    $region2: #{tpu_custom_call.1} parent=1 // loop_pre_header
      _
    $region3: #{tpu_custom_call.1} parent=1 // loop_header
      %s15 = sphi 0, %s19
      %p16 = scmp.ge.s32.totalorder %s15, 4
      %s25 = sphi 0, %s27
      %s28 = sphi 0, %s25
      %s29 = sphi 0, %s28
      %s45 = sphi 0, %s29
      %s49 = sphi 0, %s49
      %s51 = sphi 0, %s49
      %s52 = sphi 0, %s51
      %s66 = sphi 0, %s52
      %s70 = sphi 0, %s70
      %s72 = sphi 0, %s70
      %s73 = sphi 0, %s72
      %s87 = sphi 0, %s73
      %s91 = sphi 0, %s91
      %s93 = sphi 0, %s91
      %s94 = sphi 0, %s93
      %s108 = sphi 0, %s94
      %s112 = sphi 0, %s112
      %s114 = sphi 0, %s112
      %s115 = sphi 0, %s114
      %s129 = sphi 0, %s115
      %s133 = sphi 0, %s133
      %s135 = sphi 0, %s133
      %s136 = sphi 0, %s135
      %s150 = sphi 0, %s136
      %s156 = sphi 0, %s158
      %s159 = sphi 0, %s156
      %s160 = sphi 0, %s159
      %s176 = sphi 0, %s160
    $region4: #{tpu_custom_call.1} parent=1 // loop_header_branch
      %18 = sbr.rel (%p16) target = $region8
    $region5: #{tpu_custom_call.1} parent=1 // loop_body
      %s20 = ssub.s32 %s15, 1
      %s21 = ssub.s32 %s15, 2
      %s22 = sadd.s32 %s15, 1
      %s23 = ssub.s32 %s15, %s22
      %p24 = scmp.eq.s32.totalorder %s23, 0
      %s26 = sadd.s32 %s25, 1
      %s27 = scalar_select %p24, %s25, %s26
      %p30 = pneg %p24
      %p31 = scmp.eq.s32.totalorder %s15, 1
      %p32 = por %p30, %p31
      %p33 = scmp.ne.s32.totalorder %s25, %s28
      %p34 = scmp.eq.s32.totalorder %s15, 0
      %p35 = por %p33, %p34
      %p36 = scmp.ne.s32.totalorder %s25, %s28
      %p37 = scmp.eq.s32.totalorder %s20, 1
      %p38 = por %p36, %p37
      %p39 = scmp.ne.s32.totalorder %s28, %s29
      %p40 = scmp.eq.s32.totalorder %s20, 0
      %p41 = por %p39, %p40
      %p42 = scmp.ne.s32.totalorder %s28, %s29
      %p43 = scmp.eq.s32.totalorder %s21, 1
      %p44 = por %p42, %p43
      %p46 = scmp.ne.s32.totalorder %s29, %s45
      %p47 = scmp.eq.s32.totalorder %s21, 0
      %p48 = por %p46, %p47
      %s50 = sadd.s32 %s49, 1
      %p53 = scmp.eq.s32.totalorder %s15, 1
      %p54 = scmp.ne.s32.totalorder %s49, %s51
      %p55 = scmp.eq.s32.totalorder %s15, 0
      %p56 = por %p54, %p55
      %p57 = scmp.ne.s32.totalorder %s49, %s51
      %p58 = scmp.eq.s32.totalorder %s20, 1
      %p59 = por %p57, %p58
      %p60 = scmp.ne.s32.totalorder %s51, %s52
      %p61 = scmp.eq.s32.totalorder %s20, 0
      %p62 = por %p60, %p61
      %p63 = scmp.ne.s32.totalorder %s51, %s52
      %p64 = scmp.eq.s32.totalorder %s21, 1
      %p65 = por %p63, %p64
      %p67 = scmp.ne.s32.totalorder %s52, %s66
      %p68 = scmp.eq.s32.totalorder %s21, 0
      %p69 = por %p67, %p68
      %s71 = sadd.s32 %s70, 1
      %p74 = scmp.eq.s32.totalorder %s15, 1
      %p75 = scmp.ne.s32.totalorder %s70, %s72
      %p76 = scmp.eq.s32.totalorder %s15, 0
      %p77 = por %p75, %p76
      %p78 = scmp.ne.s32.totalorder %s70, %s72
      %p79 = scmp.eq.s32.totalorder %s20, 1
      %p80 = por %p78, %p79
      %p81 = scmp.ne.s32.totalorder %s72, %s73
      %p82 = scmp.eq.s32.totalorder %s20, 0
      %p83 = por %p81, %p82
      %p84 = scmp.ne.s32.totalorder %s72, %s73
      %p85 = scmp.eq.s32.totalorder %s21, 1
      %p86 = por %p84, %p85
      %p88 = scmp.ne.s32.totalorder %s73, %s87
      %p89 = scmp.eq.s32.totalorder %s21, 0
      %p90 = por %p88, %p89
      %s92 = sadd.s32 %s91, 1
      %p95 = scmp.eq.s32.totalorder %s15, 1
      %p96 = scmp.ne.s32.totalorder %s91, %s93
      %p97 = scmp.eq.s32.totalorder %s15, 0
      %p98 = por %p96, %p97
      %p99 = scmp.ne.s32.totalorder %s91, %s93
      %p100 = scmp.eq.s32.totalorder %s20, 1
      %p101 = por %p99, %p100
      %p102 = scmp.ne.s32.totalorder %s93, %s94
      %p103 = scmp.eq.s32.totalorder %s20, 0
      %p104 = por %p102, %p103
      %p105 = scmp.ne.s32.totalorder %s93, %s94
      %p106 = scmp.eq.s32.totalorder %s21, 1
      %p107 = por %p105, %p106
      %p109 = scmp.ne.s32.totalorder %s94, %s108
      %p110 = scmp.eq.s32.totalorder %s21, 0
      %p111 = por %p109, %p110
      %s113 = sadd.s32 %s112, 1
      %p116 = scmp.eq.s32.totalorder %s15, 1
      %p117 = scmp.ne.s32.totalorder %s112, %s114
      %p118 = scmp.eq.s32.totalorder %s15, 0
      %p119 = por %p117, %p118
      %p120 = scmp.ne.s32.totalorder %s112, %s114
      %p121 = scmp.eq.s32.totalorder %s20, 1
      %p122 = por %p120, %p121
      %p123 = scmp.ne.s32.totalorder %s114, %s115
      %p124 = scmp.eq.s32.totalorder %s20, 0
      %p125 = por %p123, %p124
      %p126 = scmp.ne.s32.totalorder %s114, %s115
      %p127 = scmp.eq.s32.totalorder %s21, 1
      %p128 = por %p126, %p127
      %p130 = scmp.ne.s32.totalorder %s115, %s129
      %p131 = scmp.eq.s32.totalorder %s21, 0
      %p132 = por %p130, %p131
      %s134 = sadd.s32 %s133, 1
      %p137 = scmp.eq.s32.totalorder %s15, 1
      %p138 = scmp.ne.s32.totalorder %s133, %s135
      %p139 = scmp.eq.s32.totalorder %s15, 0
      %p140 = por %p138, %p139
      %p141 = scmp.ne.s32.totalorder %s133, %s135
      %p142 = scmp.eq.s32.totalorder %s20, 1
      %p143 = por %p141, %p142
      %p144 = scmp.ne.s32.totalorder %s135, %s136
      %p145 = scmp.eq.s32.totalorder %s20, 0
      %p146 = por %p144, %p145
      %p147 = scmp.ne.s32.totalorder %s135, %s136
      %p148 = scmp.eq.s32.totalorder %s21, 1
      %p149 = por %p147, %p148
      %p151 = scmp.ne.s32.totalorder %s136, %s150
      %p152 = scmp.eq.s32.totalorder %s21, 0
      %p153 = por %p151, %p152
      %s154 = ssub.s32 %s15, %s22
      %p155 = scmp.eq.s32.totalorder %s154, 0
      %s157 = sadd.s32 %s156, 1
      %s158 = scalar_select %p155, %s156, %s157
      %p161 = pneg %p155
      %p162 = scmp.eq.s32.totalorder %s15, 1
      %p163 = por %p161, %p162
      %p164 = scmp.ne.s32.totalorder %s156, %s159
      %p165 = scmp.eq.s32.totalorder %s15, 0
      %p166 = por %p164, %p165
      %p167 = scmp.ne.s32.totalorder %s156, %s159
      %p168 = scmp.eq.s32.totalorder %s20, 1
      %p169 = por %p167, %p168
      %p170 = scmp.ne.s32.totalorder %s159, %s160
      %p171 = scmp.eq.s32.totalorder %s20, 0
      %p172 = por %p170, %p171
      %p173 = scmp.ne.s32.totalorder %s159, %s160
      %p174 = scmp.eq.s32.totalorder %s21, 1
      %p175 = por %p173, %p174
      %p177 = scmp.ne.s32.totalorder %s160, %s176
      %p178 = scmp.eq.s32.totalorder %s21, 0
      %p179 = por %p177, %p178
      %p180 = scmp.le.s32.totalorder 1, %s15
      %p181 = scmp.lt.s32.totalorder %s15, 3
      %p182 = pnand %p180, %p181
      %p183 = pneg %p182
      // Predicated region
      $region9: #{tpu_custom_call.1} parent=5 // pred_check
        _
      $region10: #{tpu_custom_call.1} parent=5 // pred_check_branch
        %185 = sbr.rel (%p182) target = $region12
      $region11: #{tpu_custom_call.1} parent=5 // pred_region
        %s186 = ssub.s32 %s15, 1
        // Predicated region
        $region13: #{tpu_custom_call.1} parent=11 // pred_check
          %p187 = pneg %p62
        $region14: #{tpu_custom_call.1} parent=11 // pred_check_branch
          %189 = sbr.rel (%p187) target = $region16
        $region15: #{tpu_custom_call.1} parent=11 // pred_region
          _
        $region16: #{tpu_custom_call.1} parent=11 // pred_fallthru
          _
        // Predicated region
        $region17: #{tpu_custom_call.1} parent=11 // pred_check
          %p190 = pneg %p83
        $region18: #{tpu_custom_call.1} parent=11 // pred_check_branch
          %192 = sbr.rel (%p190) target = $region20
        $region19: #{tpu_custom_call.1} parent=11 // pred_region
          _
        $region20: #{tpu_custom_call.1} parent=11 // pred_fallthru
          _
        // Predicated region
        $region21: #{tpu_custom_call.1} parent=11 // pred_check
          %p193 = pneg %p104
        $region22: #{tpu_custom_call.1} parent=11 // pred_check_branch
          %195 = sbr.rel (%p193) target = $region24
        $region23: #{tpu_custom_call.1} parent=11 // pred_region
          _
        $region24: #{tpu_custom_call.1} parent=11 // pred_fallthru
          _
        // Predicated region
        $region25: #{tpu_custom_call.1} parent=11 // pred_check
          %p196 = pneg %p125
        $region26: #{tpu_custom_call.1} parent=11 // pred_check_branch
          %198 = sbr.rel (%p196) target = $region28
        $region27: #{tpu_custom_call.1} parent=11 // pred_region
          _
        $region28: #{tpu_custom_call.1} parent=11 // pred_fallthru
          _
        // Predicated region
        $region29: #{tpu_custom_call.1} parent=11 // pred_check
          %p199 = pneg %p146
        $region30: #{tpu_custom_call.1} parent=11 // pred_check_branch
          %201 = sbr.rel (%p199) target = $region32
        $region31: #{tpu_custom_call.1} parent=11 // pred_region
          _
        $region32: #{tpu_custom_call.1} parent=11 // pred_fallthru
          _
      $region12: #{tpu_custom_call.1} parent=5 // pred_fallthru
        _
      %p202 = scmp.lt.s32.totalorder %s15, 2
      // Predicated region
      $region33: #{tpu_custom_call.1} parent=5 // pred_check
        %p203 = pneg %p202
      $region34: #{tpu_custom_call.1} parent=5 // pred_check_branch
        %205 = sbr.rel (%p203) target = $region36
      $region35: #{tpu_custom_call.1} parent=5 // pred_region
        // Predicated region
        $region37: #{tpu_custom_call.1} parent=35 // pred_check
          %p206 = pneg %p35
        $region38: #{tpu_custom_call.1} parent=35 // pred_check_branch
          %208 = sbr.rel (%p206) target = $region40
        $region39: #{tpu_custom_call.1} parent=35 // pred_region
          %p209 = scmp.lt.s32.totalorder %s15, 1
          %s210 = scalar_select %p209, %s15, 1
          %s211 = smul.addr %s210, 2
          %s212 = smul.addr %s211, 4
          %s213 = scalar_lea.vmem %s0, %s212
        $region40: #{tpu_custom_call.1} parent=35 // pred_fallthru
          _
      $region36: #{tpu_custom_call.1} parent=5 // pred_fallthru
        _
      %p214 = scmp.le.s32.totalorder 1, %s15
      %p215 = scmp.lt.s32.totalorder %s15, 3
      %p216 = pnand %p214, %p215
      %p217 = pneg %p216
      // Predicated region
      $region41: #{tpu_custom_call.1} parent=5 // pred_check
        _
      $region42: #{tpu_custom_call.1} parent=5 // pred_check_branch
        %219 = sbr.rel (%p216) target = $region44
      $region43: #{tpu_custom_call.1} parent=5 // pred_region
        %s220 = ssub.s32 %s15, 1
        %p221 = scmp.lt.s32.totalorder %s20, 1
        %s222 = scalar_select %p221, %s20, 1
        %s223 = smul.addr %s222, 2
        %s224 = smul.addr %s223, 4
        %s225 = scalar_lea.vmem %s0, %s224
        %p226 = pneg %p41
        %p227 = pneg %p38
        %p228 = pneg %p62
        %p229 = pneg %p59
        %p230 = pneg %p83
        %p231 = pneg %p80
        %p232 = pneg %p104
        %p233 = pneg %p101
        %p234 = pneg %p125
        %p235 = pneg %p122
        %p236 = pneg %p146
        %p237 = pneg %p143
        %p238 = pneg %p172
        %p239 = pneg %p169
        %s240 = sand.u32 %s159, 1
        %s241 = scalar_lea.sflag [#allocation3], %s240
        %s242 = sand.u32 %s159, 1
        %s243 = smul.addr %s242, 4
        %s244 = scalar_lea.vmem [#allocation2], %s243
        %p245 = scmp.lt.s32.totalorder %s20, 1
        %s246 = scalar_select %p245, %s20, 1
        %s247 = smul.addr %s246, 2
        %s248 = smul.addr %s247, 4
        %s249 = scalar_lea.vmem %s0, %s248
        %v250 = vld [vmem:[%s249] sm:$0xff]
        %v251 = vld [vmem:[%s1] sm:$0xff]
        %v252 = vld [vmem:[%s1 + $0x8] sm:$0xff]
        %v253 = vld [vmem:[%s1 + $0x10] sm:$0xff]
        %v254 = vld [vmem:[%s1 + $0x18] sm:$0xff]
        %v255 = vld [vmem:[%s1 + $0x20] sm:$0xff]
        %v256 = vld [vmem:[%s1 + $0x28] sm:$0xff]
        %v257 = vld [vmem:[%s1 + $0x30] sm:$0xff]
        %v258 = vld [vmem:[%s1 + $0x38] sm:$0xff]
        %v259 = vld [vmem:[%s1 + $0x40] sm:$0xff]
        %v260 = vld [vmem:[%s1 + $0x48] sm:$0xff]
        %v261 = vld [vmem:[%s1 + $0x50] sm:$0xff]
        %v262 = vld [vmem:[%s1 + $0x58] sm:$0xff]
        %v263 = vld [vmem:[%s1 + $0x60] sm:$0xff]
        %v264 = vld [vmem:[%s1 + $0x68] sm:$0xff]
        %v265 = vld [vmem:[%s1 + $0x70] sm:$0xff]
        %v266 = vld [vmem:[%s1 + $0x78] sm:$0xff]
        %v267 = vld [vmem:[%s1 + $0x80] sm:$0xff]
        %v268 = vld [vmem:[%s1 + $0x88] sm:$0xff]
        %v269 = vld [vmem:[%s1 + $0x90] sm:$0xff]
        %v270 = vld [vmem:[%s1 + $0x98] sm:$0xff]
        %v271 = vld [vmem:[%s1 + $0xa0] sm:$0xff]
        %v272 = vld [vmem:[%s1 + $0xa8] sm:$0xff]
        %v273 = vld [vmem:[%s1 + $0xb0] sm:$0xff]
        %v274 = vld [vmem:[%s1 + $0xb8] sm:$0xff]
        %v275 = vld [vmem:[%s1 + $0xc0] sm:$0xff]
        %v276 = vld [vmem:[%s1 + $0xc8] sm:$0xff]
        %v277 = vld [vmem:[%s1 + $0xd0] sm:$0xff]
        %v278 = vld [vmem:[%s1 + $0xd8] sm:$0xff]
        %v279 = vld [vmem:[%s1 + $0xe0] sm:$0xff]
        %v280 = vld [vmem:[%s1 + $0xe8] sm:$0xff]
        %v281 = vld [vmem:[%s1 + $0xf0] sm:$0xff]
        %v282 = vld [vmem:[%s1 + $0xf8] sm:$0xff]
        %v284 = vcombine.high %v250, %v250
        %286 = vmatprep.subr.mxu0 0.0
        %v287 = vand.u32 %v266, 4294901760
        %288 = vmatpush1.msra.mxu0 %v287
        %289 = vmatprep.subr.mxu0 0.0
        %v290 = vand.u32 %v265, 4294901760
        %291 = vmatpush1.msra.mxu0 %v290
        %292 = vmatprep.subr.mxu0 0.0
        %v293 = vand.u32 %v264, 4294901760
        %294 = vmatpush1.msra.mxu0 %v293
        %295 = vmatprep.subr.mxu0 0.0
        %v296 = vand.u32 %v263, 4294901760
        %297 = vmatpush1.msra.mxu0 %v296
        %298 = vmatprep.subr.mxu0 0.0
        %v299 = vand.u32 %v262, 4294901760
        %300 = vmatpush1.msra.mxu0 %v299
        %301 = vmatprep.subr.mxu0 0.0
        %v302 = vand.u32 %v261, 4294901760
        %303 = vmatpush1.msra.mxu0 %v302
        %304 = vmatprep.subr.mxu0 0.0
        %v305 = vand.u32 %v260, 4294901760
        %306 = vmatpush1.msra.mxu0 %v305
        %307 = vmatprep.subr.mxu0 0.0
        %v308 = vand.u32 %v259, 4294901760
        %309 = vmatpush1.msra.mxu0 %v308
        %310 = vmatprep.subr.mxu0 0.0
        %v311 = vand.u32 %v258, 4294901760
        %312 = vmatpush1.msra.mxu0 %v311
        %313 = vmatprep.subr.mxu0 0.0
        %v314 = vand.u32 %v257, 4294901760
        %315 = vmatpush1.msra.mxu0 %v314
        %316 = vmatprep.subr.mxu0 0.0
        %v317 = vand.u32 %v256, 4294901760
        %318 = vmatpush1.msra.mxu0 %v317
        %319 = vmatprep.subr.mxu0 0.0
        %v320 = vand.u32 %v255, 4294901760
        %321 = vmatpush1.msra.mxu0 %v320
        %322 = vmatprep.subr.mxu0 0.0
        %v323 = vand.u32 %v254, 4294901760
        %324 = vmatpush1.msra.mxu0 %v323
        %325 = vmatprep.subr.mxu0 0.0
        %v326 = vand.u32 %v253, 4294901760
        %327 = vmatpush1.msra.mxu0 %v326
        %328 = vmatprep.subr.mxu0 0.0
        %v329 = vand.u32 %v252, 4294901760
        %330 = vmatpush1.msra.mxu0 %v329
        %331 = vmatprep.subr.mxu0 0.0
        %v332 = vand.u32 %v251, 4294901760
        %333 = vmatpush1.msra.mxu0 %v332
        %334 = vmatprep.subr.mxu0 0.0
        %v335 = vand.u32 %v282, 4294901760
        %336 = vmatpush2.msra.mxu0 %v335
        %337 = vmatprep.subr.mxu0 0.0
        %v338 = vand.u32 %v281, 4294901760
        %339 = vmatpush2.msra.mxu0 %v338
        %340 = vmatprep.subr.mxu0 0.0
        %v341 = vand.u32 %v280, 4294901760
        %342 = vmatpush2.msra.mxu0 %v341
        %343 = vmatprep.subr.mxu0 0.0
        %v344 = vand.u32 %v279, 4294901760
        %345 = vmatpush2.msra.mxu0 %v344
        %346 = vmatprep.subr.mxu0 0.0
        %v347 = vand.u32 %v278, 4294901760
        %348 = vmatpush2.msra.mxu0 %v347
        %349 = vmatprep.subr.mxu0 0.0
        %v350 = vand.u32 %v277, 4294901760
        %351 = vmatpush2.msra.mxu0 %v350
        %352 = vmatprep.subr.mxu0 0.0
        %v353 = vand.u32 %v276, 4294901760
        %354 = vmatpush2.msra.mxu0 %v353
        %355 = vmatprep.subr.mxu0 0.0
        %v356 = vand.u32 %v275, 4294901760
        %357 = vmatpush2.msra.mxu0 %v356
        %358 = vmatprep.subr.mxu0 0.0
        %v359 = vand.u32 %v274, 4294901760
        %360 = vmatpush2.msra.mxu0 %v359
        %361 = vmatprep.subr.mxu0 0.0
        %v362 = vand.u32 %v273, 4294901760
        %363 = vmatpush2.msra.mxu0 %v362
        %364 = vmatprep.subr.mxu0 0.0
        %v365 = vand.u32 %v272, 4294901760
        %366 = vmatpush2.msra.mxu0 %v365
        %367 = vmatprep.subr.mxu0 0.0
        %v368 = vand.u32 %v271, 4294901760
        %369 = vmatpush2.msra.mxu0 %v368
        %370 = vmatprep.subr.mxu0 0.0
        %v371 = vand.u32 %v270, 4294901760
        %372 = vmatpush2.msra.mxu0 %v371
        %373 = vmatprep.subr.mxu0 0.0
        %v374 = vand.u32 %v269, 4294901760
        %375 = vmatpush2.msra.mxu0 %v374
        %376 = vmatprep.subr.mxu0 0.0
        %v377 = vand.u32 %v268, 4294901760
        %378 = vmatpush2.msra.mxu0 %v377
        %379 = vmatprep.subr.mxu0 0.0
        %v380 = vand.u32 %v267, 4294901760
        %381 = vmatpush2.msra.mxu0 %v380
        %v382 = vand.u32 %v284, 4294901760
        %v383 = vsub.f32 %v284, %v382
        %v384 = vand.u32 %v383, 4294901760
        %v385 = vsub.f32 %v383, %v384
        %v386 = vand.u32 %v385, 4294901760
        %387 = vmatprep.mubr.f32.mxu0 %v386
        %v388 = vand.u32 %v250, 4294901760
        %v389 = vsub.f32 %v250, %v388
        %v390 = vand.u32 %v389, 4294901760
        %v391 = vsub.f32 %v389, %v390
        %v392 = vand.u32 %v391, 4294901760
        %393 = vmatmul.mubr.f32.gmra.mxu0 %v392
        %v394 = vpop.f32.mrf.mxu0
        %v395 = vadd.f32 0.0, %v394
        %v396 = vpop.f32.mrf.mxu0
        %397 = vdwg.mxu0
        %398 = vmatprep.subr.mxu0 0.0
        %v399 = vand.u32 %v266, 4294901760
        %v400 = vsub.f32 %v266, %v399
        %v401 = vand.u32 %v400, 4294901760
        %v402 = vsub.f32 %v400, %v401
        %v403 = vand.u32 %v402, 4294901760
        %404 = vmatpush1.msra.mxu0 %v403
        %405 = vmatprep.subr.mxu0 0.0
        %v406 = vand.u32 %v265, 4294901760
        %v407 = vsub.f32 %v265, %v406
        %v408 = vand.u32 %v407, 4294901760
        %v409 = vsub.f32 %v407, %v408
        %v410 = vand.u32 %v409, 4294901760
        %411 = vmatpush1.msra.mxu0 %v410
        %412 = vmatprep.subr.mxu0 0.0
        %v413 = vand.u32 %v264, 4294901760
        %v414 = vsub.f32 %v264, %v413
        %v415 = vand.u32 %v414, 4294901760
        %v416 = vsub.f32 %v414, %v415
        %v417 = vand.u32 %v416, 4294901760
        %418 = vmatpush1.msra.mxu0 %v417
        %419 = vmatprep.subr.mxu0 0.0
        %v420 = vand.u32 %v263, 4294901760
        %v421 = vsub.f32 %v263, %v420
        %v422 = vand.u32 %v421, 4294901760
        %v423 = vsub.f32 %v421, %v422
        %v424 = vand.u32 %v423, 4294901760
        %425 = vmatpush1.msra.mxu0 %v424
        %426 = vmatprep.subr.mxu0 0.0
        %v427 = vand.u32 %v262, 4294901760
        %v428 = vsub.f32 %v262, %v427
        %v429 = vand.u32 %v428, 4294901760
        %v430 = vsub.f32 %v428, %v429
        %v431 = vand.u32 %v430, 4294901760
        %432 = vmatpush1.msra.mxu0 %v431
        %433 = vmatprep.subr.mxu0 0.0
        %v434 = vand.u32 %v261, 4294901760
        %v435 = vsub.f32 %v261, %v434
        %v436 = vand.u32 %v435, 4294901760
        %v437 = vsub.f32 %v435, %v436
        %v438 = vand.u32 %v437, 4294901760
        %439 = vmatpush1.msra.mxu0 %v438
        %440 = vmatprep.subr.mxu0 0.0
        %v441 = vand.u32 %v260, 4294901760
        %v442 = vsub.f32 %v260, %v441
        %v443 = vand.u32 %v442, 4294901760
        %v444 = vsub.f32 %v442, %v443
        %v445 = vand.u32 %v444, 4294901760
        %446 = vmatpush1.msra.mxu0 %v445
        %447 = vmatprep.subr.mxu0 0.0
        %v448 = vand.u32 %v259, 4294901760
        %v449 = vsub.f32 %v259, %v448
        %v450 = vand.u32 %v449, 4294901760
        %v451 = vsub.f32 %v449, %v450
        %v452 = vand.u32 %v451, 4294901760
        %453 = vmatpush1.msra.mxu0 %v452
        %454 = vmatprep.subr.mxu0 0.0
        %v455 = vand.u32 %v258, 4294901760
        %v456 = vsub.f32 %v258, %v455
        %v457 = vand.u32 %v456, 4294901760
        %v458 = vsub.f32 %v456, %v457
        %v459 = vand.u32 %v458, 4294901760
        %460 = vmatpush1.msra.mxu0 %v459
        %461 = vmatprep.subr.mxu0 0.0
        %v462 = vand.u32 %v257, 4294901760
        %v463 = vsub.f32 %v257, %v462
        %v464 = vand.u32 %v463, 4294901760
        %v465 = vsub.f32 %v463, %v464
        %v466 = vand.u32 %v465, 4294901760
        %467 = vmatpush1.msra.mxu0 %v466
        %468 = vmatprep.subr.mxu0 0.0
        %v469 = vand.u32 %v256, 4294901760
        %v470 = vsub.f32 %v256, %v469
        %v471 = vand.u32 %v470, 4294901760
        %v472 = vsub.f32 %v470, %v471
        %v473 = vand.u32 %v472, 4294901760
        %474 = vmatpush1.msra.mxu0 %v473
        %475 = vmatprep.subr.mxu0 0.0
        %v476 = vand.u32 %v255, 4294901760
        %v477 = vsub.f32 %v255, %v476
        %v478 = vand.u32 %v477, 4294901760
        %v479 = vsub.f32 %v477, %v478
        %v480 = vand.u32 %v479, 4294901760
        %481 = vmatpush1.msra.mxu0 %v480
        %482 = vmatprep.subr.mxu0 0.0
        %v483 = vand.u32 %v254, 4294901760
        %v484 = vsub.f32 %v254, %v483
        %v485 = vand.u32 %v484, 4294901760
        %v486 = vsub.f32 %v484, %v485
        %v487 = vand.u32 %v486, 4294901760
        %488 = vmatpush1.msra.mxu0 %v487
        %489 = vmatprep.subr.mxu0 0.0
        %v490 = vand.u32 %v253, 4294901760
        %v491 = vsub.f32 %v253, %v490
        %v492 = vand.u32 %v491, 4294901760
        %v493 = vsub.f32 %v491, %v492
        %v494 = vand.u32 %v493, 4294901760
        %495 = vmatpush1.msra.mxu0 %v494
        %496 = vmatprep.subr.mxu0 0.0
        %v497 = vand.u32 %v252, 4294901760
        %v498 = vsub.f32 %v252, %v497
        %v499 = vand.u32 %v498, 4294901760
        %v500 = vsub.f32 %v498, %v499
        %v501 = vand.u32 %v500, 4294901760
        %502 = vmatpush1.msra.mxu0 %v501
        %503 = vmatprep.subr.mxu0 0.0
        %v504 = vand.u32 %v251, 4294901760
        %v505 = vsub.f32 %v251, %v504
        %v506 = vand.u32 %v505, 4294901760
        %v507 = vsub.f32 %v505, %v506
        %v508 = vand.u32 %v507, 4294901760
        %509 = vmatpush1.msra.mxu0 %v508
        %510 = vmatprep.subr.mxu0 0.0
        %v511 = vand.u32 %v282, 4294901760
        %v512 = vsub.f32 %v282, %v511
        %v513 = vand.u32 %v512, 4294901760
        %v514 = vsub.f32 %v512, %v513
        %v515 = vand.u32 %v514, 4294901760
        %516 = vmatpush2.msra.mxu0 %v515
        %517 = vmatprep.subr.mxu0 0.0
        %v518 = vand.u32 %v281, 4294901760
        %v519 = vsub.f32 %v281, %v518
        %v520 = vand.u32 %v519, 4294901760
        %v521 = vsub.f32 %v519, %v520
        %v522 = vand.u32 %v521, 4294901760
        %523 = vmatpush2.msra.mxu0 %v522
        %524 = vmatprep.subr.mxu0 0.0
        %v525 = vand.u32 %v280, 4294901760
        %v526 = vsub.f32 %v280, %v525
        %v527 = vand.u32 %v526, 4294901760
        %v528 = vsub.f32 %v526, %v527
        %v529 = vand.u32 %v528, 4294901760
        %530 = vmatpush2.msra.mxu0 %v529
        %531 = vmatprep.subr.mxu0 0.0
        %v532 = vand.u32 %v279, 4294901760
        %v533 = vsub.f32 %v279, %v532
        %v534 = vand.u32 %v533, 4294901760
        %v535 = vsub.f32 %v533, %v534
        %v536 = vand.u32 %v535, 4294901760
        %537 = vmatpush2.msra.mxu0 %v536
        %538 = vmatprep.subr.mxu0 0.0
        %v539 = vand.u32 %v278, 4294901760
        %v540 = vsub.f32 %v278, %v539
        %v541 = vand.u32 %v540, 4294901760
        %v542 = vsub.f32 %v540, %v541
        %v543 = vand.u32 %v542, 4294901760
        %544 = vmatpush2.msra.mxu0 %v543
        %545 = vmatprep.subr.mxu0 0.0
        %v546 = vand.u32 %v277, 4294901760
        %v547 = vsub.f32 %v277, %v546
        %v548 = vand.u32 %v547, 4294901760
        %v549 = vsub.f32 %v547, %v548
        %v550 = vand.u32 %v549, 4294901760
        %551 = vmatpush2.msra.mxu0 %v550
        %552 = vmatprep.subr.mxu0 0.0
        %v553 = vand.u32 %v276, 4294901760
        %v554 = vsub.f32 %v276, %v553
        %v555 = vand.u32 %v554, 4294901760
        %v556 = vsub.f32 %v554, %v555
        %v557 = vand.u32 %v556, 4294901760
        %558 = vmatpush2.msra.mxu0 %v557
        %559 = vmatprep.subr.mxu0 0.0
        %v560 = vand.u32 %v275, 4294901760
        %v561 = vsub.f32 %v275, %v560
        %v562 = vand.u32 %v561, 4294901760
        %v563 = vsub.f32 %v561, %v562
        %v564 = vand.u32 %v563, 4294901760
        %565 = vmatpush2.msra.mxu0 %v564
        %566 = vmatprep.subr.mxu0 0.0
        %v567 = vand.u32 %v274, 4294901760
        %v568 = vsub.f32 %v274, %v567
        %v569 = vand.u32 %v568, 4294901760
        %v570 = vsub.f32 %v568, %v569
        %v571 = vand.u32 %v570, 4294901760
        %572 = vmatpush2.msra.mxu0 %v571
        %573 = vmatprep.subr.mxu0 0.0
        %v574 = vand.u32 %v273, 4294901760
        %v575 = vsub.f32 %v273, %v574
        %v576 = vand.u32 %v575, 4294901760
        %v577 = vsub.f32 %v575, %v576
        %v578 = vand.u32 %v577, 4294901760
        %579 = vmatpush2.msra.mxu0 %v578
        %580 = vmatprep.subr.mxu0 0.0
        %v581 = vand.u32 %v272, 4294901760
        %v582 = vsub.f32 %v272, %v581
        %v583 = vand.u32 %v582, 4294901760
        %v584 = vsub.f32 %v582, %v583
        %v585 = vand.u32 %v584, 4294901760
        %586 = vmatpush2.msra.mxu0 %v585
        %587 = vmatprep.subr.mxu0 0.0
        %v588 = vand.u32 %v271, 4294901760
        %v589 = vsub.f32 %v271, %v588
        %v590 = vand.u32 %v589, 4294901760
        %v591 = vsub.f32 %v589, %v590
        %v592 = vand.u32 %v591, 4294901760
        %593 = vmatpush2.msra.mxu0 %v592
        %594 = vmatprep.subr.mxu0 0.0
        %v595 = vand.u32 %v270, 4294901760
        %v596 = vsub.f32 %v270, %v595
        %v597 = vand.u32 %v596, 4294901760
        %v598 = vsub.f32 %v596, %v597
        %v599 = vand.u32 %v598, 4294901760
        %600 = vmatpush2.msra.mxu0 %v599
        %601 = vmatprep.subr.mxu0 0.0
        %v602 = vand.u32 %v269, 4294901760
        %v603 = vsub.f32 %v269, %v602
        %v604 = vand.u32 %v603, 4294901760
        %v605 = vsub.f32 %v603, %v604
        %v606 = vand.u32 %v605, 4294901760
        %607 = vmatpush2.msra.mxu0 %v606
        %608 = vmatprep.subr.mxu0 0.0
        %v609 = vand.u32 %v268, 4294901760
        %v610 = vsub.f32 %v268, %v609
        %v611 = vand.u32 %v610, 4294901760
        %v612 = vsub.f32 %v610, %v611
        %v613 = vand.u32 %v612, 4294901760
        %614 = vmatpush2.msra.mxu0 %v613
        %615 = vmatprep.subr.mxu0 0.0
        %v616 = vand.u32 %v267, 4294901760
        %v617 = vsub.f32 %v267, %v616
        %v618 = vand.u32 %v617, 4294901760
        %v619 = vsub.f32 %v617, %v618
        %v620 = vand.u32 %v619, 4294901760
        %621 = vmatpush2.msra.mxu0 %v620
        %v622 = vand.u32 %v284, 4294901760
        %623 = vmatprep.mubr.f32.mxu0 %v622
        %v624 = vand.u32 %v250, 4294901760
        %625 = vmatmul.mubr.f32.gmra.mxu0 %v624
        %v626 = vpop.f32.mrf.mxu0
        %v627 = vadd.f32 %v395, %v626
        %v628 = vpop.f32.mrf.mxu0
        %629 = vdwg.mxu0
        %630 = vmatprep.subr.mxu0 0.0
        %v631 = vand.u32 %v266, 4294901760
        %v632 = vsub.f32 %v266, %v631
        %633 = vmatpush1.msra.mxu0 %v632
        %634 = vmatprep.subr.mxu0 0.0
        %v635 = vand.u32 %v265, 4294901760
        %v636 = vsub.f32 %v265, %v635
        %637 = vmatpush1.msra.mxu0 %v636
        %638 = vmatprep.subr.mxu0 0.0
        %v639 = vand.u32 %v264, 4294901760
        %v640 = vsub.f32 %v264, %v639
        %641 = vmatpush1.msra.mxu0 %v640
        %642 = vmatprep.subr.mxu0 0.0
        %v643 = vand.u32 %v263, 4294901760
        %v644 = vsub.f32 %v263, %v643
        %645 = vmatpush1.msra.mxu0 %v644
        %646 = vmatprep.subr.mxu0 0.0
        %v647 = vand.u32 %v262, 4294901760
        %v648 = vsub.f32 %v262, %v647
        %649 = vmatpush1.msra.mxu0 %v648
        %650 = vmatprep.subr.mxu0 0.0
        %v651 = vand.u32 %v261, 4294901760
        %v652 = vsub.f32 %v261, %v651
        %653 = vmatpush1.msra.mxu0 %v652
        %654 = vmatprep.subr.mxu0 0.0
        %v655 = vand.u32 %v260, 4294901760
        %v656 = vsub.f32 %v260, %v655
        %657 = vmatpush1.msra.mxu0 %v656
        %658 = vmatprep.subr.mxu0 0.0
        %v659 = vand.u32 %v259, 4294901760
        %v660 = vsub.f32 %v259, %v659
        %661 = vmatpush1.msra.mxu0 %v660
        %662 = vmatprep.subr.mxu0 0.0
        %v663 = vand.u32 %v258, 4294901760
        %v664 = vsub.f32 %v258, %v663
        %665 = vmatpush1.msra.mxu0 %v664
        %666 = vmatprep.subr.mxu0 0.0
        %v667 = vand.u32 %v257, 4294901760
        %v668 = vsub.f32 %v257, %v667
        %669 = vmatpush1.msra.mxu0 %v668
        %670 = vmatprep.subr.mxu0 0.0
        %v671 = vand.u32 %v256, 4294901760
        %v672 = vsub.f32 %v256, %v671
        %673 = vmatpush1.msra.mxu0 %v672
        %674 = vmatprep.subr.mxu0 0.0
        %v675 = vand.u32 %v255, 4294901760
        %v676 = vsub.f32 %v255, %v675
        %677 = vmatpush1.msra.mxu0 %v676
        %678 = vmatprep.subr.mxu0 0.0
        %v679 = vand.u32 %v254, 4294901760
        %v680 = vsub.f32 %v254, %v679
        %681 = vmatpush1.msra.mxu0 %v680
        %682 = vmatprep.subr.mxu0 0.0
        %v683 = vand.u32 %v253, 4294901760
        %v684 = vsub.f32 %v253, %v683
        %685 = vmatpush1.msra.mxu0 %v684
        %686 = vmatprep.subr.mxu0 0.0
        %v687 = vand.u32 %v252, 4294901760
        %v688 = vsub.f32 %v252, %v687
        %689 = vmatpush1.msra.mxu0 %v688
        %690 = vmatprep.subr.mxu0 0.0
        %v691 = vand.u32 %v251, 4294901760
        %v692 = vsub.f32 %v251, %v691
        %693 = vmatpush1.msra.mxu0 %v692
        %694 = vmatprep.subr.mxu0 0.0
        %v695 = vand.u32 %v282, 4294901760
        %v696 = vsub.f32 %v282, %v695
        %697 = vmatpush2.msra.mxu0 %v696
        %698 = vmatprep.subr.mxu0 0.0
        %v699 = vand.u32 %v281, 4294901760
        %v700 = vsub.f32 %v281, %v699
        %701 = vmatpush2.msra.mxu0 %v700
        %702 = vmatprep.subr.mxu0 0.0
        %v703 = vand.u32 %v280, 4294901760
        %v704 = vsub.f32 %v280, %v703
        %705 = vmatpush2.msra.mxu0 %v704
        %706 = vmatprep.subr.mxu0 0.0
        %v707 = vand.u32 %v279, 4294901760
        %v708 = vsub.f32 %v279, %v707
        %709 = vmatpush2.msra.mxu0 %v708
        %710 = vmatprep.subr.mxu0 0.0
        %v711 = vand.u32 %v278, 4294901760
        %v712 = vsub.f32 %v278, %v711
        %713 = vmatpush2.msra.mxu0 %v712
        %714 = vmatprep.subr.mxu0 0.0
        %v715 = vand.u32 %v277, 4294901760
        %v716 = vsub.f32 %v277, %v715
        %717 = vmatpush2.msra.mxu0 %v716
        %718 = vmatprep.subr.mxu0 0.0
        %v719 = vand.u32 %v276, 4294901760
        %v720 = vsub.f32 %v276, %v719
        %721 = vmatpush2.msra.mxu0 %v720
        %722 = vmatprep.subr.mxu0 0.0
        %v723 = vand.u32 %v275, 4294901760
        %v724 = vsub.f32 %v275, %v723
        %725 = vmatpush2.msra.mxu0 %v724
        %726 = vmatprep.subr.mxu0 0.0
        %v727 = vand.u32 %v274, 4294901760
        %v728 = vsub.f32 %v274, %v727
        %729 = vmatpush2.msra.mxu0 %v728
        %730 = vmatprep.subr.mxu0 0.0
        %v731 = vand.u32 %v273, 4294901760
        %v732 = vsub.f32 %v273, %v731
        %733 = vmatpush2.msra.mxu0 %v732
        %734 = vmatprep.subr.mxu0 0.0
        %v735 = vand.u32 %v272, 4294901760
        %v736 = vsub.f32 %v272, %v735
        %737 = vmatpush2.msra.mxu0 %v736
        %738 = vmatprep.subr.mxu0 0.0
        %v739 = vand.u32 %v271, 4294901760
        %v740 = vsub.f32 %v271, %v739
        %741 = vmatpush2.msra.mxu0 %v740
        %742 = vmatprep.subr.mxu0 0.0
        %v743 = vand.u32 %v270, 4294901760
        %v744 = vsub.f32 %v270, %v743
        %745 = vmatpush2.msra.mxu0 %v744
        %746 = vmatprep.subr.mxu0 0.0
        %v747 = vand.u32 %v269, 4294901760
        %v748 = vsub.f32 %v269, %v747
        %749 = vmatpush2.msra.mxu0 %v748
        %750 = vmatprep.subr.mxu0 0.0
        %v751 = vand.u32 %v268, 4294901760
        %v752 = vsub.f32 %v268, %v751
        %753 = vmatpush2.msra.mxu0 %v752
        %754 = vmatprep.subr.mxu0 0.0
        %v755 = vand.u32 %v267, 4294901760
        %v756 = vsub.f32 %v267, %v755
        %757 = vmatpush2.msra.mxu0 %v756
        %v758 = vand.u32 %v284, 4294901760
        %v759 = vsub.f32 %v284, %v758
        %760 = vmatprep.mubr.f32.mxu0 %v759
        %v761 = vand.u32 %v250, 4294901760
        %v762 = vsub.f32 %v250, %v761
        %763 = vmatmul.mubr.f32.gmra.mxu0 %v762
        %v764 = vpop.f32.mrf.mxu0
        %v765 = vadd.f32 %v627, %v764
        %v766 = vpop.f32.mrf.mxu0
        %767 = vdwg.mxu0
        %768 = vmatprep.subr.mxu0 0.0
        %v769 = vand.u32 %v266, 4294901760
        %770 = vmatpush1.msra.mxu0 %v769
        %771 = vmatprep.subr.mxu0 0.0
        %v772 = vand.u32 %v265, 4294901760
        %773 = vmatpush1.msra.mxu0 %v772
        %774 = vmatprep.subr.mxu0 0.0
        %v775 = vand.u32 %v264, 4294901760
        %776 = vmatpush1.msra.mxu0 %v775
        %777 = vmatprep.subr.mxu0 0.0
        %v778 = vand.u32 %v263, 4294901760
        %779 = vmatpush1.msra.mxu0 %v778
        %780 = vmatprep.subr.mxu0 0.0
        %v781 = vand.u32 %v262, 4294901760
        %782 = vmatpush1.msra.mxu0 %v781
        %783 = vmatprep.subr.mxu0 0.0
        %v784 = vand.u32 %v261, 4294901760
        %785 = vmatpush1.msra.mxu0 %v784
        %786 = vmatprep.subr.mxu0 0.0
        %v787 = vand.u32 %v260, 4294901760
        %788 = vmatpush1.msra.mxu0 %v787
        %789 = vmatprep.subr.mxu0 0.0
        %v790 = vand.u32 %v259, 4294901760
        %791 = vmatpush1.msra.mxu0 %v790
        %792 = vmatprep.subr.mxu0 0.0
        %v793 = vand.u32 %v258, 4294901760
        %794 = vmatpush1.msra.mxu0 %v793
        %795 = vmatprep.subr.mxu0 0.0
        %v796 = vand.u32 %v257, 4294901760
        %797 = vmatpush1.msra.mxu0 %v796
        %798 = vmatprep.subr.mxu0 0.0
        %v799 = vand.u32 %v256, 4294901760
        %800 = vmatpush1.msra.mxu0 %v799
        %801 = vmatprep.subr.mxu0 0.0
        %v802 = vand.u32 %v255, 4294901760
        %803 = vmatpush1.msra.mxu0 %v802
        %804 = vmatprep.subr.mxu0 0.0
        %v805 = vand.u32 %v254, 4294901760
        %806 = vmatpush1.msra.mxu0 %v805
        %807 = vmatprep.subr.mxu0 0.0
        %v808 = vand.u32 %v253, 4294901760
        %809 = vmatpush1.msra.mxu0 %v808
        %810 = vmatprep.subr.mxu0 0.0
        %v811 = vand.u32 %v252, 4294901760
        %812 = vmatpush1.msra.mxu0 %v811
        %813 = vmatprep.subr.mxu0 0.0
        %v814 = vand.u32 %v251, 4294901760
        %815 = vmatpush1.msra.mxu0 %v814
        %816 = vmatprep.subr.mxu0 0.0
        %v817 = vand.u32 %v282, 4294901760
        %818 = vmatpush2.msra.mxu0 %v817
        %819 = vmatprep.subr.mxu0 0.0
        %v820 = vand.u32 %v281, 4294901760
        %821 = vmatpush2.msra.mxu0 %v820
        %822 = vmatprep.subr.mxu0 0.0
        %v823 = vand.u32 %v280, 4294901760
        %824 = vmatpush2.msra.mxu0 %v823
        %825 = vmatprep.subr.mxu0 0.0
        %v826 = vand.u32 %v279, 4294901760
        %827 = vmatpush2.msra.mxu0 %v826
        %828 = vmatprep.subr.mxu0 0.0
        %v829 = vand.u32 %v278, 4294901760
        %830 = vmatpush2.msra.mxu0 %v829
        %831 = vmatprep.subr.mxu0 0.0
        %v832 = vand.u32 %v277, 4294901760
        %833 = vmatpush2.msra.mxu0 %v832
        %834 = vmatprep.subr.mxu0 0.0
        %v835 = vand.u32 %v276, 4294901760
        %836 = vmatpush2.msra.mxu0 %v835
        %837 = vmatprep.subr.mxu0 0.0
        %v838 = vand.u32 %v275, 4294901760
        %839 = vmatpush2.msra.mxu0 %v838
        %840 = vmatprep.subr.mxu0 0.0
        %v841 = vand.u32 %v274, 4294901760
        %842 = vmatpush2.msra.mxu0 %v841
        %843 = vmatprep.subr.mxu0 0.0
        %v844 = vand.u32 %v273, 4294901760
        %845 = vmatpush2.msra.mxu0 %v844
        %846 = vmatprep.subr.mxu0 0.0
        %v847 = vand.u32 %v272, 4294901760
        %848 = vmatpush2.msra.mxu0 %v847
        %849 = vmatprep.subr.mxu0 0.0
        %v850 = vand.u32 %v271, 4294901760
        %851 = vmatpush2.msra.mxu0 %v850
        %852 = vmatprep.subr.mxu0 0.0
        %v853 = vand.u32 %v270, 4294901760
        %854 = vmatpush2.msra.mxu0 %v853
        %855 = vmatprep.subr.mxu0 0.0
        %v856 = vand.u32 %v269, 4294901760
        %857 = vmatpush2.msra.mxu0 %v856
        %858 = vmatprep.subr.mxu0 0.0
        %v859 = vand.u32 %v268, 4294901760
        %860 = vmatpush2.msra.mxu0 %v859
        %861 = vmatprep.subr.mxu0 0.0
        %v862 = vand.u32 %v267, 4294901760
        %863 = vmatpush2.msra.mxu0 %v862
        %v864 = vand.u32 %v284, 4294901760
        %v865 = vsub.f32 %v284, %v864
        %v866 = vand.u32 %v865, 4294901760
        %867 = vmatprep.mubr.f32.mxu0 %v866
        %v868 = vand.u32 %v250, 4294901760
        %v869 = vsub.f32 %v250, %v868
        %v870 = vand.u32 %v869, 4294901760
        %871 = vmatmul.mubr.f32.gmra.mxu0 %v870
        %v872 = vpop.f32.mrf.mxu0
        %v873 = vadd.f32 %v765, %v872
        %v874 = vpop.f32.mrf.mxu0
        %875 = vdwg.mxu0
        %876 = vmatprep.subr.mxu0 0.0
        %v877 = vand.u32 %v266, 4294901760
        %v878 = vsub.f32 %v266, %v877
        %v879 = vand.u32 %v878, 4294901760
        %880 = vmatpush1.msra.mxu0 %v879
        %881 = vmatprep.subr.mxu0 0.0
        %v882 = vand.u32 %v265, 4294901760
        %v883 = vsub.f32 %v265, %v882
        %v884 = vand.u32 %v883, 4294901760
        %885 = vmatpush1.msra.mxu0 %v884
        %886 = vmatprep.subr.mxu0 0.0
        %v887 = vand.u32 %v264, 4294901760
        %v888 = vsub.f32 %v264, %v887
        %v889 = vand.u32 %v888, 4294901760
        %890 = vmatpush1.msra.mxu0 %v889
        %891 = vmatprep.subr.mxu0 0.0
        %v892 = vand.u32 %v263, 4294901760
        %v893 = vsub.f32 %v263, %v892
        %v894 = vand.u32 %v893, 4294901760
        %895 = vmatpush1.msra.mxu0 %v894
        %896 = vmatprep.subr.mxu0 0.0
        %v897 = vand.u32 %v262, 4294901760
        %v898 = vsub.f32 %v262, %v897
        %v899 = vand.u32 %v898, 4294901760
        %900 = vmatpush1.msra.mxu0 %v899
        %901 = vmatprep.subr.mxu0 0.0
        %v902 = vand.u32 %v261, 4294901760
        %v903 = vsub.f32 %v261, %v902
        %v904 = vand.u32 %v903, 4294901760
        %905 = vmatpush1.msra.mxu0 %v904
        %906 = vmatprep.subr.mxu0 0.0
        %v907 = vand.u32 %v260, 4294901760
        %v908 = vsub.f32 %v260, %v907
        %v909 = vand.u32 %v908, 4294901760
        %910 = vmatpush1.msra.mxu0 %v909
        %911 = vmatprep.subr.mxu0 0.0
        %v912 = vand.u32 %v259, 4294901760
        %v913 = vsub.f32 %v259, %v912
        %v914 = vand.u32 %v913, 4294901760
        %915 = vmatpush1.msra.mxu0 %v914
        %916 = vmatprep.subr.mxu0 0.0
        %v917 = vand.u32 %v258, 4294901760
        %v918 = vsub.f32 %v258, %v917
        %v919 = vand.u32 %v918, 4294901760
        %920 = vmatpush1.msra.mxu0 %v919
        %921 = vmatprep.subr.mxu0 0.0
        %v922 = vand.u32 %v257, 4294901760
        %v923 = vsub.f32 %v257, %v922
        %v924 = vand.u32 %v923, 4294901760
        %925 = vmatpush1.msra.mxu0 %v924
        %926 = vmatprep.subr.mxu0 0.0
        %v927 = vand.u32 %v256, 4294901760
        %v928 = vsub.f32 %v256, %v927
        %v929 = vand.u32 %v928, 4294901760
        %930 = vmatpush1.msra.mxu0 %v929
        %931 = vmatprep.subr.mxu0 0.0
        %v932 = vand.u32 %v255, 4294901760
        %v933 = vsub.f32 %v255, %v932
        %v934 = vand.u32 %v933, 4294901760
        %935 = vmatpush1.msra.mxu0 %v934
        %936 = vmatprep.subr.mxu0 0.0
        %v937 = vand.u32 %v254, 4294901760
        %v938 = vsub.f32 %v254, %v937
        %v939 = vand.u32 %v938, 4294901760
        %940 = vmatpush1.msra.mxu0 %v939
        %941 = vmatprep.subr.mxu0 0.0
        %v942 = vand.u32 %v253, 4294901760
        %v943 = vsub.f32 %v253, %v942
        %v944 = vand.u32 %v943, 4294901760
        %945 = vmatpush1.msra.mxu0 %v944
        %946 = vmatprep.subr.mxu0 0.0
        %v947 = vand.u32 %v252, 4294901760
        %v948 = vsub.f32 %v252, %v947
        %v949 = vand.u32 %v948, 4294901760
        %950 = vmatpush1.msra.mxu0 %v949
        %951 = vmatprep.subr.mxu0 0.0
        %v952 = vand.u32 %v251, 4294901760
        %v953 = vsub.f32 %v251, %v952
        %v954 = vand.u32 %v953, 4294901760
        %955 = vmatpush1.msra.mxu0 %v954
        %956 = vmatprep.subr.mxu0 0.0
        %v957 = vand.u32 %v282, 4294901760
        %v958 = vsub.f32 %v282, %v957
        %v959 = vand.u32 %v958, 4294901760
        %960 = vmatpush2.msra.mxu0 %v959
        %961 = vmatprep.subr.mxu0 0.0
        %v962 = vand.u32 %v281, 4294901760
        %v963 = vsub.f32 %v281, %v962
        %v964 = vand.u32 %v963, 4294901760
        %965 = vmatpush2.msra.mxu0 %v964
        %966 = vmatprep.subr.mxu0 0.0
        %v967 = vand.u32 %v280, 4294901760
        %v968 = vsub.f32 %v280, %v967
        %v969 = vand.u32 %v968, 4294901760
        %970 = vmatpush2.msra.mxu0 %v969
        %971 = vmatprep.subr.mxu0 0.0
        %v972 = vand.u32 %v279, 4294901760
        %v973 = vsub.f32 %v279, %v972
        %v974 = vand.u32 %v973, 4294901760
        %975 = vmatpush2.msra.mxu0 %v974
        %976 = vmatprep.subr.mxu0 0.0
        %v977 = vand.u32 %v278, 4294901760
        %v978 = vsub.f32 %v278, %v977
        %v979 = vand.u32 %v978, 4294901760
        %980 = vmatpush2.msra.mxu0 %v979
        %981 = vmatprep.subr.mxu0 0.0
        %v982 = vand.u32 %v277, 4294901760
        %v983 = vsub.f32 %v277, %v982
        %v984 = vand.u32 %v983, 4294901760
        %985 = vmatpush2.msra.mxu0 %v984
        %986 = vmatprep.subr.mxu0 0.0
        %v987 = vand.u32 %v276, 4294901760
        %v988 = vsub.f32 %v276, %v987
        %v989 = vand.u32 %v988, 4294901760
        %990 = vmatpush2.msra.mxu0 %v989
        %991 = vmatprep.subr.mxu0 0.0
        %v992 = vand.u32 %v275, 4294901760
        %v993 = vsub.f32 %v275, %v992
        %v994 = vand.u32 %v993, 4294901760
        %995 = vmatpush2.msra.mxu0 %v994
        %996 = vmatprep.subr.mxu0 0.0
        %v997 = vand.u32 %v274, 4294901760
        %v998 = vsub.f32 %v274, %v997
        %v999 = vand.u32 %v998, 4294901760
        %1000 = vmatpush2.msra.mxu0 %v999
        %1001 = vmatprep.subr.mxu0 0.0
        %v1002 = vand.u32 %v273, 4294901760
        %v1003 = vsub.f32 %v273, %v1002
        %v1004 = vand.u32 %v1003, 4294901760
        %1005 = vmatpush2.msra.mxu0 %v1004
        %1006 = vmatprep.subr.mxu0 0.0
        %v1007 = vand.u32 %v272, 4294901760
        %v1008 = vsub.f32 %v272, %v1007
        %v1009 = vand.u32 %v1008, 4294901760
        %1010 = vmatpush2.msra.mxu0 %v1009
        %1011 = vmatprep.subr.mxu0 0.0
        %v1012 = vand.u32 %v271, 4294901760
        %v1013 = vsub.f32 %v271, %v1012
        %v1014 = vand.u32 %v1013, 4294901760
        %1015 = vmatpush2.msra.mxu0 %v1014
        %1016 = vmatprep.subr.mxu0 0.0
        %v1017 = vand.u32 %v270, 4294901760
        %v1018 = vsub.f32 %v270, %v1017
        %v1019 = vand.u32 %v1018, 4294901760
        %1020 = vmatpush2.msra.mxu0 %v1019
        %1021 = vmatprep.subr.mxu0 0.0
        %v1022 = vand.u32 %v269, 4294901760
        %v1023 = vsub.f32 %v269, %v1022
        %v1024 = vand.u32 %v1023, 4294901760
        %1025 = vmatpush2.msra.mxu0 %v1024
        %1026 = vmatprep.subr.mxu0 0.0
        %v1027 = vand.u32 %v268, 4294901760
        %v1028 = vsub.f32 %v268, %v1027
        %v1029 = vand.u32 %v1028, 4294901760
        %1030 = vmatpush2.msra.mxu0 %v1029
        %1031 = vmatprep.subr.mxu0 0.0
        %v1032 = vand.u32 %v267, 4294901760
        %v1033 = vsub.f32 %v267, %v1032
        %v1034 = vand.u32 %v1033, 4294901760
        %1035 = vmatpush2.msra.mxu0 %v1034
        %v1036 = vand.u32 %v284, 4294901760
        %1037 = vmatprep.mubr.f32.mxu0 %v1036
        %v1038 = vand.u32 %v250, 4294901760
        %1039 = vmatmul.mubr.f32.gmra.mxu0 %v1038
        %v1040 = vpop.f32.mrf.mxu0
        %v1041 = vadd.f32 %v873, %v1040
        %v1042 = vpop.f32.mrf.mxu0
        %1043 = vdwg.mxu0
        %1044 = vmatprep.subr.mxu0 0.0
        %v1045 = vand.u32 %v266, 4294901760
        %1046 = vmatpush1.msra.mxu0 %v1045
        %1047 = vmatprep.subr.mxu0 0.0
        %v1048 = vand.u32 %v265, 4294901760
        %1049 = vmatpush1.msra.mxu0 %v1048
        %1050 = vmatprep.subr.mxu0 0.0
        %v1051 = vand.u32 %v264, 4294901760
        %1052 = vmatpush1.msra.mxu0 %v1051
        %1053 = vmatprep.subr.mxu0 0.0
        %v1054 = vand.u32 %v263, 4294901760
        %1055 = vmatpush1.msra.mxu0 %v1054
        %1056 = vmatprep.subr.mxu0 0.0
        %v1057 = vand.u32 %v262, 4294901760
        %1058 = vmatpush1.msra.mxu0 %v1057
        %1059 = vmatprep.subr.mxu0 0.0
        %v1060 = vand.u32 %v261, 4294901760
        %1061 = vmatpush1.msra.mxu0 %v1060
        %1062 = vmatprep.subr.mxu0 0.0
        %v1063 = vand.u32 %v260, 4294901760
        %1064 = vmatpush1.msra.mxu0 %v1063
        %1065 = vmatprep.subr.mxu0 0.0
        %v1066 = vand.u32 %v259, 4294901760
        %1067 = vmatpush1.msra.mxu0 %v1066
        %1068 = vmatprep.subr.mxu0 0.0
        %v1069 = vand.u32 %v258, 4294901760
        %1070 = vmatpush1.msra.mxu0 %v1069
        %1071 = vmatprep.subr.mxu0 0.0
        %v1072 = vand.u32 %v257, 4294901760
        %1073 = vmatpush1.msra.mxu0 %v1072
        %1074 = vmatprep.subr.mxu0 0.0
        %v1075 = vand.u32 %v256, 4294901760
        %1076 = vmatpush1.msra.mxu0 %v1075
        %1077 = vmatprep.subr.mxu0 0.0
        %v1078 = vand.u32 %v255, 4294901760
        %1079 = vmatpush1.msra.mxu0 %v1078
        %1080 = vmatprep.subr.mxu0 0.0
        %v1081 = vand.u32 %v254, 4294901760
        %1082 = vmatpush1.msra.mxu0 %v1081
        %1083 = vmatprep.subr.mxu0 0.0
        %v1084 = vand.u32 %v253, 4294901760
        %1085 = vmatpush1.msra.mxu0 %v1084
        %1086 = vmatprep.subr.mxu0 0.0
        %v1087 = vand.u32 %v252, 4294901760
        %1088 = vmatpush1.msra.mxu0 %v1087
        %1089 = vmatprep.subr.mxu0 0.0
        %v1090 = vand.u32 %v251, 4294901760
        %1091 = vmatpush1.msra.mxu0 %v1090
        %1092 = vmatprep.subr.mxu0 0.0
        %v1093 = vand.u32 %v282, 4294901760
        %1094 = vmatpush2.msra.mxu0 %v1093
        %1095 = vmatprep.subr.mxu0 0.0
        %v1096 = vand.u32 %v281, 4294901760
        %1097 = vmatpush2.msra.mxu0 %v1096
        %1098 = vmatprep.subr.mxu0 0.0
        %v1099 = vand.u32 %v280, 4294901760
        %1100 = vmatpush2.msra.mxu0 %v1099
        %1101 = vmatprep.subr.mxu0 0.0
        %v1102 = vand.u32 %v279, 4294901760
        %1103 = vmatpush2.msra.mxu0 %v1102
        %1104 = vmatprep.subr.mxu0 0.0
        %v1105 = vand.u32 %v278, 4294901760
        %1106 = vmatpush2.msra.mxu0 %v1105
        %1107 = vmatprep.subr.mxu0 0.0
        %v1108 = vand.u32 %v277, 4294901760
        %1109 = vmatpush2.msra.mxu0 %v1108
        %1110 = vmatprep.subr.mxu0 0.0
        %v1111 = vand.u32 %v276, 4294901760
        %1112 = vmatpush2.msra.mxu0 %v1111
        %1113 = vmatprep.subr.mxu0 0.0
        %v1114 = vand.u32 %v275, 4294901760
        %1115 = vmatpush2.msra.mxu0 %v1114
        %1116 = vmatprep.subr.mxu0 0.0
        %v1117 = vand.u32 %v274, 4294901760
        %1118 = vmatpush2.msra.mxu0 %v1117
        %1119 = vmatprep.subr.mxu0 0.0
        %v1120 = vand.u32 %v273, 4294901760
        %1121 = vmatpush2.msra.mxu0 %v1120
        %1122 = vmatprep.subr.mxu0 0.0
        %v1123 = vand.u32 %v272, 4294901760
        %1124 = vmatpush2.msra.mxu0 %v1123
        %1125 = vmatprep.subr.mxu0 0.0
        %v1126 = vand.u32 %v271, 4294901760
        %1127 = vmatpush2.msra.mxu0 %v1126
        %1128 = vmatprep.subr.mxu0 0.0
        %v1129 = vand.u32 %v270, 4294901760
        %1130 = vmatpush2.msra.mxu0 %v1129
        %1131 = vmatprep.subr.mxu0 0.0
        %v1132 = vand.u32 %v269, 4294901760
        %1133 = vmatpush2.msra.mxu0 %v1132
        %1134 = vmatprep.subr.mxu0 0.0
        %v1135 = vand.u32 %v268, 4294901760
        %1136 = vmatpush2.msra.mxu0 %v1135
        %1137 = vmatprep.subr.mxu0 0.0
        %v1138 = vand.u32 %v267, 4294901760
        %1139 = vmatpush2.msra.mxu0 %v1138
        %v1140 = vand.u32 %v284, 4294901760
        %1141 = vmatprep.mubr.f32.mxu0 %v1140
        %v1142 = vand.u32 %v250, 4294901760
        %1143 = vmatmul.mubr.f32.gmra.mxu0 %v1142
        %v1144 = vpop.f32.mrf.mxu0
        %v1145 = vadd.f32 %v1041, %v1144
        %v1146 = vpop.f32.mrf.mxu0
        %1147 = vdwg.mxu0
        %s1148 = scalar_lea.vmem %s1, 256
        %v1149 = vld [vmem:[%s1148] sm:$0xff]
        %v1150 = vld [vmem:[%s1148 + $0x8] sm:$0xff]
        %v1151 = vld [vmem:[%s1148 + $0x10] sm:$0xff]
        %v1152 = vld [vmem:[%s1148 + $0x18] sm:$0xff]
        %v1153 = vld [vmem:[%s1148 + $0x20] sm:$0xff]
        %v1154 = vld [vmem:[%s1148 + $0x28] sm:$0xff]
        %v1155 = vld [vmem:[%s1148 + $0x30] sm:$0xff]
        %v1156 = vld [vmem:[%s1148 + $0x38] sm:$0xff]
        %v1157 = vld [vmem:[%s1148 + $0x40] sm:$0xff]
        %v1158 = vld [vmem:[%s1148 + $0x48] sm:$0xff]
        %v1159 = vld [vmem:[%s1148 + $0x50] sm:$0xff]
        %v1160 = vld [vmem:[%s1148 + $0x58] sm:$0xff]
        %v1161 = vld [vmem:[%s1148 + $0x60] sm:$0xff]
        %v1162 = vld [vmem:[%s1148 + $0x68] sm:$0xff]
        %v1163 = vld [vmem:[%s1148 + $0x70] sm:$0xff]
        %v1164 = vld [vmem:[%s1148 + $0x78] sm:$0xff]
        %v1165 = vld [vmem:[%s1148 + $0x80] sm:$0xff]
        %v1166 = vld [vmem:[%s1148 + $0x88] sm:$0xff]
        %v1167 = vld [vmem:[%s1148 + $0x90] sm:$0xff]
        %v1168 = vld [vmem:[%s1148 + $0x98] sm:$0xff]
        %v1169 = vld [vmem:[%s1148 + $0xa0] sm:$0xff]
        %v1170 = vld [vmem:[%s1148 + $0xa8] sm:$0xff]
        %v1171 = vld [vmem:[%s1148 + $0xb0] sm:$0xff]
        %v1172 = vld [vmem:[%s1148 + $0xb8] sm:$0xff]
        %v1173 = vld [vmem:[%s1148 + $0xc0] sm:$0xff]
        %v1174 = vld [vmem:[%s1148 + $0xc8] sm:$0xff]
        %v1175 = vld [vmem:[%s1148 + $0xd0] sm:$0xff]
        %v1176 = vld [vmem:[%s1148 + $0xd8] sm:$0xff]
        %v1177 = vld [vmem:[%s1148 + $0xe0] sm:$0xff]
        %v1178 = vld [vmem:[%s1148 + $0xe8] sm:$0xff]
        %v1179 = vld [vmem:[%s1148 + $0xf0] sm:$0xff]
        %v1180 = vld [vmem:[%s1148 + $0xf8] sm:$0xff]
        %1181 = vmatprep.subr.mxu0 0.0
        %v1182 = vand.u32 %v1164, 4294901760
        %1183 = vmatpush1.msra.mxu0 %v1182
        %1184 = vmatprep.subr.mxu0 0.0
        %v1185 = vand.u32 %v1163, 4294901760
        %1186 = vmatpush1.msra.mxu0 %v1185
        %1187 = vmatprep.subr.mxu0 0.0
        %v1188 = vand.u32 %v1162, 4294901760
        %1189 = vmatpush1.msra.mxu0 %v1188
        %1190 = vmatprep.subr.mxu0 0.0
        %v1191 = vand.u32 %v1161, 4294901760
        %1192 = vmatpush1.msra.mxu0 %v1191
        %1193 = vmatprep.subr.mxu0 0.0
        %v1194 = vand.u32 %v1160, 4294901760
        %1195 = vmatpush1.msra.mxu0 %v1194
        %1196 = vmatprep.subr.mxu0 0.0
        %v1197 = vand.u32 %v1159, 4294901760
        %1198 = vmatpush1.msra.mxu0 %v1197
        %1199 = vmatprep.subr.mxu0 0.0
        %v1200 = vand.u32 %v1158, 4294901760
        %1201 = vmatpush1.msra.mxu0 %v1200
        %1202 = vmatprep.subr.mxu0 0.0
        %v1203 = vand.u32 %v1157, 4294901760
        %1204 = vmatpush1.msra.mxu0 %v1203
        %1205 = vmatprep.subr.mxu0 0.0
        %v1206 = vand.u32 %v1156, 4294901760
        %1207 = vmatpush1.msra.mxu0 %v1206
        %1208 = vmatprep.subr.mxu0 0.0
        %v1209 = vand.u32 %v1155, 4294901760
        %1210 = vmatpush1.msra.mxu0 %v1209
        %1211 = vmatprep.subr.mxu0 0.0
        %v1212 = vand.u32 %v1154, 4294901760
        %1213 = vmatpush1.msra.mxu0 %v1212
        %1214 = vmatprep.subr.mxu0 0.0
        %v1215 = vand.u32 %v1153, 4294901760
        %1216 = vmatpush1.msra.mxu0 %v1215
        %1217 = vmatprep.subr.mxu0 0.0
        %v1218 = vand.u32 %v1152, 4294901760
        %1219 = vmatpush1.msra.mxu0 %v1218
        %1220 = vmatprep.subr.mxu0 0.0
        %v1221 = vand.u32 %v1151, 4294901760
        %1222 = vmatpush1.msra.mxu0 %v1221
        %1223 = vmatprep.subr.mxu0 0.0
        %v1224 = vand.u32 %v1150, 4294901760
        %1225 = vmatpush1.msra.mxu0 %v1224
        %1226 = vmatprep.subr.mxu0 0.0
        %v1227 = vand.u32 %v1149, 4294901760
        %1228 = vmatpush1.msra.mxu0 %v1227
        %1229 = vmatprep.subr.mxu0 0.0
        %v1230 = vand.u32 %v1180, 4294901760
        %1231 = vmatpush2.msra.mxu0 %v1230
        %1232 = vmatprep.subr.mxu0 0.0
        %v1233 = vand.u32 %v1179, 4294901760
        %1234 = vmatpush2.msra.mxu0 %v1233
        %1235 = vmatprep.subr.mxu0 0.0
        %v1236 = vand.u32 %v1178, 4294901760
        %1237 = vmatpush2.msra.mxu0 %v1236
        %1238 = vmatprep.subr.mxu0 0.0
        %v1239 = vand.u32 %v1177, 4294901760
        %1240 = vmatpush2.msra.mxu0 %v1239
        %1241 = vmatprep.subr.mxu0 0.0
        %v1242 = vand.u32 %v1176, 4294901760
        %1243 = vmatpush2.msra.mxu0 %v1242
        %1244 = vmatprep.subr.mxu0 0.0
        %v1245 = vand.u32 %v1175, 4294901760
        %1246 = vmatpush2.msra.mxu0 %v1245
        %1247 = vmatprep.subr.mxu0 0.0
        %v1248 = vand.u32 %v1174, 4294901760
        %1249 = vmatpush2.msra.mxu0 %v1248
        %1250 = vmatprep.subr.mxu0 0.0
        %v1251 = vand.u32 %v1173, 4294901760
        %1252 = vmatpush2.msra.mxu0 %v1251
        %1253 = vmatprep.subr.mxu0 0.0
        %v1254 = vand.u32 %v1172, 4294901760
        %1255 = vmatpush2.msra.mxu0 %v1254
        %1256 = vmatprep.subr.mxu0 0.0
        %v1257 = vand.u32 %v1171, 4294901760
        %1258 = vmatpush2.msra.mxu0 %v1257
        %1259 = vmatprep.subr.mxu0 0.0
        %v1260 = vand.u32 %v1170, 4294901760
        %1261 = vmatpush2.msra.mxu0 %v1260
        %1262 = vmatprep.subr.mxu0 0.0
        %v1263 = vand.u32 %v1169, 4294901760
        %1264 = vmatpush2.msra.mxu0 %v1263
        %1265 = vmatprep.subr.mxu0 0.0
        %v1266 = vand.u32 %v1168, 4294901760
        %1267 = vmatpush2.msra.mxu0 %v1266
        %1268 = vmatprep.subr.mxu0 0.0
        %v1269 = vand.u32 %v1167, 4294901760
        %1270 = vmatpush2.msra.mxu0 %v1269
        %1271 = vmatprep.subr.mxu0 0.0
        %v1272 = vand.u32 %v1166, 4294901760
        %1273 = vmatpush2.msra.mxu0 %v1272
        %1274 = vmatprep.subr.mxu0 0.0
        %v1275 = vand.u32 %v1165, 4294901760
        %1276 = vmatpush2.msra.mxu0 %v1275
        %v1277 = vand.u32 %v284, 4294901760
        %v1278 = vsub.f32 %v284, %v1277
        %v1279 = vand.u32 %v1278, 4294901760
        %v1280 = vsub.f32 %v1278, %v1279
        %v1281 = vand.u32 %v1280, 4294901760
        %1282 = vmatprep.mubr.f32.mxu0 %v1281
        %v1283 = vand.u32 %v250, 4294901760
        %v1284 = vsub.f32 %v250, %v1283
        %v1285 = vand.u32 %v1284, 4294901760
        %v1286 = vsub.f32 %v1284, %v1285
        %v1287 = vand.u32 %v1286, 4294901760
        %1288 = vmatmul.mubr.f32.gmra.mxu0 %v1287
        %v1289 = vpop.f32.mrf.mxu0
        %v1290 = vadd.f32 0.0, %v1289
        %v1291 = vpop.f32.mrf.mxu0
        %1292 = vdwg.mxu0
        %1293 = vmatprep.subr.mxu0 0.0
        %v1294 = vand.u32 %v1164, 4294901760
        %v1295 = vsub.f32 %v1164, %v1294
        %v1296 = vand.u32 %v1295, 4294901760
        %v1297 = vsub.f32 %v1295, %v1296
        %v1298 = vand.u32 %v1297, 4294901760
        %1299 = vmatpush1.msra.mxu0 %v1298
        %1300 = vmatprep.subr.mxu0 0.0
        %v1301 = vand.u32 %v1163, 4294901760
        %v1302 = vsub.f32 %v1163, %v1301
        %v1303 = vand.u32 %v1302, 4294901760
        %v1304 = vsub.f32 %v1302, %v1303
        %v1305 = vand.u32 %v1304, 4294901760
        %1306 = vmatpush1.msra.mxu0 %v1305
        %1307 = vmatprep.subr.mxu0 0.0
        %v1308 = vand.u32 %v1162, 4294901760
        %v1309 = vsub.f32 %v1162, %v1308
        %v1310 = vand.u32 %v1309, 4294901760
        %v1311 = vsub.f32 %v1309, %v1310
        %v1312 = vand.u32 %v1311, 4294901760
        %1313 = vmatpush1.msra.mxu0 %v1312
        %1314 = vmatprep.subr.mxu0 0.0
        %v1315 = vand.u32 %v1161, 4294901760
        %v1316 = vsub.f32 %v1161, %v1315
        %v1317 = vand.u32 %v1316, 4294901760
        %v1318 = vsub.f32 %v1316, %v1317
        %v1319 = vand.u32 %v1318, 4294901760
        %1320 = vmatpush1.msra.mxu0 %v1319
        %1321 = vmatprep.subr.mxu0 0.0
        %v1322 = vand.u32 %v1160, 4294901760
        %v1323 = vsub.f32 %v1160, %v1322
        %v1324 = vand.u32 %v1323, 4294901760
        %v1325 = vsub.f32 %v1323, %v1324
        %v1326 = vand.u32 %v1325, 4294901760
        %1327 = vmatpush1.msra.mxu0 %v1326
        %1328 = vmatprep.subr.mxu0 0.0
        %v1329 = vand.u32 %v1159, 4294901760
        %v1330 = vsub.f32 %v1159, %v1329
        %v1331 = vand.u32 %v1330, 4294901760
        %v1332 = vsub.f32 %v1330, %v1331
        %v1333 = vand.u32 %v1332, 4294901760
        %1334 = vmatpush1.msra.mxu0 %v1333
        %1335 = vmatprep.subr.mxu0 0.0
        %v1336 = vand.u32 %v1158, 4294901760
        %v1337 = vsub.f32 %v1158, %v1336
        %v1338 = vand.u32 %v1337, 4294901760
        %v1339 = vsub.f32 %v1337, %v1338
        %v1340 = vand.u32 %v1339, 4294901760
        %1341 = vmatpush1.msra.mxu0 %v1340
        %1342 = vmatprep.subr.mxu0 0.0
        %v1343 = vand.u32 %v1157, 4294901760
        %v1344 = vsub.f32 %v1157, %v1343
        %v1345 = vand.u32 %v1344, 4294901760
        %v1346 = vsub.f32 %v1344, %v1345
        %v1347 = vand.u32 %v1346, 4294901760
        %1348 = vmatpush1.msra.mxu0 %v1347
        %1349 = vmatprep.subr.mxu0 0.0
        %v1350 = vand.u32 %v1156, 4294901760
        %v1351 = vsub.f32 %v1156, %v1350
        %v1352 = vand.u32 %v1351, 4294901760
        %v1353 = vsub.f32 %v1351, %v1352
        %v1354 = vand.u32 %v1353, 4294901760
        %1355 = vmatpush1.msra.mxu0 %v1354
        %1356 = vmatprep.subr.mxu0 0.0
        %v1357 = vand.u32 %v1155, 4294901760
        %v1358 = vsub.f32 %v1155, %v1357
        %v1359 = vand.u32 %v1358, 4294901760
        %v1360 = vsub.f32 %v1358, %v1359
        %v1361 = vand.u32 %v1360, 4294901760
        %1362 = vmatpush1.msra.mxu0 %v1361
        %1363 = vmatprep.subr.mxu0 0.0
        %v1364 = vand.u32 %v1154, 4294901760
        %v1365 = vsub.f32 %v1154, %v1364
        %v1366 = vand.u32 %v1365, 4294901760
        %v1367 = vsub.f32 %v1365, %v1366
        %v1368 = vand.u32 %v1367, 4294901760
        %1369 = vmatpush1.msra.mxu0 %v1368
        %1370 = vmatprep.subr.mxu0 0.0
        %v1371 = vand.u32 %v1153, 4294901760
        %v1372 = vsub.f32 %v1153, %v1371
        %v1373 = vand.u32 %v1372, 4294901760
        %v1374 = vsub.f32 %v1372, %v1373
        %v1375 = vand.u32 %v1374, 4294901760
        %1376 = vmatpush1.msra.mxu0 %v1375
        %1377 = vmatprep.subr.mxu0 0.0
        %v1378 = vand.u32 %v1152, 4294901760
        %v1379 = vsub.f32 %v1152, %v1378
        %v1380 = vand.u32 %v1379, 4294901760
        %v1381 = vsub.f32 %v1379, %v1380
        %v1382 = vand.u32 %v1381, 4294901760
        %1383 = vmatpush1.msra.mxu0 %v1382
        %1384 = vmatprep.subr.mxu0 0.0
        %v1385 = vand.u32 %v1151, 4294901760
        %v1386 = vsub.f32 %v1151, %v1385
        %v1387 = vand.u32 %v1386, 4294901760
        %v1388 = vsub.f32 %v1386, %v1387
        %v1389 = vand.u32 %v1388, 4294901760
        %1390 = vmatpush1.msra.mxu0 %v1389
        %1391 = vmatprep.subr.mxu0 0.0
        %v1392 = vand.u32 %v1150, 4294901760
        %v1393 = vsub.f32 %v1150, %v1392
        %v1394 = vand.u32 %v1393, 4294901760
        %v1395 = vsub.f32 %v1393, %v1394
        %v1396 = vand.u32 %v1395, 4294901760
        %1397 = vmatpush1.msra.mxu0 %v1396
        %1398 = vmatprep.subr.mxu0 0.0
        %v1399 = vand.u32 %v1149, 4294901760
        %v1400 = vsub.f32 %v1149, %v1399
        %v1401 = vand.u32 %v1400, 4294901760
        %v1402 = vsub.f32 %v1400, %v1401
        %v1403 = vand.u32 %v1402, 4294901760
        %1404 = vmatpush1.msra.mxu0 %v1403
        %1405 = vmatprep.subr.mxu0 0.0
        %v1406 = vand.u32 %v1180, 4294901760
        %v1407 = vsub.f32 %v1180, %v1406
        %v1408 = vand.u32 %v1407, 4294901760
        %v1409 = vsub.f32 %v1407, %v1408
        %v1410 = vand.u32 %v1409, 4294901760
        %1411 = vmatpush2.msra.mxu0 %v1410
        %1412 = vmatprep.subr.mxu0 0.0
        %v1413 = vand.u32 %v1179, 4294901760
        %v1414 = vsub.f32 %v1179, %v1413
        %v1415 = vand.u32 %v1414, 4294901760
        %v1416 = vsub.f32 %v1414, %v1415
        %v1417 = vand.u32 %v1416, 4294901760
        %1418 = vmatpush2.msra.mxu0 %v1417
        %1419 = vmatprep.subr.mxu0 0.0
        %v1420 = vand.u32 %v1178, 4294901760
        %v1421 = vsub.f32 %v1178, %v1420
        %v1422 = vand.u32 %v1421, 4294901760
        %v1423 = vsub.f32 %v1421, %v1422
        %v1424 = vand.u32 %v1423, 4294901760
        %1425 = vmatpush2.msra.mxu0 %v1424
        %1426 = vmatprep.subr.mxu0 0.0
        %v1427 = vand.u32 %v1177, 4294901760
        %v1428 = vsub.f32 %v1177, %v1427
        %v1429 = vand.u32 %v1428, 4294901760
        %v1430 = vsub.f32 %v1428, %v1429
        %v1431 = vand.u32 %v1430, 4294901760
        %1432 = vmatpush2.msra.mxu0 %v1431
        %1433 = vmatprep.subr.mxu0 0.0
        %v1434 = vand.u32 %v1176, 4294901760
        %v1435 = vsub.f32 %v1176, %v1434
        %v1436 = vand.u32 %v1435, 4294901760
        %v1437 = vsub.f32 %v1435, %v1436
        %v1438 = vand.u32 %v1437, 4294901760
        %1439 = vmatpush2.msra.mxu0 %v1438
        %1440 = vmatprep.subr.mxu0 0.0
        %v1441 = vand.u32 %v1175, 4294901760
        %v1442 = vsub.f32 %v1175, %v1441
        %v1443 = vand.u32 %v1442, 4294901760
        %v1444 = vsub.f32 %v1442, %v1443
        %v1445 = vand.u32 %v1444, 4294901760
        %1446 = vmatpush2.msra.mxu0 %v1445
        %1447 = vmatprep.subr.mxu0 0.0
        %v1448 = vand.u32 %v1174, 4294901760
        %v1449 = vsub.f32 %v1174, %v1448
        %v1450 = vand.u32 %v1449, 4294901760
        %v1451 = vsub.f32 %v1449, %v1450
        %v1452 = vand.u32 %v1451, 4294901760
        %1453 = vmatpush2.msra.mxu0 %v1452
        %1454 = vmatprep.subr.mxu0 0.0
        %v1455 = vand.u32 %v1173, 4294901760
        %v1456 = vsub.f32 %v1173, %v1455
        %v1457 = vand.u32 %v1456, 4294901760
        %v1458 = vsub.f32 %v1456, %v1457
        %v1459 = vand.u32 %v1458, 4294901760
        %1460 = vmatpush2.msra.mxu0 %v1459
        %1461 = vmatprep.subr.mxu0 0.0
        %v1462 = vand.u32 %v1172, 4294901760
        %v1463 = vsub.f32 %v1172, %v1462
        %v1464 = vand.u32 %v1463, 4294901760
        %v1465 = vsub.f32 %v1463, %v1464
        %v1466 = vand.u32 %v1465, 4294901760
        %1467 = vmatpush2.msra.mxu0 %v1466
        %1468 = vmatprep.subr.mxu0 0.0
        %v1469 = vand.u32 %v1171, 4294901760
        %v1470 = vsub.f32 %v1171, %v1469
        %v1471 = vand.u32 %v1470, 4294901760
        %v1472 = vsub.f32 %v1470, %v1471
        %v1473 = vand.u32 %v1472, 4294901760
        %1474 = vmatpush2.msra.mxu0 %v1473
        %1475 = vmatprep.subr.mxu0 0.0
        %v1476 = vand.u32 %v1170, 4294901760
        %v1477 = vsub.f32 %v1170, %v1476
        %v1478 = vand.u32 %v1477, 4294901760
        %v1479 = vsub.f32 %v1477, %v1478
        %v1480 = vand.u32 %v1479, 4294901760
        %1481 = vmatpush2.msra.mxu0 %v1480
        %1482 = vmatprep.subr.mxu0 0.0
        %v1483 = vand.u32 %v1169, 4294901760
        %v1484 = vsub.f32 %v1169, %v1483
        %v1485 = vand.u32 %v1484, 4294901760
        %v1486 = vsub.f32 %v1484, %v1485
        %v1487 = vand.u32 %v1486, 4294901760
        %1488 = vmatpush2.msra.mxu0 %v1487
        %1489 = vmatprep.subr.mxu0 0.0
        %v1490 = vand.u32 %v1168, 4294901760
        %v1491 = vsub.f32 %v1168, %v1490
        %v1492 = vand.u32 %v1491, 4294901760
        %v1493 = vsub.f32 %v1491, %v1492
        %v1494 = vand.u32 %v1493, 4294901760
        %1495 = vmatpush2.msra.mxu0 %v1494
        %1496 = vmatprep.subr.mxu0 0.0
        %v1497 = vand.u32 %v1167, 4294901760
        %v1498 = vsub.f32 %v1167, %v1497
        %v1499 = vand.u32 %v1498, 4294901760
        %v1500 = vsub.f32 %v1498, %v1499
        %v1501 = vand.u32 %v1500, 4294901760
        %1502 = vmatpush2.msra.mxu0 %v1501
        %1503 = vmatprep.subr.mxu0 0.0
        %v1504 = vand.u32 %v1166, 4294901760
        %v1505 = vsub.f32 %v1166, %v1504
        %v1506 = vand.u32 %v1505, 4294901760
        %v1507 = vsub.f32 %v1505, %v1506
        %v1508 = vand.u32 %v1507, 4294901760
        %1509 = vmatpush2.msra.mxu0 %v1508
        %1510 = vmatprep.subr.mxu0 0.0
        %v1511 = vand.u32 %v1165, 4294901760
        %v1512 = vsub.f32 %v1165, %v1511
        %v1513 = vand.u32 %v1512, 4294901760
        %v1514 = vsub.f32 %v1512, %v1513
        %v1515 = vand.u32 %v1514, 4294901760
        %1516 = vmatpush2.msra.mxu0 %v1515
        %v1517 = vand.u32 %v284, 4294901760
        %1518 = vmatprep.mubr.f32.mxu0 %v1517
        %v1519 = vand.u32 %v250, 4294901760
        %1520 = vmatmul.mubr.f32.gmra.mxu0 %v1519
        %v1521 = vpop.f32.mrf.mxu0
        %v1522 = vadd.f32 %v1290, %v1521
        %v1523 = vpop.f32.mrf.mxu0
        %1524 = vdwg.mxu0
        %1525 = vmatprep.subr.mxu0 0.0
        %v1526 = vand.u32 %v1164, 4294901760
        %v1527 = vsub.f32 %v1164, %v1526
        %1528 = vmatpush1.msra.mxu0 %v1527
        %1529 = vmatprep.subr.mxu0 0.0
        %v1530 = vand.u32 %v1163, 4294901760
        %v1531 = vsub.f32 %v1163, %v1530
        %1532 = vmatpush1.msra.mxu0 %v1531
        %1533 = vmatprep.subr.mxu0 0.0
        %v1534 = vand.u32 %v1162, 4294901760
        %v1535 = vsub.f32 %v1162, %v1534
        %1536 = vmatpush1.msra.mxu0 %v1535
        %1537 = vmatprep.subr.mxu0 0.0
        %v1538 = vand.u32 %v1161, 4294901760
        %v1539 = vsub.f32 %v1161, %v1538
        %1540 = vmatpush1.msra.mxu0 %v1539
        %1541 = vmatprep.subr.mxu0 0.0
        %v1542 = vand.u32 %v1160, 4294901760
        %v1543 = vsub.f32 %v1160, %v1542
        %1544 = vmatpush1.msra.mxu0 %v1543
        %1545 = vmatprep.subr.mxu0 0.0
        %v1546 = vand.u32 %v1159, 4294901760
        %v1547 = vsub.f32 %v1159, %v1546
        %1548 = vmatpush1.msra.mxu0 %v1547
        %1549 = vmatprep.subr.mxu0 0.0
        %v1550 = vand.u32 %v1158, 4294901760
        %v1551 = vsub.f32 %v1158, %v1550
        %1552 = vmatpush1.msra.mxu0 %v1551
        %1553 = vmatprep.subr.mxu0 0.0
        %v1554 = vand.u32 %v1157, 4294901760
        %v1555 = vsub.f32 %v1157, %v1554
        %1556 = vmatpush1.msra.mxu0 %v1555
        %1557 = vmatprep.subr.mxu0 0.0
        %v1558 = vand.u32 %v1156, 4294901760
        %v1559 = vsub.f32 %v1156, %v1558
        %1560 = vmatpush1.msra.mxu0 %v1559
        %1561 = vmatprep.subr.mxu0 0.0
        %v1562 = vand.u32 %v1155, 4294901760
        %v1563 = vsub.f32 %v1155, %v1562
        %1564 = vmatpush1.msra.mxu0 %v1563
        %1565 = vmatprep.subr.mxu0 0.0
        %v1566 = vand.u32 %v1154, 4294901760
        %v1567 = vsub.f32 %v1154, %v1566
        %1568 = vmatpush1.msra.mxu0 %v1567
        %1569 = vmatprep.subr.mxu0 0.0
        %v1570 = vand.u32 %v1153, 4294901760
        %v1571 = vsub.f32 %v1153, %v1570
        %1572 = vmatpush1.msra.mxu0 %v1571
        %1573 = vmatprep.subr.mxu0 0.0
        %v1574 = vand.u32 %v1152, 4294901760
        %v1575 = vsub.f32 %v1152, %v1574
        %1576 = vmatpush1.msra.mxu0 %v1575
        %1577 = vmatprep.subr.mxu0 0.0
        %v1578 = vand.u32 %v1151, 4294901760
        %v1579 = vsub.f32 %v1151, %v1578
        %1580 = vmatpush1.msra.mxu0 %v1579
        %1581 = vmatprep.subr.mxu0 0.0
        %v1582 = vand.u32 %v1150, 4294901760
        %v1583 = vsub.f32 %v1150, %v1582
        %1584 = vmatpush1.msra.mxu0 %v1583
        %1585 = vmatprep.subr.mxu0 0.0
        %v1586 = vand.u32 %v1149, 4294901760
        %v1587 = vsub.f32 %v1149, %v1586
        %1588 = vmatpush1.msra.mxu0 %v1587
        %1589 = vmatprep.subr.mxu0 0.0
        %v1590 = vand.u32 %v1180, 4294901760
        %v1591 = vsub.f32 %v1180, %v1590
        %1592 = vmatpush2.msra.mxu0 %v1591
        %1593 = vmatprep.subr.mxu0 0.0
        %v1594 = vand.u32 %v1179, 4294901760
        %v1595 = vsub.f32 %v1179, %v1594
        %1596 = vmatpush2.msra.mxu0 %v1595
        %1597 = vmatprep.subr.mxu0 0.0
        %v1598 = vand.u32 %v1178, 4294901760
        %v1599 = vsub.f32 %v1178, %v1598
        %1600 = vmatpush2.msra.mxu0 %v1599
        %1601 = vmatprep.subr.mxu0 0.0
        %v1602 = vand.u32 %v1177, 4294901760
        %v1603 = vsub.f32 %v1177, %v1602
        %1604 = vmatpush2.msra.mxu0 %v1603
        %1605 = vmatprep.subr.mxu0 0.0
        %v1606 = vand.u32 %v1176, 4294901760
        %v1607 = vsub.f32 %v1176, %v1606
        %1608 = vmatpush2.msra.mxu0 %v1607
        %1609 = vmatprep.subr.mxu0 0.0
        %v1610 = vand.u32 %v1175, 4294901760
        %v1611 = vsub.f32 %v1175, %v1610
        %1612 = vmatpush2.msra.mxu0 %v1611
        %1613 = vmatprep.subr.mxu0 0.0
        %v1614 = vand.u32 %v1174, 4294901760
        %v1615 = vsub.f32 %v1174, %v1614
        %1616 = vmatpush2.msra.mxu0 %v1615
        %1617 = vmatprep.subr.mxu0 0.0
        %v1618 = vand.u32 %v1173, 4294901760
        %v1619 = vsub.f32 %v1173, %v1618
        %1620 = vmatpush2.msra.mxu0 %v1619
        %1621 = vmatprep.subr.mxu0 0.0
        %v1622 = vand.u32 %v1172, 4294901760
        %v1623 = vsub.f32 %v1172, %v1622
        %1624 = vmatpush2.msra.mxu0 %v1623
        %1625 = vmatprep.subr.mxu0 0.0
        %v1626 = vand.u32 %v1171, 4294901760
        %v1627 = vsub.f32 %v1171, %v1626
        %1628 = vmatpush2.msra.mxu0 %v1627
        %1629 = vmatprep.subr.mxu0 0.0
        %v1630 = vand.u32 %v1170, 4294901760
        %v1631 = vsub.f32 %v1170, %v1630
        %1632 = vmatpush2.msra.mxu0 %v1631
        %1633 = vmatprep.subr.mxu0 0.0
        %v1634 = vand.u32 %v1169, 4294901760
        %v1635 = vsub.f32 %v1169, %v1634
        %1636 = vmatpush2.msra.mxu0 %v1635
        %1637 = vmatprep.subr.mxu0 0.0
        %v1638 = vand.u32 %v1168, 4294901760
        %v1639 = vsub.f32 %v1168, %v1638
        %1640 = vmatpush2.msra.mxu0 %v1639
        %1641 = vmatprep.subr.mxu0 0.0
        %v1642 = vand.u32 %v1167, 4294901760
        %v1643 = vsub.f32 %v1167, %v1642
        %1644 = vmatpush2.msra.mxu0 %v1643
        %1645 = vmatprep.subr.mxu0 0.0
        %v1646 = vand.u32 %v1166, 4294901760
        %v1647 = vsub.f32 %v1166, %v1646
        %1648 = vmatpush2.msra.mxu0 %v1647
        %1649 = vmatprep.subr.mxu0 0.0
        %v1650 = vand.u32 %v1165, 4294901760
        %v1651 = vsub.f32 %v1165, %v1650
        %1652 = vmatpush2.msra.mxu0 %v1651
        %v1653 = vand.u32 %v284, 4294901760
        %v1654 = vsub.f32 %v284, %v1653
        %1655 = vmatprep.mubr.f32.mxu0 %v1654
        %v1656 = vand.u32 %v250, 4294901760
        %v1657 = vsub.f32 %v250, %v1656
        %1658 = vmatmul.mubr.f32.gmra.mxu0 %v1657
        %v1659 = vpop.f32.mrf.mxu0
        %v1660 = vadd.f32 %v1522, %v1659
        %v1661 = vpop.f32.mrf.mxu0
        %1662 = vdwg.mxu0
        %1663 = vmatprep.subr.mxu0 0.0
        %v1664 = vand.u32 %v1164, 4294901760
        %1665 = vmatpush1.msra.mxu0 %v1664
        %1666 = vmatprep.subr.mxu0 0.0
        %v1667 = vand.u32 %v1163, 4294901760
        %1668 = vmatpush1.msra.mxu0 %v1667
        %1669 = vmatprep.subr.mxu0 0.0
        %v1670 = vand.u32 %v1162, 4294901760
        %1671 = vmatpush1.msra.mxu0 %v1670
        %1672 = vmatprep.subr.mxu0 0.0
        %v1673 = vand.u32 %v1161, 4294901760
        %1674 = vmatpush1.msra.mxu0 %v1673
        %1675 = vmatprep.subr.mxu0 0.0
        %v1676 = vand.u32 %v1160, 4294901760
        %1677 = vmatpush1.msra.mxu0 %v1676
        %1678 = vmatprep.subr.mxu0 0.0
        %v1679 = vand.u32 %v1159, 4294901760
        %1680 = vmatpush1.msra.mxu0 %v1679
        %1681 = vmatprep.subr.mxu0 0.0
        %v1682 = vand.u32 %v1158, 4294901760
        %1683 = vmatpush1.msra.mxu0 %v1682
        %1684 = vmatprep.subr.mxu0 0.0
        %v1685 = vand.u32 %v1157, 4294901760
        %1686 = vmatpush1.msra.mxu0 %v1685
        %1687 = vmatprep.subr.mxu0 0.0
        %v1688 = vand.u32 %v1156, 4294901760
        %1689 = vmatpush1.msra.mxu0 %v1688
        %1690 = vmatprep.subr.mxu0 0.0
        %v1691 = vand.u32 %v1155, 4294901760
        %1692 = vmatpush1.msra.mxu0 %v1691
        %1693 = vmatprep.subr.mxu0 0.0
        %v1694 = vand.u32 %v1154, 4294901760
        %1695 = vmatpush1.msra.mxu0 %v1694
        %1696 = vmatprep.subr.mxu0 0.0
        %v1697 = vand.u32 %v1153, 4294901760
        %1698 = vmatpush1.msra.mxu0 %v1697
        %1699 = vmatprep.subr.mxu0 0.0
        %v1700 = vand.u32 %v1152, 4294901760
        %1701 = vmatpush1.msra.mxu0 %v1700
        %1702 = vmatprep.subr.mxu0 0.0
        %v1703 = vand.u32 %v1151, 4294901760
        %1704 = vmatpush1.msra.mxu0 %v1703
        %1705 = vmatprep.subr.mxu0 0.0
        %v1706 = vand.u32 %v1150, 4294901760
        %1707 = vmatpush1.msra.mxu0 %v1706
        %1708 = vmatprep.subr.mxu0 0.0
        %v1709 = vand.u32 %v1149, 4294901760
        %1710 = vmatpush1.msra.mxu0 %v1709
        %1711 = vmatprep.subr.mxu0 0.0
        %v1712 = vand.u32 %v1180, 4294901760
        %1713 = vmatpush2.msra.mxu0 %v1712
        %1714 = vmatprep.subr.mxu0 0.0
        %v1715 = vand.u32 %v1179, 4294901760
        %1716 = vmatpush2.msra.mxu0 %v1715
        %1717 = vmatprep.subr.mxu0 0.0
        %v1718 = vand.u32 %v1178, 4294901760
        %1719 = vmatpush2.msra.mxu0 %v1718
        %1720 = vmatprep.subr.mxu0 0.0
        %v1721 = vand.u32 %v1177, 4294901760
        %1722 = vmatpush2.msra.mxu0 %v1721
        %1723 = vmatprep.subr.mxu0 0.0
        %v1724 = vand.u32 %v1176, 4294901760
        %1725 = vmatpush2.msra.mxu0 %v1724
        %1726 = vmatprep.subr.mxu0 0.0
        %v1727 = vand.u32 %v1175, 4294901760
        %1728 = vmatpush2.msra.mxu0 %v1727
        %1729 = vmatprep.subr.mxu0 0.0
        %v1730 = vand.u32 %v1174, 4294901760
        %1731 = vmatpush2.msra.mxu0 %v1730
        %1732 = vmatprep.subr.mxu0 0.0
        %v1733 = vand.u32 %v1173, 4294901760
        %1734 = vmatpush2.msra.mxu0 %v1733
        %1735 = vmatprep.subr.mxu0 0.0
        %v1736 = vand.u32 %v1172, 4294901760
        %1737 = vmatpush2.msra.mxu0 %v1736
        %1738 = vmatprep.subr.mxu0 0.0
        %v1739 = vand.u32 %v1171, 4294901760
        %1740 = vmatpush2.msra.mxu0 %v1739
        %1741 = vmatprep.subr.mxu0 0.0
        %v1742 = vand.u32 %v1170, 4294901760
        %1743 = vmatpush2.msra.mxu0 %v1742
        %1744 = vmatprep.subr.mxu0 0.0
        %v1745 = vand.u32 %v1169, 4294901760
        %1746 = vmatpush2.msra.mxu0 %v1745
        %1747 = vmatprep.subr.mxu0 0.0
        %v1748 = vand.u32 %v1168, 4294901760
        %1749 = vmatpush2.msra.mxu0 %v1748
        %1750 = vmatprep.subr.mxu0 0.0
        %v1751 = vand.u32 %v1167, 4294901760
        %1752 = vmatpush2.msra.mxu0 %v1751
        %1753 = vmatprep.subr.mxu0 0.0
        %v1754 = vand.u32 %v1166, 4294901760
        %1755 = vmatpush2.msra.mxu0 %v1754
        %1756 = vmatprep.subr.mxu0 0.0
        %v1757 = vand.u32 %v1165, 4294901760
        %1758 = vmatpush2.msra.mxu0 %v1757
        %v1759 = vand.u32 %v284, 4294901760
        %v1760 = vsub.f32 %v284, %v1759
        %v1761 = vand.u32 %v1760, 4294901760
        %1762 = vmatprep.mubr.f32.mxu0 %v1761
        %v1763 = vand.u32 %v250, 4294901760
        %v1764 = vsub.f32 %v250, %v1763
        %v1765 = vand.u32 %v1764, 4294901760
        %1766 = vmatmul.mubr.f32.gmra.mxu0 %v1765
        %v1767 = vpop.f32.mrf.mxu0
        %v1768 = vadd.f32 %v1660, %v1767
        %v1769 = vpop.f32.mrf.mxu0
        %1770 = vdwg.mxu0
        %1771 = vmatprep.subr.mxu0 0.0
        %v1772 = vand.u32 %v1164, 4294901760
        %v1773 = vsub.f32 %v1164, %v1772
        %v1774 = vand.u32 %v1773, 4294901760
        %1775 = vmatpush1.msra.mxu0 %v1774
        %1776 = vmatprep.subr.mxu0 0.0
        %v1777 = vand.u32 %v1163, 4294901760
        %v1778 = vsub.f32 %v1163, %v1777
        %v1779 = vand.u32 %v1778, 4294901760
        %1780 = vmatpush1.msra.mxu0 %v1779
        %1781 = vmatprep.subr.mxu0 0.0
        %v1782 = vand.u32 %v1162, 4294901760
        %v1783 = vsub.f32 %v1162, %v1782
        %v1784 = vand.u32 %v1783, 4294901760
        %1785 = vmatpush1.msra.mxu0 %v1784
        %1786 = vmatprep.subr.mxu0 0.0
        %v1787 = vand.u32 %v1161, 4294901760
        %v1788 = vsub.f32 %v1161, %v1787
        %v1789 = vand.u32 %v1788, 4294901760
        %1790 = vmatpush1.msra.mxu0 %v1789
        %1791 = vmatprep.subr.mxu0 0.0
        %v1792 = vand.u32 %v1160, 4294901760
        %v1793 = vsub.f32 %v1160, %v1792
        %v1794 = vand.u32 %v1793, 4294901760
        %1795 = vmatpush1.msra.mxu0 %v1794
        %1796 = vmatprep.subr.mxu0 0.0
        %v1797 = vand.u32 %v1159, 4294901760
        %v1798 = vsub.f32 %v1159, %v1797
        %v1799 = vand.u32 %v1798, 4294901760
        %1800 = vmatpush1.msra.mxu0 %v1799
        %1801 = vmatprep.subr.mxu0 0.0
        %v1802 = vand.u32 %v1158, 4294901760
        %v1803 = vsub.f32 %v1158, %v1802
        %v1804 = vand.u32 %v1803, 4294901760
        %1805 = vmatpush1.msra.mxu0 %v1804
        %1806 = vmatprep.subr.mxu0 0.0
        %v1807 = vand.u32 %v1157, 4294901760
        %v1808 = vsub.f32 %v1157, %v1807
        %v1809 = vand.u32 %v1808, 4294901760
        %1810 = vmatpush1.msra.mxu0 %v1809
        %1811 = vmatprep.subr.mxu0 0.0
        %v1812 = vand.u32 %v1156, 4294901760
        %v1813 = vsub.f32 %v1156, %v1812
        %v1814 = vand.u32 %v1813, 4294901760
        %1815 = vmatpush1.msra.mxu0 %v1814
        %1816 = vmatprep.subr.mxu0 0.0
        %v1817 = vand.u32 %v1155, 4294901760
        %v1818 = vsub.f32 %v1155, %v1817
        %v1819 = vand.u32 %v1818, 4294901760
        %1820 = vmatpush1.msra.mxu0 %v1819
        %1821 = vmatprep.subr.mxu0 0.0
        %v1822 = vand.u32 %v1154, 4294901760
        %v1823 = vsub.f32 %v1154, %v1822
        %v1824 = vand.u32 %v1823, 4294901760
        %1825 = vmatpush1.msra.mxu0 %v1824
        %1826 = vmatprep.subr.mxu0 0.0
        %v1827 = vand.u32 %v1153, 4294901760
        %v1828 = vsub.f32 %v1153, %v1827
        %v1829 = vand.u32 %v1828, 4294901760
        %1830 = vmatpush1.msra.mxu0 %v1829
        %1831 = vmatprep.subr.mxu0 0.0
        %v1832 = vand.u32 %v1152, 4294901760
        %v1833 = vsub.f32 %v1152, %v1832
        %v1834 = vand.u32 %v1833, 4294901760
        %1835 = vmatpush1.msra.mxu0 %v1834
        %1836 = vmatprep.subr.mxu0 0.0
        %v1837 = vand.u32 %v1151, 4294901760
        %v1838 = vsub.f32 %v1151, %v1837
        %v1839 = vand.u32 %v1838, 4294901760
        %1840 = vmatpush1.msra.mxu0 %v1839
        %1841 = vmatprep.subr.mxu0 0.0
        %v1842 = vand.u32 %v1150, 4294901760
        %v1843 = vsub.f32 %v1150, %v1842
        %v1844 = vand.u32 %v1843, 4294901760
        %1845 = vmatpush1.msra.mxu0 %v1844
        %1846 = vmatprep.subr.mxu0 0.0
        %v1847 = vand.u32 %v1149, 4294901760
        %v1848 = vsub.f32 %v1149, %v1847
        %v1849 = vand.u32 %v1848, 4294901760
        %1850 = vmatpush1.msra.mxu0 %v1849
        %1851 = vmatprep.subr.mxu0 0.0
        %v1852 = vand.u32 %v1180, 4294901760
        %v1853 = vsub.f32 %v1180, %v1852
        %v1854 = vand.u32 %v1853, 4294901760
        %1855 = vmatpush2.msra.mxu0 %v1854
        %1856 = vmatprep.subr.mxu0 0.0
        %v1857 = vand.u32 %v1179, 4294901760
        %v1858 = vsub.f32 %v1179, %v1857
        %v1859 = vand.u32 %v1858, 4294901760
        %1860 = vmatpush2.msra.mxu0 %v1859
        %1861 = vmatprep.subr.mxu0 0.0
        %v1862 = vand.u32 %v1178, 4294901760
        %v1863 = vsub.f32 %v1178, %v1862
        %v1864 = vand.u32 %v1863, 4294901760
        %1865 = vmatpush2.msra.mxu0 %v1864
        %1866 = vmatprep.subr.mxu0 0.0
        %v1867 = vand.u32 %v1177, 4294901760
        %v1868 = vsub.f32 %v1177, %v1867
        %v1869 = vand.u32 %v1868, 4294901760
        %1870 = vmatpush2.msra.mxu0 %v1869
        %1871 = vmatprep.subr.mxu0 0.0
        %v1872 = vand.u32 %v1176, 4294901760
        %v1873 = vsub.f32 %v1176, %v1872
        %v1874 = vand.u32 %v1873, 4294901760
        %1875 = vmatpush2.msra.mxu0 %v1874
        %1876 = vmatprep.subr.mxu0 0.0
        %v1877 = vand.u32 %v1175, 4294901760
        %v1878 = vsub.f32 %v1175, %v1877
        %v1879 = vand.u32 %v1878, 4294901760
        %1880 = vmatpush2.msra.mxu0 %v1879
        %1881 = vmatprep.subr.mxu0 0.0
        %v1882 = vand.u32 %v1174, 4294901760
        %v1883 = vsub.f32 %v1174, %v1882
        %v1884 = vand.u32 %v1883, 4294901760
        %1885 = vmatpush2.msra.mxu0 %v1884
        %1886 = vmatprep.subr.mxu0 0.0
        %v1887 = vand.u32 %v1173, 4294901760
        %v1888 = vsub.f32 %v1173, %v1887
        %v1889 = vand.u32 %v1888, 4294901760
        %1890 = vmatpush2.msra.mxu0 %v1889
        %1891 = vmatprep.subr.mxu0 0.0
        %v1892 = vand.u32 %v1172, 4294901760
        %v1893 = vsub.f32 %v1172, %v1892
        %v1894 = vand.u32 %v1893, 4294901760
        %1895 = vmatpush2.msra.mxu0 %v1894
        %1896 = vmatprep.subr.mxu0 0.0
        %v1897 = vand.u32 %v1171, 4294901760
        %v1898 = vsub.f32 %v1171, %v1897
        %v1899 = vand.u32 %v1898, 4294901760
        %1900 = vmatpush2.msra.mxu0 %v1899
        %1901 = vmatprep.subr.mxu0 0.0
        %v1902 = vand.u32 %v1170, 4294901760
        %v1903 = vsub.f32 %v1170, %v1902
        %v1904 = vand.u32 %v1903, 4294901760
        %1905 = vmatpush2.msra.mxu0 %v1904
        %1906 = vmatprep.subr.mxu0 0.0
        %v1907 = vand.u32 %v1169, 4294901760
        %v1908 = vsub.f32 %v1169, %v1907
        %v1909 = vand.u32 %v1908, 4294901760
        %1910 = vmatpush2.msra.mxu0 %v1909
        %1911 = vmatprep.subr.mxu0 0.0
        %v1912 = vand.u32 %v1168, 4294901760
        %v1913 = vsub.f32 %v1168, %v1912
        %v1914 = vand.u32 %v1913, 4294901760
        %1915 = vmatpush2.msra.mxu0 %v1914
        %1916 = vmatprep.subr.mxu0 0.0
        %v1917 = vand.u32 %v1167, 4294901760
        %v1918 = vsub.f32 %v1167, %v1917
        %v1919 = vand.u32 %v1918, 4294901760
        %1920 = vmatpush2.msra.mxu0 %v1919
        %1921 = vmatprep.subr.mxu0 0.0
        %v1922 = vand.u32 %v1166, 4294901760
        %v1923 = vsub.f32 %v1166, %v1922
        %v1924 = vand.u32 %v1923, 4294901760
        %1925 = vmatpush2.msra.mxu0 %v1924
        %1926 = vmatprep.subr.mxu0 0.0
        %v1927 = vand.u32 %v1165, 4294901760
        %v1928 = vsub.f32 %v1165, %v1927
        %v1929 = vand.u32 %v1928, 4294901760
        %1930 = vmatpush2.msra.mxu0 %v1929
        %v1931 = vand.u32 %v284, 4294901760
        %1932 = vmatprep.mubr.f32.mxu0 %v1931
        %v1933 = vand.u32 %v250, 4294901760
        %1934 = vmatmul.mubr.f32.gmra.mxu0 %v1933
        %v1935 = vpop.f32.mrf.mxu0
        %v1936 = vadd.f32 %v1768, %v1935
        %v1937 = vpop.f32.mrf.mxu0
        %1938 = vdwg.mxu0
        %1939 = vmatprep.subr.mxu0 0.0
        %v1940 = vand.u32 %v1164, 4294901760
        %1941 = vmatpush1.msra.mxu0 %v1940
        %1942 = vmatprep.subr.mxu0 0.0
        %v1943 = vand.u32 %v1163, 4294901760
        %1944 = vmatpush1.msra.mxu0 %v1943
        %1945 = vmatprep.subr.mxu0 0.0
        %v1946 = vand.u32 %v1162, 4294901760
        %1947 = vmatpush1.msra.mxu0 %v1946
        %1948 = vmatprep.subr.mxu0 0.0
        %v1949 = vand.u32 %v1161, 4294901760
        %1950 = vmatpush1.msra.mxu0 %v1949
        %1951 = vmatprep.subr.mxu0 0.0
        %v1952 = vand.u32 %v1160, 4294901760
        %1953 = vmatpush1.msra.mxu0 %v1952
        %1954 = vmatprep.subr.mxu0 0.0
        %v1955 = vand.u32 %v1159, 4294901760
        %1956 = vmatpush1.msra.mxu0 %v1955
        %1957 = vmatprep.subr.mxu0 0.0
        %v1958 = vand.u32 %v1158, 4294901760
        %1959 = vmatpush1.msra.mxu0 %v1958
        %1960 = vmatprep.subr.mxu0 0.0
        %v1961 = vand.u32 %v1157, 4294901760
        %1962 = vmatpush1.msra.mxu0 %v1961
        %1963 = vmatprep.subr.mxu0 0.0
        %v1964 = vand.u32 %v1156, 4294901760
        %1965 = vmatpush1.msra.mxu0 %v1964
        %1966 = vmatprep.subr.mxu0 0.0
        %v1967 = vand.u32 %v1155, 4294901760
        %1968 = vmatpush1.msra.mxu0 %v1967
        %1969 = vmatprep.subr.mxu0 0.0
        %v1970 = vand.u32 %v1154, 4294901760
        %1971 = vmatpush1.msra.mxu0 %v1970
        %1972 = vmatprep.subr.mxu0 0.0
        %v1973 = vand.u32 %v1153, 4294901760
        %1974 = vmatpush1.msra.mxu0 %v1973
        %1975 = vmatprep.subr.mxu0 0.0
        %v1976 = vand.u32 %v1152, 4294901760
        %1977 = vmatpush1.msra.mxu0 %v1976
        %1978 = vmatprep.subr.mxu0 0.0
        %v1979 = vand.u32 %v1151, 4294901760
        %1980 = vmatpush1.msra.mxu0 %v1979
        %1981 = vmatprep.subr.mxu0 0.0
        %v1982 = vand.u32 %v1150, 4294901760
        %1983 = vmatpush1.msra.mxu0 %v1982
        %1984 = vmatprep.subr.mxu0 0.0
        %v1985 = vand.u32 %v1149, 4294901760
        %1986 = vmatpush1.msra.mxu0 %v1985
        %1987 = vmatprep.subr.mxu0 0.0
        %v1988 = vand.u32 %v1180, 4294901760
        %1989 = vmatpush2.msra.mxu0 %v1988
        %1990 = vmatprep.subr.mxu0 0.0
        %v1991 = vand.u32 %v1179, 4294901760
        %1992 = vmatpush2.msra.mxu0 %v1991
        %1993 = vmatprep.subr.mxu0 0.0
        %v1994 = vand.u32 %v1178, 4294901760
        %1995 = vmatpush2.msra.mxu0 %v1994
        %1996 = vmatprep.subr.mxu0 0.0
        %v1997 = vand.u32 %v1177, 4294901760
        %1998 = vmatpush2.msra.mxu0 %v1997
        %1999 = vmatprep.subr.mxu0 0.0
        %v2000 = vand.u32 %v1176, 4294901760
        %2001 = vmatpush2.msra.mxu0 %v2000
        %2002 = vmatprep.subr.mxu0 0.0
        %v2003 = vand.u32 %v1175, 4294901760
        %2004 = vmatpush2.msra.mxu0 %v2003
        %2005 = vmatprep.subr.mxu0 0.0
        %v2006 = vand.u32 %v1174, 4294901760
        %2007 = vmatpush2.msra.mxu0 %v2006
        %2008 = vmatprep.subr.mxu0 0.0
        %v2009 = vand.u32 %v1173, 4294901760
        %2010 = vmatpush2.msra.mxu0 %v2009
        %2011 = vmatprep.subr.mxu0 0.0
        %v2012 = vand.u32 %v1172, 4294901760
        %2013 = vmatpush2.msra.mxu0 %v2012
        %2014 = vmatprep.subr.mxu0 0.0
        %v2015 = vand.u32 %v1171, 4294901760
        %2016 = vmatpush2.msra.mxu0 %v2015
        %2017 = vmatprep.subr.mxu0 0.0
        %v2018 = vand.u32 %v1170, 4294901760
        %2019 = vmatpush2.msra.mxu0 %v2018
        %2020 = vmatprep.subr.mxu0 0.0
        %v2021 = vand.u32 %v1169, 4294901760
        %2022 = vmatpush2.msra.mxu0 %v2021
        %2023 = vmatprep.subr.mxu0 0.0
        %v2024 = vand.u32 %v1168, 4294901760
        %2025 = vmatpush2.msra.mxu0 %v2024
        %2026 = vmatprep.subr.mxu0 0.0
        %v2027 = vand.u32 %v1167, 4294901760
        %2028 = vmatpush2.msra.mxu0 %v2027
        %2029 = vmatprep.subr.mxu0 0.0
        %v2030 = vand.u32 %v1166, 4294901760
        %2031 = vmatpush2.msra.mxu0 %v2030
        %2032 = vmatprep.subr.mxu0 0.0
        %v2033 = vand.u32 %v1165, 4294901760
        %2034 = vmatpush2.msra.mxu0 %v2033
        %v2035 = vand.u32 %v284, 4294901760
        %2036 = vmatprep.mubr.f32.mxu0 %v2035
        %v2037 = vand.u32 %v250, 4294901760
        %2038 = vmatmul.mubr.f32.gmra.mxu0 %v2037
        %v2039 = vpop.f32.mrf.mxu0
        %v2040 = vadd.f32 %v1936, %v2039
        %v2041 = vpop.f32.mrf.mxu0
        %2042 = vdwg.mxu0
        %v2043 = vmax.f32 %v1145, %v2040
        %s2044 = scalar_lea.vmem %s1, 512
        %v2045 = vld [vmem:[%s2044] sm:$0xff]
        %v2046 = vld [vmem:[%s2044 + $0x8] sm:$0xff]
        %v2047 = vld [vmem:[%s2044 + $0x10] sm:$0xff]
        %v2048 = vld [vmem:[%s2044 + $0x18] sm:$0xff]
        %v2049 = vld [vmem:[%s2044 + $0x20] sm:$0xff]
        %v2050 = vld [vmem:[%s2044 + $0x28] sm:$0xff]
        %v2051 = vld [vmem:[%s2044 + $0x30] sm:$0xff]
        %v2052 = vld [vmem:[%s2044 + $0x38] sm:$0xff]
        %v2053 = vld [vmem:[%s2044 + $0x40] sm:$0xff]
        %v2054 = vld [vmem:[%s2044 + $0x48] sm:$0xff]
        %v2055 = vld [vmem:[%s2044 + $0x50] sm:$0xff]
        %v2056 = vld [vmem:[%s2044 + $0x58] sm:$0xff]
        %v2057 = vld [vmem:[%s2044 + $0x60] sm:$0xff]
        %v2058 = vld [vmem:[%s2044 + $0x68] sm:$0xff]
        %v2059 = vld [vmem:[%s2044 + $0x70] sm:$0xff]
        %v2060 = vld [vmem:[%s2044 + $0x78] sm:$0xff]
        %v2061 = vld [vmem:[%s2044 + $0x80] sm:$0xff]
        %v2062 = vld [vmem:[%s2044 + $0x88] sm:$0xff]
        %v2063 = vld [vmem:[%s2044 + $0x90] sm:$0xff]
        %v2064 = vld [vmem:[%s2044 + $0x98] sm:$0xff]
        %v2065 = vld [vmem:[%s2044 + $0xa0] sm:$0xff]
        %v2066 = vld [vmem:[%s2044 + $0xa8] sm:$0xff]
        %v2067 = vld [vmem:[%s2044 + $0xb0] sm:$0xff]
        %v2068 = vld [vmem:[%s2044 + $0xb8] sm:$0xff]
        %v2069 = vld [vmem:[%s2044 + $0xc0] sm:$0xff]
        %v2070 = vld [vmem:[%s2044 + $0xc8] sm:$0xff]
        %v2071 = vld [vmem:[%s2044 + $0xd0] sm:$0xff]
        %v2072 = vld [vmem:[%s2044 + $0xd8] sm:$0xff]
        %v2073 = vld [vmem:[%s2044 + $0xe0] sm:$0xff]
        %v2074 = vld [vmem:[%s2044 + $0xe8] sm:$0xff]
        %v2075 = vld [vmem:[%s2044 + $0xf0] sm:$0xff]
        %v2076 = vld [vmem:[%s2044 + $0xf8] sm:$0xff]
        %2077 = vmatprep.subr.mxu0 0.0
        %v2078 = vand.u32 %v2060, 4294901760
        %2079 = vmatpush1.msra.mxu0 %v2078
        %2080 = vmatprep.subr.mxu0 0.0
        %v2081 = vand.u32 %v2059, 4294901760
        %2082 = vmatpush1.msra.mxu0 %v2081
        %2083 = vmatprep.subr.mxu0 0.0
        %v2084 = vand.u32 %v2058, 4294901760
        %2085 = vmatpush1.msra.mxu0 %v2084
        %2086 = vmatprep.subr.mxu0 0.0
        %v2087 = vand.u32 %v2057, 4294901760
        %2088 = vmatpush1.msra.mxu0 %v2087
        %2089 = vmatprep.subr.mxu0 0.0
        %v2090 = vand.u32 %v2056, 4294901760
        %2091 = vmatpush1.msra.mxu0 %v2090
        %2092 = vmatprep.subr.mxu0 0.0
        %v2093 = vand.u32 %v2055, 4294901760
        %2094 = vmatpush1.msra.mxu0 %v2093
        %2095 = vmatprep.subr.mxu0 0.0
        %v2096 = vand.u32 %v2054, 4294901760
        %2097 = vmatpush1.msra.mxu0 %v2096
        %2098 = vmatprep.subr.mxu0 0.0
        %v2099 = vand.u32 %v2053, 4294901760
        %2100 = vmatpush1.msra.mxu0 %v2099
        %2101 = vmatprep.subr.mxu0 0.0
        %v2102 = vand.u32 %v2052, 4294901760
        %2103 = vmatpush1.msra.mxu0 %v2102
        %2104 = vmatprep.subr.mxu0 0.0
        %v2105 = vand.u32 %v2051, 4294901760
        %2106 = vmatpush1.msra.mxu0 %v2105
        %2107 = vmatprep.subr.mxu0 0.0
        %v2108 = vand.u32 %v2050, 4294901760
        %2109 = vmatpush1.msra.mxu0 %v2108
        %2110 = vmatprep.subr.mxu0 0.0
        %v2111 = vand.u32 %v2049, 4294901760
        %2112 = vmatpush1.msra.mxu0 %v2111
        %2113 = vmatprep.subr.mxu0 0.0
        %v2114 = vand.u32 %v2048, 4294901760
        %2115 = vmatpush1.msra.mxu0 %v2114
        %2116 = vmatprep.subr.mxu0 0.0
        %v2117 = vand.u32 %v2047, 4294901760
        %2118 = vmatpush1.msra.mxu0 %v2117
        %2119 = vmatprep.subr.mxu0 0.0
        %v2120 = vand.u32 %v2046, 4294901760
        %2121 = vmatpush1.msra.mxu0 %v2120
        %2122 = vmatprep.subr.mxu0 0.0
        %v2123 = vand.u32 %v2045, 4294901760
        %2124 = vmatpush1.msra.mxu0 %v2123
        %2125 = vmatprep.subr.mxu0 0.0
        %v2126 = vand.u32 %v2076, 4294901760
        %2127 = vmatpush2.msra.mxu0 %v2126
        %2128 = vmatprep.subr.mxu0 0.0
        %v2129 = vand.u32 %v2075, 4294901760
        %2130 = vmatpush2.msra.mxu0 %v2129
        %2131 = vmatprep.subr.mxu0 0.0
        %v2132 = vand.u32 %v2074, 4294901760
        %2133 = vmatpush2.msra.mxu0 %v2132
        %2134 = vmatprep.subr.mxu0 0.0
        %v2135 = vand.u32 %v2073, 4294901760
        %2136 = vmatpush2.msra.mxu0 %v2135
        %2137 = vmatprep.subr.mxu0 0.0
        %v2138 = vand.u32 %v2072, 4294901760
        %2139 = vmatpush2.msra.mxu0 %v2138
        %2140 = vmatprep.subr.mxu0 0.0
        %v2141 = vand.u32 %v2071, 4294901760
        %2142 = vmatpush2.msra.mxu0 %v2141
        %2143 = vmatprep.subr.mxu0 0.0
        %v2144 = vand.u32 %v2070, 4294901760
        %2145 = vmatpush2.msra.mxu0 %v2144
        %2146 = vmatprep.subr.mxu0 0.0
        %v2147 = vand.u32 %v2069, 4294901760
        %2148 = vmatpush2.msra.mxu0 %v2147
        %2149 = vmatprep.subr.mxu0 0.0
        %v2150 = vand.u32 %v2068, 4294901760
        %2151 = vmatpush2.msra.mxu0 %v2150
        %2152 = vmatprep.subr.mxu0 0.0
        %v2153 = vand.u32 %v2067, 4294901760
        %2154 = vmatpush2.msra.mxu0 %v2153
        %2155 = vmatprep.subr.mxu0 0.0
        %v2156 = vand.u32 %v2066, 4294901760
        %2157 = vmatpush2.msra.mxu0 %v2156
        %2158 = vmatprep.subr.mxu0 0.0
        %v2159 = vand.u32 %v2065, 4294901760
        %2160 = vmatpush2.msra.mxu0 %v2159
        %2161 = vmatprep.subr.mxu0 0.0
        %v2162 = vand.u32 %v2064, 4294901760
        %2163 = vmatpush2.msra.mxu0 %v2162
        %2164 = vmatprep.subr.mxu0 0.0
        %v2165 = vand.u32 %v2063, 4294901760
        %2166 = vmatpush2.msra.mxu0 %v2165
        %2167 = vmatprep.subr.mxu0 0.0
        %v2168 = vand.u32 %v2062, 4294901760
        %2169 = vmatpush2.msra.mxu0 %v2168
        %2170 = vmatprep.subr.mxu0 0.0
        %v2171 = vand.u32 %v2061, 4294901760
        %2172 = vmatpush2.msra.mxu0 %v2171
        %v2173 = vand.u32 %v284, 4294901760
        %v2174 = vsub.f32 %v284, %v2173
        %v2175 = vand.u32 %v2174, 4294901760
        %v2176 = vsub.f32 %v2174, %v2175
        %v2177 = vand.u32 %v2176, 4294901760
        %2178 = vmatprep.mubr.f32.mxu0 %v2177
        %v2179 = vand.u32 %v250, 4294901760
        %v2180 = vsub.f32 %v250, %v2179
        %v2181 = vand.u32 %v2180, 4294901760
        %v2182 = vsub.f32 %v2180, %v2181
        %v2183 = vand.u32 %v2182, 4294901760
        %2184 = vmatmul.mubr.f32.gmra.mxu0 %v2183
        %v2185 = vpop.f32.mrf.mxu0
        %v2186 = vadd.f32 0.0, %v2185
        %v2187 = vpop.f32.mrf.mxu0
        %2188 = vdwg.mxu0
        %2189 = vmatprep.subr.mxu0 0.0
        %v2190 = vand.u32 %v2060, 4294901760
        %v2191 = vsub.f32 %v2060, %v2190
        %v2192 = vand.u32 %v2191, 4294901760
        %v2193 = vsub.f32 %v2191, %v2192
        %v2194 = vand.u32 %v2193, 4294901760
        %2195 = vmatpush1.msra.mxu0 %v2194
        %2196 = vmatprep.subr.mxu0 0.0
        %v2197 = vand.u32 %v2059, 4294901760
        %v2198 = vsub.f32 %v2059, %v2197
        %v2199 = vand.u32 %v2198, 4294901760
        %v2200 = vsub.f32 %v2198, %v2199
        %v2201 = vand.u32 %v2200, 4294901760
        %2202 = vmatpush1.msra.mxu0 %v2201
        %2203 = vmatprep.subr.mxu0 0.0
        %v2204 = vand.u32 %v2058, 4294901760
        %v2205 = vsub.f32 %v2058, %v2204
        %v2206 = vand.u32 %v2205, 4294901760
        %v2207 = vsub.f32 %v2205, %v2206
        %v2208 = vand.u32 %v2207, 4294901760
        %2209 = vmatpush1.msra.mxu0 %v2208
        %2210 = vmatprep.subr.mxu0 0.0
        %v2211 = vand.u32 %v2057, 4294901760
        %v2212 = vsub.f32 %v2057, %v2211
        %v2213 = vand.u32 %v2212, 4294901760
        %v2214 = vsub.f32 %v2212, %v2213
        %v2215 = vand.u32 %v2214, 4294901760
        %2216 = vmatpush1.msra.mxu0 %v2215
        %2217 = vmatprep.subr.mxu0 0.0
        %v2218 = vand.u32 %v2056, 4294901760
        %v2219 = vsub.f32 %v2056, %v2218
        %v2220 = vand.u32 %v2219, 4294901760
        %v2221 = vsub.f32 %v2219, %v2220
        %v2222 = vand.u32 %v2221, 4294901760
        %2223 = vmatpush1.msra.mxu0 %v2222
        %2224 = vmatprep.subr.mxu0 0.0
        %v2225 = vand.u32 %v2055, 4294901760
        %v2226 = vsub.f32 %v2055, %v2225
        %v2227 = vand.u32 %v2226, 4294901760
        %v2228 = vsub.f32 %v2226, %v2227
        %v2229 = vand.u32 %v2228, 4294901760
        %2230 = vmatpush1.msra.mxu0 %v2229
        %2231 = vmatprep.subr.mxu0 0.0
        %v2232 = vand.u32 %v2054, 4294901760
        %v2233 = vsub.f32 %v2054, %v2232
        %v2234 = vand.u32 %v2233, 4294901760
        %v2235 = vsub.f32 %v2233, %v2234
        %v2236 = vand.u32 %v2235, 4294901760
        %2237 = vmatpush1.msra.mxu0 %v2236
        %2238 = vmatprep.subr.mxu0 0.0
        %v2239 = vand.u32 %v2053, 4294901760
        %v2240 = vsub.f32 %v2053, %v2239
        %v2241 = vand.u32 %v2240, 4294901760
        %v2242 = vsub.f32 %v2240, %v2241
        %v2243 = vand.u32 %v2242, 4294901760
        %2244 = vmatpush1.msra.mxu0 %v2243
        %2245 = vmatprep.subr.mxu0 0.0
        %v2246 = vand.u32 %v2052, 4294901760
        %v2247 = vsub.f32 %v2052, %v2246
        %v2248 = vand.u32 %v2247, 4294901760
        %v2249 = vsub.f32 %v2247, %v2248
        %v2250 = vand.u32 %v2249, 4294901760
        %2251 = vmatpush1.msra.mxu0 %v2250
        %2252 = vmatprep.subr.mxu0 0.0
        %v2253 = vand.u32 %v2051, 4294901760
        %v2254 = vsub.f32 %v2051, %v2253
        %v2255 = vand.u32 %v2254, 4294901760
        %v2256 = vsub.f32 %v2254, %v2255
        %v2257 = vand.u32 %v2256, 4294901760
        %2258 = vmatpush1.msra.mxu0 %v2257
        %2259 = vmatprep.subr.mxu0 0.0
        %v2260 = vand.u32 %v2050, 4294901760
        %v2261 = vsub.f32 %v2050, %v2260
        %v2262 = vand.u32 %v2261, 4294901760
        %v2263 = vsub.f32 %v2261, %v2262
        %v2264 = vand.u32 %v2263, 4294901760
        %2265 = vmatpush1.msra.mxu0 %v2264
        %2266 = vmatprep.subr.mxu0 0.0
        %v2267 = vand.u32 %v2049, 4294901760
        %v2268 = vsub.f32 %v2049, %v2267
        %v2269 = vand.u32 %v2268, 4294901760
        %v2270 = vsub.f32 %v2268, %v2269
        %v2271 = vand.u32 %v2270, 4294901760
        %2272 = vmatpush1.msra.mxu0 %v2271
        %2273 = vmatprep.subr.mxu0 0.0
        %v2274 = vand.u32 %v2048, 4294901760
        %v2275 = vsub.f32 %v2048, %v2274
        %v2276 = vand.u32 %v2275, 4294901760
        %v2277 = vsub.f32 %v2275, %v2276
        %v2278 = vand.u32 %v2277, 4294901760
        %2279 = vmatpush1.msra.mxu0 %v2278
        %2280 = vmatprep.subr.mxu0 0.0
        %v2281 = vand.u32 %v2047, 4294901760
        %v2282 = vsub.f32 %v2047, %v2281
        %v2283 = vand.u32 %v2282, 4294901760
        %v2284 = vsub.f32 %v2282, %v2283
        %v2285 = vand.u32 %v2284, 4294901760
        %2286 = vmatpush1.msra.mxu0 %v2285
        %2287 = vmatprep.subr.mxu0 0.0
        %v2288 = vand.u32 %v2046, 4294901760
        %v2289 = vsub.f32 %v2046, %v2288
        %v2290 = vand.u32 %v2289, 4294901760
        %v2291 = vsub.f32 %v2289, %v2290
        %v2292 = vand.u32 %v2291, 4294901760
        %2293 = vmatpush1.msra.mxu0 %v2292
        %2294 = vmatprep.subr.mxu0 0.0
        %v2295 = vand.u32 %v2045, 4294901760
        %v2296 = vsub.f32 %v2045, %v2295
        %v2297 = vand.u32 %v2296, 4294901760
        %v2298 = vsub.f32 %v2296, %v2297
        %v2299 = vand.u32 %v2298, 4294901760
        %2300 = vmatpush1.msra.mxu0 %v2299
        %2301 = vmatprep.subr.mxu0 0.0
        %v2302 = vand.u32 %v2076, 4294901760
        %v2303 = vsub.f32 %v2076, %v2302
        %v2304 = vand.u32 %v2303, 4294901760
        %v2305 = vsub.f32 %v2303, %v2304
        %v2306 = vand.u32 %v2305, 4294901760
        %2307 = vmatpush2.msra.mxu0 %v2306
        %2308 = vmatprep.subr.mxu0 0.0
        %v2309 = vand.u32 %v2075, 4294901760
        %v2310 = vsub.f32 %v2075, %v2309
        %v2311 = vand.u32 %v2310, 4294901760
        %v2312 = vsub.f32 %v2310, %v2311
        %v2313 = vand.u32 %v2312, 4294901760
        %2314 = vmatpush2.msra.mxu0 %v2313
        %2315 = vmatprep.subr.mxu0 0.0
        %v2316 = vand.u32 %v2074, 4294901760
        %v2317 = vsub.f32 %v2074, %v2316
        %v2318 = vand.u32 %v2317, 4294901760
        %v2319 = vsub.f32 %v2317, %v2318
        %v2320 = vand.u32 %v2319, 4294901760
        %2321 = vmatpush2.msra.mxu0 %v2320
        %2322 = vmatprep.subr.mxu0 0.0
        %v2323 = vand.u32 %v2073, 4294901760
        %v2324 = vsub.f32 %v2073, %v2323
        %v2325 = vand.u32 %v2324, 4294901760
        %v2326 = vsub.f32 %v2324, %v2325
        %v2327 = vand.u32 %v2326, 4294901760
        %2328 = vmatpush2.msra.mxu0 %v2327
        %2329 = vmatprep.subr.mxu0 0.0
        %v2330 = vand.u32 %v2072, 4294901760
        %v2331 = vsub.f32 %v2072, %v2330
        %v2332 = vand.u32 %v2331, 4294901760
        %v2333 = vsub.f32 %v2331, %v2332
        %v2334 = vand.u32 %v2333, 4294901760
        %2335 = vmatpush2.msra.mxu0 %v2334
        %2336 = vmatprep.subr.mxu0 0.0
        %v2337 = vand.u32 %v2071, 4294901760
        %v2338 = vsub.f32 %v2071, %v2337
        %v2339 = vand.u32 %v2338, 4294901760
        %v2340 = vsub.f32 %v2338, %v2339
        %v2341 = vand.u32 %v2340, 4294901760
        %2342 = vmatpush2.msra.mxu0 %v2341
        %2343 = vmatprep.subr.mxu0 0.0
        %v2344 = vand.u32 %v2070, 4294901760
        %v2345 = vsub.f32 %v2070, %v2344
        %v2346 = vand.u32 %v2345, 4294901760
        %v2347 = vsub.f32 %v2345, %v2346
        %v2348 = vand.u32 %v2347, 4294901760
        %2349 = vmatpush2.msra.mxu0 %v2348
        %2350 = vmatprep.subr.mxu0 0.0
        %v2351 = vand.u32 %v2069, 4294901760
        %v2352 = vsub.f32 %v2069, %v2351
        %v2353 = vand.u32 %v2352, 4294901760
        %v2354 = vsub.f32 %v2352, %v2353
        %v2355 = vand.u32 %v2354, 4294901760
        %2356 = vmatpush2.msra.mxu0 %v2355
        %2357 = vmatprep.subr.mxu0 0.0
        %v2358 = vand.u32 %v2068, 4294901760
        %v2359 = vsub.f32 %v2068, %v2358
        %v2360 = vand.u32 %v2359, 4294901760
        %v2361 = vsub.f32 %v2359, %v2360
        %v2362 = vand.u32 %v2361, 4294901760
        %2363 = vmatpush2.msra.mxu0 %v2362
        %2364 = vmatprep.subr.mxu0 0.0
        %v2365 = vand.u32 %v2067, 4294901760
        %v2366 = vsub.f32 %v2067, %v2365
        %v2367 = vand.u32 %v2366, 4294901760
        %v2368 = vsub.f32 %v2366, %v2367
        %v2369 = vand.u32 %v2368, 4294901760
        %2370 = vmatpush2.msra.mxu0 %v2369
        %2371 = vmatprep.subr.mxu0 0.0
        %v2372 = vand.u32 %v2066, 4294901760
        %v2373 = vsub.f32 %v2066, %v2372
        %v2374 = vand.u32 %v2373, 4294901760
        %v2375 = vsub.f32 %v2373, %v2374
        %v2376 = vand.u32 %v2375, 4294901760
        %2377 = vmatpush2.msra.mxu0 %v2376
        %2378 = vmatprep.subr.mxu0 0.0
        %v2379 = vand.u32 %v2065, 4294901760
        %v2380 = vsub.f32 %v2065, %v2379
        %v2381 = vand.u32 %v2380, 4294901760
        %v2382 = vsub.f32 %v2380, %v2381
        %v2383 = vand.u32 %v2382, 4294901760
        %2384 = vmatpush2.msra.mxu0 %v2383
        %2385 = vmatprep.subr.mxu0 0.0
        %v2386 = vand.u32 %v2064, 4294901760
        %v2387 = vsub.f32 %v2064, %v2386
        %v2388 = vand.u32 %v2387, 4294901760
        %v2389 = vsub.f32 %v2387, %v2388
        %v2390 = vand.u32 %v2389, 4294901760
        %2391 = vmatpush2.msra.mxu0 %v2390
        %2392 = vmatprep.subr.mxu0 0.0
        %v2393 = vand.u32 %v2063, 4294901760
        %v2394 = vsub.f32 %v2063, %v2393
        %v2395 = vand.u32 %v2394, 4294901760
        %v2396 = vsub.f32 %v2394, %v2395
        %v2397 = vand.u32 %v2396, 4294901760
        %2398 = vmatpush2.msra.mxu0 %v2397
        %2399 = vmatprep.subr.mxu0 0.0
        %v2400 = vand.u32 %v2062, 4294901760
        %v2401 = vsub.f32 %v2062, %v2400
        %v2402 = vand.u32 %v2401, 4294901760
        %v2403 = vsub.f32 %v2401, %v2402
        %v2404 = vand.u32 %v2403, 4294901760
        %2405 = vmatpush2.msra.mxu0 %v2404
        %2406 = vmatprep.subr.mxu0 0.0
        %v2407 = vand.u32 %v2061, 4294901760
        %v2408 = vsub.f32 %v2061, %v2407
        %v2409 = vand.u32 %v2408, 4294901760
        %v2410 = vsub.f32 %v2408, %v2409
        %v2411 = vand.u32 %v2410, 4294901760
        %2412 = vmatpush2.msra.mxu0 %v2411
        %v2413 = vand.u32 %v284, 4294901760
        %2414 = vmatprep.mubr.f32.mxu0 %v2413
        %v2415 = vand.u32 %v250, 4294901760
        %2416 = vmatmul.mubr.f32.gmra.mxu0 %v2415
        %v2417 = vpop.f32.mrf.mxu0
        %v2418 = vadd.f32 %v2186, %v2417
        %v2419 = vpop.f32.mrf.mxu0
        %2420 = vdwg.mxu0
        %2421 = vmatprep.subr.mxu0 0.0
        %v2422 = vand.u32 %v2060, 4294901760
        %v2423 = vsub.f32 %v2060, %v2422
        %2424 = vmatpush1.msra.mxu0 %v2423
        %2425 = vmatprep.subr.mxu0 0.0
        %v2426 = vand.u32 %v2059, 4294901760
        %v2427 = vsub.f32 %v2059, %v2426
        %2428 = vmatpush1.msra.mxu0 %v2427
        %2429 = vmatprep.subr.mxu0 0.0
        %v2430 = vand.u32 %v2058, 4294901760
        %v2431 = vsub.f32 %v2058, %v2430
        %2432 = vmatpush1.msra.mxu0 %v2431
        %2433 = vmatprep.subr.mxu0 0.0
        %v2434 = vand.u32 %v2057, 4294901760
        %v2435 = vsub.f32 %v2057, %v2434
        %2436 = vmatpush1.msra.mxu0 %v2435
        %2437 = vmatprep.subr.mxu0 0.0
        %v2438 = vand.u32 %v2056, 4294901760
        %v2439 = vsub.f32 %v2056, %v2438
        %2440 = vmatpush1.msra.mxu0 %v2439
        %2441 = vmatprep.subr.mxu0 0.0
        %v2442 = vand.u32 %v2055, 4294901760
        %v2443 = vsub.f32 %v2055, %v2442
        %2444 = vmatpush1.msra.mxu0 %v2443
        %2445 = vmatprep.subr.mxu0 0.0
        %v2446 = vand.u32 %v2054, 4294901760
        %v2447 = vsub.f32 %v2054, %v2446
        %2448 = vmatpush1.msra.mxu0 %v2447
        %2449 = vmatprep.subr.mxu0 0.0
        %v2450 = vand.u32 %v2053, 4294901760
        %v2451 = vsub.f32 %v2053, %v2450
        %2452 = vmatpush1.msra.mxu0 %v2451
        %2453 = vmatprep.subr.mxu0 0.0
        %v2454 = vand.u32 %v2052, 4294901760
        %v2455 = vsub.f32 %v2052, %v2454
        %2456 = vmatpush1.msra.mxu0 %v2455
        %2457 = vmatprep.subr.mxu0 0.0
        %v2458 = vand.u32 %v2051, 4294901760
        %v2459 = vsub.f32 %v2051, %v2458
        %2460 = vmatpush1.msra.mxu0 %v2459
        %2461 = vmatprep.subr.mxu0 0.0
        %v2462 = vand.u32 %v2050, 4294901760
        %v2463 = vsub.f32 %v2050, %v2462
        %2464 = vmatpush1.msra.mxu0 %v2463
        %2465 = vmatprep.subr.mxu0 0.0
        %v2466 = vand.u32 %v2049, 4294901760
        %v2467 = vsub.f32 %v2049, %v2466
        %2468 = vmatpush1.msra.mxu0 %v2467
        %2469 = vmatprep.subr.mxu0 0.0
        %v2470 = vand.u32 %v2048, 4294901760
        %v2471 = vsub.f32 %v2048, %v2470
        %2472 = vmatpush1.msra.mxu0 %v2471
        %2473 = vmatprep.subr.mxu0 0.0
        %v2474 = vand.u32 %v2047, 4294901760
        %v2475 = vsub.f32 %v2047, %v2474
        %2476 = vmatpush1.msra.mxu0 %v2475
        %2477 = vmatprep.subr.mxu0 0.0
        %v2478 = vand.u32 %v2046, 4294901760
        %v2479 = vsub.f32 %v2046, %v2478
        %2480 = vmatpush1.msra.mxu0 %v2479
        %2481 = vmatprep.subr.mxu0 0.0
        %v2482 = vand.u32 %v2045, 4294901760
        %v2483 = vsub.f32 %v2045, %v2482
        %2484 = vmatpush1.msra.mxu0 %v2483
        %2485 = vmatprep.subr.mxu0 0.0
        %v2486 = vand.u32 %v2076, 4294901760
        %v2487 = vsub.f32 %v2076, %v2486
        %2488 = vmatpush2.msra.mxu0 %v2487
        %2489 = vmatprep.subr.mxu0 0.0
        %v2490 = vand.u32 %v2075, 4294901760
        %v2491 = vsub.f32 %v2075, %v2490
        %2492 = vmatpush2.msra.mxu0 %v2491
        %2493 = vmatprep.subr.mxu0 0.0
        %v2494 = vand.u32 %v2074, 4294901760
        %v2495 = vsub.f32 %v2074, %v2494
        %2496 = vmatpush2.msra.mxu0 %v2495
        %2497 = vmatprep.subr.mxu0 0.0
        %v2498 = vand.u32 %v2073, 4294901760
        %v2499 = vsub.f32 %v2073, %v2498
        %2500 = vmatpush2.msra.mxu0 %v2499
        %2501 = vmatprep.subr.mxu0 0.0
        %v2502 = vand.u32 %v2072, 4294901760
        %v2503 = vsub.f32 %v2072, %v2502
        %2504 = vmatpush2.msra.mxu0 %v2503
        %2505 = vmatprep.subr.mxu0 0.0
        %v2506 = vand.u32 %v2071, 4294901760
        %v2507 = vsub.f32 %v2071, %v2506
        %2508 = vmatpush2.msra.mxu0 %v2507
        %2509 = vmatprep.subr.mxu0 0.0
        %v2510 = vand.u32 %v2070, 4294901760
        %v2511 = vsub.f32 %v2070, %v2510
        %2512 = vmatpush2.msra.mxu0 %v2511
        %2513 = vmatprep.subr.mxu0 0.0
        %v2514 = vand.u32 %v2069, 4294901760
        %v2515 = vsub.f32 %v2069, %v2514
        %2516 = vmatpush2.msra.mxu0 %v2515
        %2517 = vmatprep.subr.mxu0 0.0
        %v2518 = vand.u32 %v2068, 4294901760
        %v2519 = vsub.f32 %v2068, %v2518
        %2520 = vmatpush2.msra.mxu0 %v2519
        %2521 = vmatprep.subr.mxu0 0.0
        %v2522 = vand.u32 %v2067, 4294901760
        %v2523 = vsub.f32 %v2067, %v2522
        %2524 = vmatpush2.msra.mxu0 %v2523
        %2525 = vmatprep.subr.mxu0 0.0
        %v2526 = vand.u32 %v2066, 4294901760
        %v2527 = vsub.f32 %v2066, %v2526
        %2528 = vmatpush2.msra.mxu0 %v2527
        %2529 = vmatprep.subr.mxu0 0.0
        %v2530 = vand.u32 %v2065, 4294901760
        %v2531 = vsub.f32 %v2065, %v2530
        %2532 = vmatpush2.msra.mxu0 %v2531
        %2533 = vmatprep.subr.mxu0 0.0
        %v2534 = vand.u32 %v2064, 4294901760
        %v2535 = vsub.f32 %v2064, %v2534
        %2536 = vmatpush2.msra.mxu0 %v2535
        %2537 = vmatprep.subr.mxu0 0.0
        %v2538 = vand.u32 %v2063, 4294901760
        %v2539 = vsub.f32 %v2063, %v2538
        %2540 = vmatpush2.msra.mxu0 %v2539
        %2541 = vmatprep.subr.mxu0 0.0
        %v2542 = vand.u32 %v2062, 4294901760
        %v2543 = vsub.f32 %v2062, %v2542
        %2544 = vmatpush2.msra.mxu0 %v2543
        %2545 = vmatprep.subr.mxu0 0.0
        %v2546 = vand.u32 %v2061, 4294901760
        %v2547 = vsub.f32 %v2061, %v2546
        %2548 = vmatpush2.msra.mxu0 %v2547
        %v2549 = vand.u32 %v284, 4294901760
        %v2550 = vsub.f32 %v284, %v2549
        %2551 = vmatprep.mubr.f32.mxu0 %v2550
        %v2552 = vand.u32 %v250, 4294901760
        %v2553 = vsub.f32 %v250, %v2552
        %2554 = vmatmul.mubr.f32.gmra.mxu0 %v2553
        %v2555 = vpop.f32.mrf.mxu0
        %v2556 = vadd.f32 %v2418, %v2555
        %v2557 = vpop.f32.mrf.mxu0
        %2558 = vdwg.mxu0
        %2559 = vmatprep.subr.mxu0 0.0
        %v2560 = vand.u32 %v2060, 4294901760
        %2561 = vmatpush1.msra.mxu0 %v2560
        %2562 = vmatprep.subr.mxu0 0.0
        %v2563 = vand.u32 %v2059, 4294901760
        %2564 = vmatpush1.msra.mxu0 %v2563
        %2565 = vmatprep.subr.mxu0 0.0
        %v2566 = vand.u32 %v2058, 4294901760
        %2567 = vmatpush1.msra.mxu0 %v2566
        %2568 = vmatprep.subr.mxu0 0.0
        %v2569 = vand.u32 %v2057, 4294901760
        %2570 = vmatpush1.msra.mxu0 %v2569
        %2571 = vmatprep.subr.mxu0 0.0
        %v2572 = vand.u32 %v2056, 4294901760
        %2573 = vmatpush1.msra.mxu0 %v2572
        %2574 = vmatprep.subr.mxu0 0.0
        %v2575 = vand.u32 %v2055, 4294901760
        %2576 = vmatpush1.msra.mxu0 %v2575
        %2577 = vmatprep.subr.mxu0 0.0
        %v2578 = vand.u32 %v2054, 4294901760
        %2579 = vmatpush1.msra.mxu0 %v2578
        %2580 = vmatprep.subr.mxu0 0.0
        %v2581 = vand.u32 %v2053, 4294901760
        %2582 = vmatpush1.msra.mxu0 %v2581
        %2583 = vmatprep.subr.mxu0 0.0
        %v2584 = vand.u32 %v2052, 4294901760
        %2585 = vmatpush1.msra.mxu0 %v2584
        %2586 = vmatprep.subr.mxu0 0.0
        %v2587 = vand.u32 %v2051, 4294901760
        %2588 = vmatpush1.msra.mxu0 %v2587
        %2589 = vmatprep.subr.mxu0 0.0
        %v2590 = vand.u32 %v2050, 4294901760
        %2591 = vmatpush1.msra.mxu0 %v2590
        %2592 = vmatprep.subr.mxu0 0.0
        %v2593 = vand.u32 %v2049, 4294901760
        %2594 = vmatpush1.msra.mxu0 %v2593
        %2595 = vmatprep.subr.mxu0 0.0
        %v2596 = vand.u32 %v2048, 4294901760
        %2597 = vmatpush1.msra.mxu0 %v2596
        %2598 = vmatprep.subr.mxu0 0.0
        %v2599 = vand.u32 %v2047, 4294901760
        %2600 = vmatpush1.msra.mxu0 %v2599
        %2601 = vmatprep.subr.mxu0 0.0
        %v2602 = vand.u32 %v2046, 4294901760
        %2603 = vmatpush1.msra.mxu0 %v2602
        %2604 = vmatprep.subr.mxu0 0.0
        %v2605 = vand.u32 %v2045, 4294901760
        %2606 = vmatpush1.msra.mxu0 %v2605
        %2607 = vmatprep.subr.mxu0 0.0
        %v2608 = vand.u32 %v2076, 4294901760
        %2609 = vmatpush2.msra.mxu0 %v2608
        %2610 = vmatprep.subr.mxu0 0.0
        %v2611 = vand.u32 %v2075, 4294901760
        %2612 = vmatpush2.msra.mxu0 %v2611
        %2613 = vmatprep.subr.mxu0 0.0
        %v2614 = vand.u32 %v2074, 4294901760
        %2615 = vmatpush2.msra.mxu0 %v2614
        %2616 = vmatprep.subr.mxu0 0.0
        %v2617 = vand.u32 %v2073, 4294901760
        %2618 = vmatpush2.msra.mxu0 %v2617
        %2619 = vmatprep.subr.mxu0 0.0
        %v2620 = vand.u32 %v2072, 4294901760
        %2621 = vmatpush2.msra.mxu0 %v2620
        %2622 = vmatprep.subr.mxu0 0.0
        %v2623 = vand.u32 %v2071, 4294901760
        %2624 = vmatpush2.msra.mxu0 %v2623
        %2625 = vmatprep.subr.mxu0 0.0
        %v2626 = vand.u32 %v2070, 4294901760
        %2627 = vmatpush2.msra.mxu0 %v2626
        %2628 = vmatprep.subr.mxu0 0.0
        %v2629 = vand.u32 %v2069, 4294901760
        %2630 = vmatpush2.msra.mxu0 %v2629
        %2631 = vmatprep.subr.mxu0 0.0
        %v2632 = vand.u32 %v2068, 4294901760
        %2633 = vmatpush2.msra.mxu0 %v2632
        %2634 = vmatprep.subr.mxu0 0.0
        %v2635 = vand.u32 %v2067, 4294901760
        %2636 = vmatpush2.msra.mxu0 %v2635
        %2637 = vmatprep.subr.mxu0 0.0
        %v2638 = vand.u32 %v2066, 4294901760
        %2639 = vmatpush2.msra.mxu0 %v2638
        %2640 = vmatprep.subr.mxu0 0.0
        %v2641 = vand.u32 %v2065, 4294901760
        %2642 = vmatpush2.msra.mxu0 %v2641
        %2643 = vmatprep.subr.mxu0 0.0
        %v2644 = vand.u32 %v2064, 4294901760
        %2645 = vmatpush2.msra.mxu0 %v2644
        %2646 = vmatprep.subr.mxu0 0.0
        %v2647 = vand.u32 %v2063, 4294901760
        %2648 = vmatpush2.msra.mxu0 %v2647
        %2649 = vmatprep.subr.mxu0 0.0
        %v2650 = vand.u32 %v2062, 4294901760
        %2651 = vmatpush2.msra.mxu0 %v2650
        %2652 = vmatprep.subr.mxu0 0.0
        %v2653 = vand.u32 %v2061, 4294901760
        %2654 = vmatpush2.msra.mxu0 %v2653
        %v2655 = vand.u32 %v284, 4294901760
        %v2656 = vsub.f32 %v284, %v2655
        %v2657 = vand.u32 %v2656, 4294901760
        %2658 = vmatprep.mubr.f32.mxu0 %v2657
        %v2659 = vand.u32 %v250, 4294901760
        %v2660 = vsub.f32 %v250, %v2659
        %v2661 = vand.u32 %v2660, 4294901760
        %2662 = vmatmul.mubr.f32.gmra.mxu0 %v2661
        %v2663 = vpop.f32.mrf.mxu0
        %v2664 = vadd.f32 %v2556, %v2663
        %v2665 = vpop.f32.mrf.mxu0
        %2666 = vdwg.mxu0
        %2667 = vmatprep.subr.mxu0 0.0
        %v2668 = vand.u32 %v2060, 4294901760
        %v2669 = vsub.f32 %v2060, %v2668
        %v2670 = vand.u32 %v2669, 4294901760
        %2671 = vmatpush1.msra.mxu0 %v2670
        %2672 = vmatprep.subr.mxu0 0.0
        %v2673 = vand.u32 %v2059, 4294901760
        %v2674 = vsub.f32 %v2059, %v2673
        %v2675 = vand.u32 %v2674, 4294901760
        %2676 = vmatpush1.msra.mxu0 %v2675
        %2677 = vmatprep.subr.mxu0 0.0
        %v2678 = vand.u32 %v2058, 4294901760
        %v2679 = vsub.f32 %v2058, %v2678
        %v2680 = vand.u32 %v2679, 4294901760
        %2681 = vmatpush1.msra.mxu0 %v2680
        %2682 = vmatprep.subr.mxu0 0.0
        %v2683 = vand.u32 %v2057, 4294901760
        %v2684 = vsub.f32 %v2057, %v2683
        %v2685 = vand.u32 %v2684, 4294901760
        %2686 = vmatpush1.msra.mxu0 %v2685
        %2687 = vmatprep.subr.mxu0 0.0
        %v2688 = vand.u32 %v2056, 4294901760
        %v2689 = vsub.f32 %v2056, %v2688
        %v2690 = vand.u32 %v2689, 4294901760
        %2691 = vmatpush1.msra.mxu0 %v2690
        %2692 = vmatprep.subr.mxu0 0.0
        %v2693 = vand.u32 %v2055, 4294901760
        %v2694 = vsub.f32 %v2055, %v2693
        %v2695 = vand.u32 %v2694, 4294901760
        %2696 = vmatpush1.msra.mxu0 %v2695
        %2697 = vmatprep.subr.mxu0 0.0
        %v2698 = vand.u32 %v2054, 4294901760
        %v2699 = vsub.f32 %v2054, %v2698
        %v2700 = vand.u32 %v2699, 4294901760
        %2701 = vmatpush1.msra.mxu0 %v2700
        %2702 = vmatprep.subr.mxu0 0.0
        %v2703 = vand.u32 %v2053, 4294901760
        %v2704 = vsub.f32 %v2053, %v2703
        %v2705 = vand.u32 %v2704, 4294901760
        %2706 = vmatpush1.msra.mxu0 %v2705
        %2707 = vmatprep.subr.mxu0 0.0
        %v2708 = vand.u32 %v2052, 4294901760
        %v2709 = vsub.f32 %v2052, %v2708
        %v2710 = vand.u32 %v2709, 4294901760
        %2711 = vmatpush1.msra.mxu0 %v2710
        %2712 = vmatprep.subr.mxu0 0.0
        %v2713 = vand.u32 %v2051, 4294901760
        %v2714 = vsub.f32 %v2051, %v2713
        %v2715 = vand.u32 %v2714, 4294901760
        %2716 = vmatpush1.msra.mxu0 %v2715
        %2717 = vmatprep.subr.mxu0 0.0
        %v2718 = vand.u32 %v2050, 4294901760
        %v2719 = vsub.f32 %v2050, %v2718
        %v2720 = vand.u32 %v2719, 4294901760
        %2721 = vmatpush1.msra.mxu0 %v2720
        %2722 = vmatprep.subr.mxu0 0.0
        %v2723 = vand.u32 %v2049, 4294901760
        %v2724 = vsub.f32 %v2049, %v2723
        %v2725 = vand.u32 %v2724, 4294901760
        %2726 = vmatpush1.msra.mxu0 %v2725
        %2727 = vmatprep.subr.mxu0 0.0
        %v2728 = vand.u32 %v2048, 4294901760
        %v2729 = vsub.f32 %v2048, %v2728
        %v2730 = vand.u32 %v2729, 4294901760
        %2731 = vmatpush1.msra.mxu0 %v2730
        %2732 = vmatprep.subr.mxu0 0.0
        %v2733 = vand.u32 %v2047, 4294901760
        %v2734 = vsub.f32 %v2047, %v2733
        %v2735 = vand.u32 %v2734, 4294901760
        %2736 = vmatpush1.msra.mxu0 %v2735
        %2737 = vmatprep.subr.mxu0 0.0
        %v2738 = vand.u32 %v2046, 4294901760
        %v2739 = vsub.f32 %v2046, %v2738
        %v2740 = vand.u32 %v2739, 4294901760
        %2741 = vmatpush1.msra.mxu0 %v2740
        %2742 = vmatprep.subr.mxu0 0.0
        %v2743 = vand.u32 %v2045, 4294901760
        %v2744 = vsub.f32 %v2045, %v2743
        %v2745 = vand.u32 %v2744, 4294901760
        %2746 = vmatpush1.msra.mxu0 %v2745
        %2747 = vmatprep.subr.mxu0 0.0
        %v2748 = vand.u32 %v2076, 4294901760
        %v2749 = vsub.f32 %v2076, %v2748
        %v2750 = vand.u32 %v2749, 4294901760
        %2751 = vmatpush2.msra.mxu0 %v2750
        %2752 = vmatprep.subr.mxu0 0.0
        %v2753 = vand.u32 %v2075, 4294901760
        %v2754 = vsub.f32 %v2075, %v2753
        %v2755 = vand.u32 %v2754, 4294901760
        %2756 = vmatpush2.msra.mxu0 %v2755
        %2757 = vmatprep.subr.mxu0 0.0
        %v2758 = vand.u32 %v2074, 4294901760
        %v2759 = vsub.f32 %v2074, %v2758
        %v2760 = vand.u32 %v2759, 4294901760
        %2761 = vmatpush2.msra.mxu0 %v2760
        %2762 = vmatprep.subr.mxu0 0.0
        %v2763 = vand.u32 %v2073, 4294901760
        %v2764 = vsub.f32 %v2073, %v2763
        %v2765 = vand.u32 %v2764, 4294901760
        %2766 = vmatpush2.msra.mxu0 %v2765
        %2767 = vmatprep.subr.mxu0 0.0
        %v2768 = vand.u32 %v2072, 4294901760
        %v2769 = vsub.f32 %v2072, %v2768
        %v2770 = vand.u32 %v2769, 4294901760
        %2771 = vmatpush2.msra.mxu0 %v2770
        %2772 = vmatprep.subr.mxu0 0.0
        %v2773 = vand.u32 %v2071, 4294901760
        %v2774 = vsub.f32 %v2071, %v2773
        %v2775 = vand.u32 %v2774, 4294901760
        %2776 = vmatpush2.msra.mxu0 %v2775
        %2777 = vmatprep.subr.mxu0 0.0
        %v2778 = vand.u32 %v2070, 4294901760
        %v2779 = vsub.f32 %v2070, %v2778
        %v2780 = vand.u32 %v2779, 4294901760
        %2781 = vmatpush2.msra.mxu0 %v2780
        %2782 = vmatprep.subr.mxu0 0.0
        %v2783 = vand.u32 %v2069, 4294901760
        %v2784 = vsub.f32 %v2069, %v2783
        %v2785 = vand.u32 %v2784, 4294901760
        %2786 = vmatpush2.msra.mxu0 %v2785
        %2787 = vmatprep.subr.mxu0 0.0
        %v2788 = vand.u32 %v2068, 4294901760
        %v2789 = vsub.f32 %v2068, %v2788
        %v2790 = vand.u32 %v2789, 4294901760
        %2791 = vmatpush2.msra.mxu0 %v2790
        %2792 = vmatprep.subr.mxu0 0.0
        %v2793 = vand.u32 %v2067, 4294901760
        %v2794 = vsub.f32 %v2067, %v2793
        %v2795 = vand.u32 %v2794, 4294901760
        %2796 = vmatpush2.msra.mxu0 %v2795
        %2797 = vmatprep.subr.mxu0 0.0
        %v2798 = vand.u32 %v2066, 4294901760
        %v2799 = vsub.f32 %v2066, %v2798
        %v2800 = vand.u32 %v2799, 4294901760
        %2801 = vmatpush2.msra.mxu0 %v2800
        %2802 = vmatprep.subr.mxu0 0.0
        %v2803 = vand.u32 %v2065, 4294901760
        %v2804 = vsub.f32 %v2065, %v2803
        %v2805 = vand.u32 %v2804, 4294901760
        %2806 = vmatpush2.msra.mxu0 %v2805
        %2807 = vmatprep.subr.mxu0 0.0
        %v2808 = vand.u32 %v2064, 4294901760
        %v2809 = vsub.f32 %v2064, %v2808
        %v2810 = vand.u32 %v2809, 4294901760
        %2811 = vmatpush2.msra.mxu0 %v2810
        %2812 = vmatprep.subr.mxu0 0.0
        %v2813 = vand.u32 %v2063, 4294901760
        %v2814 = vsub.f32 %v2063, %v2813
        %v2815 = vand.u32 %v2814, 4294901760
        %2816 = vmatpush2.msra.mxu0 %v2815
        %2817 = vmatprep.subr.mxu0 0.0
        %v2818 = vand.u32 %v2062, 4294901760
        %v2819 = vsub.f32 %v2062, %v2818
        %v2820 = vand.u32 %v2819, 4294901760
        %2821 = vmatpush2.msra.mxu0 %v2820
        %2822 = vmatprep.subr.mxu0 0.0
        %v2823 = vand.u32 %v2061, 4294901760
        %v2824 = vsub.f32 %v2061, %v2823
        %v2825 = vand.u32 %v2824, 4294901760
        %2826 = vmatpush2.msra.mxu0 %v2825
        %v2827 = vand.u32 %v284, 4294901760
        %2828 = vmatprep.mubr.f32.mxu0 %v2827
        %v2829 = vand.u32 %v250, 4294901760
        %2830 = vmatmul.mubr.f32.gmra.mxu0 %v2829
        %v2831 = vpop.f32.mrf.mxu0
        %v2832 = vadd.f32 %v2664, %v2831
        %v2833 = vpop.f32.mrf.mxu0
        %2834 = vdwg.mxu0
        %2835 = vmatprep.subr.mxu0 0.0
        %v2836 = vand.u32 %v2060, 4294901760
        %2837 = vmatpush1.msra.mxu0 %v2836
        %2838 = vmatprep.subr.mxu0 0.0
        %v2839 = vand.u32 %v2059, 4294901760
        %2840 = vmatpush1.msra.mxu0 %v2839
        %2841 = vmatprep.subr.mxu0 0.0
        %v2842 = vand.u32 %v2058, 4294901760
        %2843 = vmatpush1.msra.mxu0 %v2842
        %2844 = vmatprep.subr.mxu0 0.0
        %v2845 = vand.u32 %v2057, 4294901760
        %2846 = vmatpush1.msra.mxu0 %v2845
        %2847 = vmatprep.subr.mxu0 0.0
        %v2848 = vand.u32 %v2056, 4294901760
        %2849 = vmatpush1.msra.mxu0 %v2848
        %2850 = vmatprep.subr.mxu0 0.0
        %v2851 = vand.u32 %v2055, 4294901760
        %2852 = vmatpush1.msra.mxu0 %v2851
        %2853 = vmatprep.subr.mxu0 0.0
        %v2854 = vand.u32 %v2054, 4294901760
        %2855 = vmatpush1.msra.mxu0 %v2854
        %2856 = vmatprep.subr.mxu0 0.0
        %v2857 = vand.u32 %v2053, 4294901760
        %2858 = vmatpush1.msra.mxu0 %v2857
        %2859 = vmatprep.subr.mxu0 0.0
        %v2860 = vand.u32 %v2052, 4294901760
        %2861 = vmatpush1.msra.mxu0 %v2860
        %2862 = vmatprep.subr.mxu0 0.0
        %v2863 = vand.u32 %v2051, 4294901760
        %2864 = vmatpush1.msra.mxu0 %v2863
        %2865 = vmatprep.subr.mxu0 0.0
        %v2866 = vand.u32 %v2050, 4294901760
        %2867 = vmatpush1.msra.mxu0 %v2866
        %2868 = vmatprep.subr.mxu0 0.0
        %v2869 = vand.u32 %v2049, 4294901760
        %2870 = vmatpush1.msra.mxu0 %v2869
        %2871 = vmatprep.subr.mxu0 0.0
        %v2872 = vand.u32 %v2048, 4294901760
        %2873 = vmatpush1.msra.mxu0 %v2872
        %2874 = vmatprep.subr.mxu0 0.0
        %v2875 = vand.u32 %v2047, 4294901760
        %2876 = vmatpush1.msra.mxu0 %v2875
        %2877 = vmatprep.subr.mxu0 0.0
        %v2878 = vand.u32 %v2046, 4294901760
        %2879 = vmatpush1.msra.mxu0 %v2878
        %2880 = vmatprep.subr.mxu0 0.0
        %v2881 = vand.u32 %v2045, 4294901760
        %2882 = vmatpush1.msra.mxu0 %v2881
        %2883 = vmatprep.subr.mxu0 0.0
        %v2884 = vand.u32 %v2076, 4294901760
        %2885 = vmatpush2.msra.mxu0 %v2884
        %2886 = vmatprep.subr.mxu0 0.0
        %v2887 = vand.u32 %v2075, 4294901760
        %2888 = vmatpush2.msra.mxu0 %v2887
        %2889 = vmatprep.subr.mxu0 0.0
        %v2890 = vand.u32 %v2074, 4294901760
        %2891 = vmatpush2.msra.mxu0 %v2890
        %2892 = vmatprep.subr.mxu0 0.0
        %v2893 = vand.u32 %v2073, 4294901760
        %2894 = vmatpush2.msra.mxu0 %v2893
        %2895 = vmatprep.subr.mxu0 0.0
        %v2896 = vand.u32 %v2072, 4294901760
        %2897 = vmatpush2.msra.mxu0 %v2896
        %2898 = vmatprep.subr.mxu0 0.0
        %v2899 = vand.u32 %v2071, 4294901760
        %2900 = vmatpush2.msra.mxu0 %v2899
        %2901 = vmatprep.subr.mxu0 0.0
        %v2902 = vand.u32 %v2070, 4294901760
        %2903 = vmatpush2.msra.mxu0 %v2902
        %2904 = vmatprep.subr.mxu0 0.0
        %v2905 = vand.u32 %v2069, 4294901760
        %2906 = vmatpush2.msra.mxu0 %v2905
        %2907 = vmatprep.subr.mxu0 0.0
        %v2908 = vand.u32 %v2068, 4294901760
        %2909 = vmatpush2.msra.mxu0 %v2908
        %2910 = vmatprep.subr.mxu0 0.0
        %v2911 = vand.u32 %v2067, 4294901760
        %2912 = vmatpush2.msra.mxu0 %v2911
        %2913 = vmatprep.subr.mxu0 0.0
        %v2914 = vand.u32 %v2066, 4294901760
        %2915 = vmatpush2.msra.mxu0 %v2914
        %2916 = vmatprep.subr.mxu0 0.0
        %v2917 = vand.u32 %v2065, 4294901760
        %2918 = vmatpush2.msra.mxu0 %v2917
        %2919 = vmatprep.subr.mxu0 0.0
        %v2920 = vand.u32 %v2064, 4294901760
        %2921 = vmatpush2.msra.mxu0 %v2920
        %2922 = vmatprep.subr.mxu0 0.0
        %v2923 = vand.u32 %v2063, 4294901760
        %2924 = vmatpush2.msra.mxu0 %v2923
        %2925 = vmatprep.subr.mxu0 0.0
        %v2926 = vand.u32 %v2062, 4294901760
        %2927 = vmatpush2.msra.mxu0 %v2926
        %2928 = vmatprep.subr.mxu0 0.0
        %v2929 = vand.u32 %v2061, 4294901760
        %2930 = vmatpush2.msra.mxu0 %v2929
        %v2931 = vand.u32 %v284, 4294901760
        %2932 = vmatprep.mubr.f32.mxu0 %v2931
        %v2933 = vand.u32 %v250, 4294901760
        %2934 = vmatmul.mubr.f32.gmra.mxu0 %v2933
        %v2935 = vpop.f32.mrf.mxu0
        %v2936 = vadd.f32 %v2832, %v2935
        %v2937 = vpop.f32.mrf.mxu0
        %2938 = vdwg.mxu0
        %v2939 = vmax.f32 %v2043, %v2936
        %s2940 = scalar_lea.vmem %s1, 768
        %v2941 = vld [vmem:[%s2940] sm:$0xff]
        %v2942 = vld [vmem:[%s2940 + $0x8] sm:$0xff]
        %v2943 = vld [vmem:[%s2940 + $0x10] sm:$0xff]
        %v2944 = vld [vmem:[%s2940 + $0x18] sm:$0xff]
        %v2945 = vld [vmem:[%s2940 + $0x20] sm:$0xff]
        %v2946 = vld [vmem:[%s2940 + $0x28] sm:$0xff]
        %v2947 = vld [vmem:[%s2940 + $0x30] sm:$0xff]
        %v2948 = vld [vmem:[%s2940 + $0x38] sm:$0xff]
        %v2949 = vld [vmem:[%s2940 + $0x40] sm:$0xff]
        %v2950 = vld [vmem:[%s2940 + $0x48] sm:$0xff]
        %v2951 = vld [vmem:[%s2940 + $0x50] sm:$0xff]
        %v2952 = vld [vmem:[%s2940 + $0x58] sm:$0xff]
        %v2953 = vld [vmem:[%s2940 + $0x60] sm:$0xff]
        %v2954 = vld [vmem:[%s2940 + $0x68] sm:$0xff]
        %v2955 = vld [vmem:[%s2940 + $0x70] sm:$0xff]
        %v2956 = vld [vmem:[%s2940 + $0x78] sm:$0xff]
        %v2957 = vld [vmem:[%s2940 + $0x80] sm:$0xff]
        %v2958 = vld [vmem:[%s2940 + $0x88] sm:$0xff]
        %v2959 = vld [vmem:[%s2940 + $0x90] sm:$0xff]
        %v2960 = vld [vmem:[%s2940 + $0x98] sm:$0xff]
        %v2961 = vld [vmem:[%s2940 + $0xa0] sm:$0xff]
        %v2962 = vld [vmem:[%s2940 + $0xa8] sm:$0xff]
        %v2963 = vld [vmem:[%s2940 + $0xb0] sm:$0xff]
        %v2964 = vld [vmem:[%s2940 + $0xb8] sm:$0xff]
        %v2965 = vld [vmem:[%s2940 + $0xc0] sm:$0xff]
        %v2966 = vld [vmem:[%s2940 + $0xc8] sm:$0xff]
        %v2967 = vld [vmem:[%s2940 + $0xd0] sm:$0xff]
        %v2968 = vld [vmem:[%s2940 + $0xd8] sm:$0xff]
        %v2969 = vld [vmem:[%s2940 + $0xe0] sm:$0xff]
        %v2970 = vld [vmem:[%s2940 + $0xe8] sm:$0xff]
        %v2971 = vld [vmem:[%s2940 + $0xf0] sm:$0xff]
        %v2972 = vld [vmem:[%s2940 + $0xf8] sm:$0xff]
        %2973 = vmatprep.subr.mxu0 0.0
        %v2974 = vand.u32 %v2956, 4294901760
        %2975 = vmatpush1.msra.mxu0 %v2974
        %2976 = vmatprep.subr.mxu0 0.0
        %v2977 = vand.u32 %v2955, 4294901760
        %2978 = vmatpush1.msra.mxu0 %v2977
        %2979 = vmatprep.subr.mxu0 0.0
        %v2980 = vand.u32 %v2954, 4294901760
        %2981 = vmatpush1.msra.mxu0 %v2980
        %2982 = vmatprep.subr.mxu0 0.0
        %v2983 = vand.u32 %v2953, 4294901760
        %2984 = vmatpush1.msra.mxu0 %v2983
        %2985 = vmatprep.subr.mxu0 0.0
        %v2986 = vand.u32 %v2952, 4294901760
        %2987 = vmatpush1.msra.mxu0 %v2986
        %2988 = vmatprep.subr.mxu0 0.0
        %v2989 = vand.u32 %v2951, 4294901760
        %2990 = vmatpush1.msra.mxu0 %v2989
        %2991 = vmatprep.subr.mxu0 0.0
        %v2992 = vand.u32 %v2950, 4294901760
        %2993 = vmatpush1.msra.mxu0 %v2992
        %2994 = vmatprep.subr.mxu0 0.0
        %v2995 = vand.u32 %v2949, 4294901760
        %2996 = vmatpush1.msra.mxu0 %v2995
        %2997 = vmatprep.subr.mxu0 0.0
        %v2998 = vand.u32 %v2948, 4294901760
        %2999 = vmatpush1.msra.mxu0 %v2998
        %3000 = vmatprep.subr.mxu0 0.0
        %v3001 = vand.u32 %v2947, 4294901760
        %3002 = vmatpush1.msra.mxu0 %v3001
        %3003 = vmatprep.subr.mxu0 0.0
        %v3004 = vand.u32 %v2946, 4294901760
        %3005 = vmatpush1.msra.mxu0 %v3004
        %3006 = vmatprep.subr.mxu0 0.0
        %v3007 = vand.u32 %v2945, 4294901760
        %3008 = vmatpush1.msra.mxu0 %v3007
        %3009 = vmatprep.subr.mxu0 0.0
        %v3010 = vand.u32 %v2944, 4294901760
        %3011 = vmatpush1.msra.mxu0 %v3010
        %3012 = vmatprep.subr.mxu0 0.0
        %v3013 = vand.u32 %v2943, 4294901760
        %3014 = vmatpush1.msra.mxu0 %v3013
        %3015 = vmatprep.subr.mxu0 0.0
        %v3016 = vand.u32 %v2942, 4294901760
        %3017 = vmatpush1.msra.mxu0 %v3016
        %3018 = vmatprep.subr.mxu0 0.0
        %v3019 = vand.u32 %v2941, 4294901760
        %3020 = vmatpush1.msra.mxu0 %v3019
        %3021 = vmatprep.subr.mxu0 0.0
        %v3022 = vand.u32 %v2972, 4294901760
        %3023 = vmatpush2.msra.mxu0 %v3022
        %3024 = vmatprep.subr.mxu0 0.0
        %v3025 = vand.u32 %v2971, 4294901760
        %3026 = vmatpush2.msra.mxu0 %v3025
        %3027 = vmatprep.subr.mxu0 0.0
        %v3028 = vand.u32 %v2970, 4294901760
        %3029 = vmatpush2.msra.mxu0 %v3028
        %3030 = vmatprep.subr.mxu0 0.0
        %v3031 = vand.u32 %v2969, 4294901760
        %3032 = vmatpush2.msra.mxu0 %v3031
        %3033 = vmatprep.subr.mxu0 0.0
        %v3034 = vand.u32 %v2968, 4294901760
        %3035 = vmatpush2.msra.mxu0 %v3034
        %3036 = vmatprep.subr.mxu0 0.0
        %v3037 = vand.u32 %v2967, 4294901760
        %3038 = vmatpush2.msra.mxu0 %v3037
        %3039 = vmatprep.subr.mxu0 0.0
        %v3040 = vand.u32 %v2966, 4294901760
        %3041 = vmatpush2.msra.mxu0 %v3040
        %3042 = vmatprep.subr.mxu0 0.0
        %v3043 = vand.u32 %v2965, 4294901760
        %3044 = vmatpush2.msra.mxu0 %v3043
        %3045 = vmatprep.subr.mxu0 0.0
        %v3046 = vand.u32 %v2964, 4294901760
        %3047 = vmatpush2.msra.mxu0 %v3046
        %3048 = vmatprep.subr.mxu0 0.0
        %v3049 = vand.u32 %v2963, 4294901760
        %3050 = vmatpush2.msra.mxu0 %v3049
        %3051 = vmatprep.subr.mxu0 0.0
        %v3052 = vand.u32 %v2962, 4294901760
        %3053 = vmatpush2.msra.mxu0 %v3052
        %3054 = vmatprep.subr.mxu0 0.0
        %v3055 = vand.u32 %v2961, 4294901760
        %3056 = vmatpush2.msra.mxu0 %v3055
        %3057 = vmatprep.subr.mxu0 0.0
        %v3058 = vand.u32 %v2960, 4294901760
        %3059 = vmatpush2.msra.mxu0 %v3058
        %3060 = vmatprep.subr.mxu0 0.0
        %v3061 = vand.u32 %v2959, 4294901760
        %3062 = vmatpush2.msra.mxu0 %v3061
        %3063 = vmatprep.subr.mxu0 0.0
        %v3064 = vand.u32 %v2958, 4294901760
        %3065 = vmatpush2.msra.mxu0 %v3064
        %3066 = vmatprep.subr.mxu0 0.0
        %v3067 = vand.u32 %v2957, 4294901760
        %3068 = vmatpush2.msra.mxu0 %v3067
        %v3069 = vand.u32 %v284, 4294901760
        %v3070 = vsub.f32 %v284, %v3069
        %v3071 = vand.u32 %v3070, 4294901760
        %v3072 = vsub.f32 %v3070, %v3071
        %v3073 = vand.u32 %v3072, 4294901760
        %3074 = vmatprep.mubr.f32.mxu0 %v3073
        %v3075 = vand.u32 %v250, 4294901760
        %v3076 = vsub.f32 %v250, %v3075
        %v3077 = vand.u32 %v3076, 4294901760
        %v3078 = vsub.f32 %v3076, %v3077
        %v3079 = vand.u32 %v3078, 4294901760
        %3080 = vmatmul.mubr.f32.gmra.mxu0 %v3079
        %v3081 = vpop.f32.mrf.mxu0
        %v3082 = vadd.f32 0.0, %v3081
        %v3083 = vpop.f32.mrf.mxu0
        %3084 = vdwg.mxu0
        %3085 = vmatprep.subr.mxu0 0.0
        %v3086 = vand.u32 %v2956, 4294901760
        %v3087 = vsub.f32 %v2956, %v3086
        %v3088 = vand.u32 %v3087, 4294901760
        %v3089 = vsub.f32 %v3087, %v3088
        %v3090 = vand.u32 %v3089, 4294901760
        %3091 = vmatpush1.msra.mxu0 %v3090
        %3092 = vmatprep.subr.mxu0 0.0
        %v3093 = vand.u32 %v2955, 4294901760
        %v3094 = vsub.f32 %v2955, %v3093
        %v3095 = vand.u32 %v3094, 4294901760
        %v3096 = vsub.f32 %v3094, %v3095
        %v3097 = vand.u32 %v3096, 4294901760
        %3098 = vmatpush1.msra.mxu0 %v3097
        %3099 = vmatprep.subr.mxu0 0.0
        %v3100 = vand.u32 %v2954, 4294901760
        %v3101 = vsub.f32 %v2954, %v3100
        %v3102 = vand.u32 %v3101, 4294901760
        %v3103 = vsub.f32 %v3101, %v3102
        %v3104 = vand.u32 %v3103, 4294901760
        %3105 = vmatpush1.msra.mxu0 %v3104
        %3106 = vmatprep.subr.mxu0 0.0
        %v3107 = vand.u32 %v2953, 4294901760
        %v3108 = vsub.f32 %v2953, %v3107
        %v3109 = vand.u32 %v3108, 4294901760
        %v3110 = vsub.f32 %v3108, %v3109
        %v3111 = vand.u32 %v3110, 4294901760
        %3112 = vmatpush1.msra.mxu0 %v3111
        %3113 = vmatprep.subr.mxu0 0.0
        %v3114 = vand.u32 %v2952, 4294901760
        %v3115 = vsub.f32 %v2952, %v3114
        %v3116 = vand.u32 %v3115, 4294901760
        %v3117 = vsub.f32 %v3115, %v3116
        %v3118 = vand.u32 %v3117, 4294901760
        %3119 = vmatpush1.msra.mxu0 %v3118
        %3120 = vmatprep.subr.mxu0 0.0
        %v3121 = vand.u32 %v2951, 4294901760
        %v3122 = vsub.f32 %v2951, %v3121
        %v3123 = vand.u32 %v3122, 4294901760
        %v3124 = vsub.f32 %v3122, %v3123
        %v3125 = vand.u32 %v3124, 4294901760
        %3126 = vmatpush1.msra.mxu0 %v3125
        %3127 = vmatprep.subr.mxu0 0.0
        %v3128 = vand.u32 %v2950, 4294901760
        %v3129 = vsub.f32 %v2950, %v3128
        %v3130 = vand.u32 %v3129, 4294901760
        %v3131 = vsub.f32 %v3129, %v3130
        %v3132 = vand.u32 %v3131, 4294901760
        %3133 = vmatpush1.msra.mxu0 %v3132
        %3134 = vmatprep.subr.mxu0 0.0
        %v3135 = vand.u32 %v2949, 4294901760
        %v3136 = vsub.f32 %v2949, %v3135
        %v3137 = vand.u32 %v3136, 4294901760
        %v3138 = vsub.f32 %v3136, %v3137
        %v3139 = vand.u32 %v3138, 4294901760
        %3140 = vmatpush1.msra.mxu0 %v3139
        %3141 = vmatprep.subr.mxu0 0.0
        %v3142 = vand.u32 %v2948, 4294901760
        %v3143 = vsub.f32 %v2948, %v3142
        %v3144 = vand.u32 %v3143, 4294901760
        %v3145 = vsub.f32 %v3143, %v3144
        %v3146 = vand.u32 %v3145, 4294901760
        %3147 = vmatpush1.msra.mxu0 %v3146
        %3148 = vmatprep.subr.mxu0 0.0
        %v3149 = vand.u32 %v2947, 4294901760
        %v3150 = vsub.f32 %v2947, %v3149
        %v3151 = vand.u32 %v3150, 4294901760
        %v3152 = vsub.f32 %v3150, %v3151
        %v3153 = vand.u32 %v3152, 4294901760
        %3154 = vmatpush1.msra.mxu0 %v3153
        %3155 = vmatprep.subr.mxu0 0.0
        %v3156 = vand.u32 %v2946, 4294901760
        %v3157 = vsub.f32 %v2946, %v3156
        %v3158 = vand.u32 %v3157, 4294901760
        %v3159 = vsub.f32 %v3157, %v3158
        %v3160 = vand.u32 %v3159, 4294901760
        %3161 = vmatpush1.msra.mxu0 %v3160
        %3162 = vmatprep.subr.mxu0 0.0
        %v3163 = vand.u32 %v2945, 4294901760
        %v3164 = vsub.f32 %v2945, %v3163
        %v3165 = vand.u32 %v3164, 4294901760
        %v3166 = vsub.f32 %v3164, %v3165
        %v3167 = vand.u32 %v3166, 4294901760
        %3168 = vmatpush1.msra.mxu0 %v3167
        %3169 = vmatprep.subr.mxu0 0.0
        %v3170 = vand.u32 %v2944, 4294901760
        %v3171 = vsub.f32 %v2944, %v3170
        %v3172 = vand.u32 %v3171, 4294901760
        %v3173 = vsub.f32 %v3171, %v3172
        %v3174 = vand.u32 %v3173, 4294901760
        %3175 = vmatpush1.msra.mxu0 %v3174
        %3176 = vmatprep.subr.mxu0 0.0
        %v3177 = vand.u32 %v2943, 4294901760
        %v3178 = vsub.f32 %v2943, %v3177
        %v3179 = vand.u32 %v3178, 4294901760
        %v3180 = vsub.f32 %v3178, %v3179
        %v3181 = vand.u32 %v3180, 4294901760
        %3182 = vmatpush1.msra.mxu0 %v3181
        %3183 = vmatprep.subr.mxu0 0.0
        %v3184 = vand.u32 %v2942, 4294901760
        %v3185 = vsub.f32 %v2942, %v3184
        %v3186 = vand.u32 %v3185, 4294901760
        %v3187 = vsub.f32 %v3185, %v3186
        %v3188 = vand.u32 %v3187, 4294901760
        %3189 = vmatpush1.msra.mxu0 %v3188
        %3190 = vmatprep.subr.mxu0 0.0
        %v3191 = vand.u32 %v2941, 4294901760
        %v3192 = vsub.f32 %v2941, %v3191
        %v3193 = vand.u32 %v3192, 4294901760
        %v3194 = vsub.f32 %v3192, %v3193
        %v3195 = vand.u32 %v3194, 4294901760
        %3196 = vmatpush1.msra.mxu0 %v3195
        %3197 = vmatprep.subr.mxu0 0.0
        %v3198 = vand.u32 %v2972, 4294901760
        %v3199 = vsub.f32 %v2972, %v3198
        %v3200 = vand.u32 %v3199, 4294901760
        %v3201 = vsub.f32 %v3199, %v3200
        %v3202 = vand.u32 %v3201, 4294901760
        %3203 = vmatpush2.msra.mxu0 %v3202
        %3204 = vmatprep.subr.mxu0 0.0
        %v3205 = vand.u32 %v2971, 4294901760
        %v3206 = vsub.f32 %v2971, %v3205
        %v3207 = vand.u32 %v3206, 4294901760
        %v3208 = vsub.f32 %v3206, %v3207
        %v3209 = vand.u32 %v3208, 4294901760
        %3210 = vmatpush2.msra.mxu0 %v3209
        %3211 = vmatprep.subr.mxu0 0.0
        %v3212 = vand.u32 %v2970, 4294901760
        %v3213 = vsub.f32 %v2970, %v3212
        %v3214 = vand.u32 %v3213, 4294901760
        %v3215 = vsub.f32 %v3213, %v3214
        %v3216 = vand.u32 %v3215, 4294901760
        %3217 = vmatpush2.msra.mxu0 %v3216
        %3218 = vmatprep.subr.mxu0 0.0
        %v3219 = vand.u32 %v2969, 4294901760
        %v3220 = vsub.f32 %v2969, %v3219
        %v3221 = vand.u32 %v3220, 4294901760
        %v3222 = vsub.f32 %v3220, %v3221
        %v3223 = vand.u32 %v3222, 4294901760
        %3224 = vmatpush2.msra.mxu0 %v3223
        %3225 = vmatprep.subr.mxu0 0.0
        %v3226 = vand.u32 %v2968, 4294901760
        %v3227 = vsub.f32 %v2968, %v3226
        %v3228 = vand.u32 %v3227, 4294901760
        %v3229 = vsub.f32 %v3227, %v3228
        %v3230 = vand.u32 %v3229, 4294901760
        %3231 = vmatpush2.msra.mxu0 %v3230
        %3232 = vmatprep.subr.mxu0 0.0
        %v3233 = vand.u32 %v2967, 4294901760
        %v3234 = vsub.f32 %v2967, %v3233
        %v3235 = vand.u32 %v3234, 4294901760
        %v3236 = vsub.f32 %v3234, %v3235
        %v3237 = vand.u32 %v3236, 4294901760
        %3238 = vmatpush2.msra.mxu0 %v3237
        %3239 = vmatprep.subr.mxu0 0.0
        %v3240 = vand.u32 %v2966, 4294901760
        %v3241 = vsub.f32 %v2966, %v3240
        %v3242 = vand.u32 %v3241, 4294901760
        %v3243 = vsub.f32 %v3241, %v3242
        %v3244 = vand.u32 %v3243, 4294901760
        %3245 = vmatpush2.msra.mxu0 %v3244
        %3246 = vmatprep.subr.mxu0 0.0
        %v3247 = vand.u32 %v2965, 4294901760
        %v3248 = vsub.f32 %v2965, %v3247
        %v3249 = vand.u32 %v3248, 4294901760
        %v3250 = vsub.f32 %v3248, %v3249
        %v3251 = vand.u32 %v3250, 4294901760
        %3252 = vmatpush2.msra.mxu0 %v3251
        %3253 = vmatprep.subr.mxu0 0.0
        %v3254 = vand.u32 %v2964, 4294901760
        %v3255 = vsub.f32 %v2964, %v3254
        %v3256 = vand.u32 %v3255, 4294901760
        %v3257 = vsub.f32 %v3255, %v3256
        %v3258 = vand.u32 %v3257, 4294901760
        %3259 = vmatpush2.msra.mxu0 %v3258
        %3260 = vmatprep.subr.mxu0 0.0
        %v3261 = vand.u32 %v2963, 4294901760
        %v3262 = vsub.f32 %v2963, %v3261
        %v3263 = vand.u32 %v3262, 4294901760
        %v3264 = vsub.f32 %v3262, %v3263
        %v3265 = vand.u32 %v3264, 4294901760
        %3266 = vmatpush2.msra.mxu0 %v3265
        %3267 = vmatprep.subr.mxu0 0.0
        %v3268 = vand.u32 %v2962, 4294901760
        %v3269 = vsub.f32 %v2962, %v3268
        %v3270 = vand.u32 %v3269, 4294901760
        %v3271 = vsub.f32 %v3269, %v3270
        %v3272 = vand.u32 %v3271, 4294901760
        %3273 = vmatpush2.msra.mxu0 %v3272
        %3274 = vmatprep.subr.mxu0 0.0
        %v3275 = vand.u32 %v2961, 4294901760
        %v3276 = vsub.f32 %v2961, %v3275
        %v3277 = vand.u32 %v3276, 4294901760
        %v3278 = vsub.f32 %v3276, %v3277
        %v3279 = vand.u32 %v3278, 4294901760
        %3280 = vmatpush2.msra.mxu0 %v3279
        %3281 = vmatprep.subr.mxu0 0.0
        %v3282 = vand.u32 %v2960, 4294901760
        %v3283 = vsub.f32 %v2960, %v3282
        %v3284 = vand.u32 %v3283, 4294901760
        %v3285 = vsub.f32 %v3283, %v3284
        %v3286 = vand.u32 %v3285, 4294901760
        %3287 = vmatpush2.msra.mxu0 %v3286
        %3288 = vmatprep.subr.mxu0 0.0
        %v3289 = vand.u32 %v2959, 4294901760
        %v3290 = vsub.f32 %v2959, %v3289
        %v3291 = vand.u32 %v3290, 4294901760
        %v3292 = vsub.f32 %v3290, %v3291
        %v3293 = vand.u32 %v3292, 4294901760
        %3294 = vmatpush2.msra.mxu0 %v3293
        %3295 = vmatprep.subr.mxu0 0.0
        %v3296 = vand.u32 %v2958, 4294901760
        %v3297 = vsub.f32 %v2958, %v3296
        %v3298 = vand.u32 %v3297, 4294901760
        %v3299 = vsub.f32 %v3297, %v3298
        %v3300 = vand.u32 %v3299, 4294901760
        %3301 = vmatpush2.msra.mxu0 %v3300
        %3302 = vmatprep.subr.mxu0 0.0
        %v3303 = vand.u32 %v2957, 4294901760
        %v3304 = vsub.f32 %v2957, %v3303
        %v3305 = vand.u32 %v3304, 4294901760
        %v3306 = vsub.f32 %v3304, %v3305
        %v3307 = vand.u32 %v3306, 4294901760
        %3308 = vmatpush2.msra.mxu0 %v3307
        %v3309 = vand.u32 %v284, 4294901760
        %3310 = vmatprep.mubr.f32.mxu0 %v3309
        %v3311 = vand.u32 %v250, 4294901760
        %3312 = vmatmul.mubr.f32.gmra.mxu0 %v3311
        %v3313 = vpop.f32.mrf.mxu0
        %v3314 = vadd.f32 %v3082, %v3313
        %v3315 = vpop.f32.mrf.mxu0
        %3316 = vdwg.mxu0
        %3317 = vmatprep.subr.mxu0 0.0
        %v3318 = vand.u32 %v2956, 4294901760
        %v3319 = vsub.f32 %v2956, %v3318
        %3320 = vmatpush1.msra.mxu0 %v3319
        %3321 = vmatprep.subr.mxu0 0.0
        %v3322 = vand.u32 %v2955, 4294901760
        %v3323 = vsub.f32 %v2955, %v3322
        %3324 = vmatpush1.msra.mxu0 %v3323
        %3325 = vmatprep.subr.mxu0 0.0
        %v3326 = vand.u32 %v2954, 4294901760
        %v3327 = vsub.f32 %v2954, %v3326
        %3328 = vmatpush1.msra.mxu0 %v3327
        %3329 = vmatprep.subr.mxu0 0.0
        %v3330 = vand.u32 %v2953, 4294901760
        %v3331 = vsub.f32 %v2953, %v3330
        %3332 = vmatpush1.msra.mxu0 %v3331
        %3333 = vmatprep.subr.mxu0 0.0
        %v3334 = vand.u32 %v2952, 4294901760
        %v3335 = vsub.f32 %v2952, %v3334
        %3336 = vmatpush1.msra.mxu0 %v3335
        %3337 = vmatprep.subr.mxu0 0.0
        %v3338 = vand.u32 %v2951, 4294901760
        %v3339 = vsub.f32 %v2951, %v3338
        %3340 = vmatpush1.msra.mxu0 %v3339
        %3341 = vmatprep.subr.mxu0 0.0
        %v3342 = vand.u32 %v2950, 4294901760
        %v3343 = vsub.f32 %v2950, %v3342
        %3344 = vmatpush1.msra.mxu0 %v3343
        %3345 = vmatprep.subr.mxu0 0.0
        %v3346 = vand.u32 %v2949, 4294901760
        %v3347 = vsub.f32 %v2949, %v3346
        %3348 = vmatpush1.msra.mxu0 %v3347
        %3349 = vmatprep.subr.mxu0 0.0
        %v3350 = vand.u32 %v2948, 4294901760
        %v3351 = vsub.f32 %v2948, %v3350
        %3352 = vmatpush1.msra.mxu0 %v3351
        %3353 = vmatprep.subr.mxu0 0.0
        %v3354 = vand.u32 %v2947, 4294901760
        %v3355 = vsub.f32 %v2947, %v3354
        %3356 = vmatpush1.msra.mxu0 %v3355
        %3357 = vmatprep.subr.mxu0 0.0
        %v3358 = vand.u32 %v2946, 4294901760
        %v3359 = vsub.f32 %v2946, %v3358
        %3360 = vmatpush1.msra.mxu0 %v3359
        %3361 = vmatprep.subr.mxu0 0.0
        %v3362 = vand.u32 %v2945, 4294901760
        %v3363 = vsub.f32 %v2945, %v3362
        %3364 = vmatpush1.msra.mxu0 %v3363
        %3365 = vmatprep.subr.mxu0 0.0
        %v3366 = vand.u32 %v2944, 4294901760
        %v3367 = vsub.f32 %v2944, %v3366
        %3368 = vmatpush1.msra.mxu0 %v3367
        %3369 = vmatprep.subr.mxu0 0.0
        %v3370 = vand.u32 %v2943, 4294901760
        %v3371 = vsub.f32 %v2943, %v3370
        %3372 = vmatpush1.msra.mxu0 %v3371
        %3373 = vmatprep.subr.mxu0 0.0
        %v3374 = vand.u32 %v2942, 4294901760
        %v3375 = vsub.f32 %v2942, %v3374
        %3376 = vmatpush1.msra.mxu0 %v3375
        %3377 = vmatprep.subr.mxu0 0.0
        %v3378 = vand.u32 %v2941, 4294901760
        %v3379 = vsub.f32 %v2941, %v3378
        %3380 = vmatpush1.msra.mxu0 %v3379
        %3381 = vmatprep.subr.mxu0 0.0
        %v3382 = vand.u32 %v2972, 4294901760
        %v3383 = vsub.f32 %v2972, %v3382
        %3384 = vmatpush2.msra.mxu0 %v3383
        %3385 = vmatprep.subr.mxu0 0.0
        %v3386 = vand.u32 %v2971, 4294901760
        %v3387 = vsub.f32 %v2971, %v3386
        %3388 = vmatpush2.msra.mxu0 %v3387
        %3389 = vmatprep.subr.mxu0 0.0
        %v3390 = vand.u32 %v2970, 4294901760
        %v3391 = vsub.f32 %v2970, %v3390
        %3392 = vmatpush2.msra.mxu0 %v3391
        %3393 = vmatprep.subr.mxu0 0.0
        %v3394 = vand.u32 %v2969, 4294901760
        %v3395 = vsub.f32 %v2969, %v3394
        %3396 = vmatpush2.msra.mxu0 %v3395
        %3397 = vmatprep.subr.mxu0 0.0
        %v3398 = vand.u32 %v2968, 4294901760
        %v3399 = vsub.f32 %v2968, %v3398
        %3400 = vmatpush2.msra.mxu0 %v3399
        %3401 = vmatprep.subr.mxu0 0.0
        %v3402 = vand.u32 %v2967, 4294901760
        %v3403 = vsub.f32 %v2967, %v3402
        %3404 = vmatpush2.msra.mxu0 %v3403
        %3405 = vmatprep.subr.mxu0 0.0
        %v3406 = vand.u32 %v2966, 4294901760
        %v3407 = vsub.f32 %v2966, %v3406
        %3408 = vmatpush2.msra.mxu0 %v3407
        %3409 = vmatprep.subr.mxu0 0.0
        %v3410 = vand.u32 %v2965, 4294901760
        %v3411 = vsub.f32 %v2965, %v3410
        %3412 = vmatpush2.msra.mxu0 %v3411
        %3413 = vmatprep.subr.mxu0 0.0
        %v3414 = vand.u32 %v2964, 4294901760
        %v3415 = vsub.f32 %v2964, %v3414
        %3416 = vmatpush2.msra.mxu0 %v3415
        %3417 = vmatprep.subr.mxu0 0.0
        %v3418 = vand.u32 %v2963, 4294901760
        %v3419 = vsub.f32 %v2963, %v3418
        %3420 = vmatpush2.msra.mxu0 %v3419
        %3421 = vmatprep.subr.mxu0 0.0
        %v3422 = vand.u32 %v2962, 4294901760
        %v3423 = vsub.f32 %v2962, %v3422
        %3424 = vmatpush2.msra.mxu0 %v3423
        %3425 = vmatprep.subr.mxu0 0.0
        %v3426 = vand.u32 %v2961, 4294901760
        %v3427 = vsub.f32 %v2961, %v3426
        %3428 = vmatpush2.msra.mxu0 %v3427
        %3429 = vmatprep.subr.mxu0 0.0
        %v3430 = vand.u32 %v2960, 4294901760
        %v3431 = vsub.f32 %v2960, %v3430
        %3432 = vmatpush2.msra.mxu0 %v3431
        %3433 = vmatprep.subr.mxu0 0.0
        %v3434 = vand.u32 %v2959, 4294901760
        %v3435 = vsub.f32 %v2959, %v3434
        %3436 = vmatpush2.msra.mxu0 %v3435
        %3437 = vmatprep.subr.mxu0 0.0
        %v3438 = vand.u32 %v2958, 4294901760
        %v3439 = vsub.f32 %v2958, %v3438
        %3440 = vmatpush2.msra.mxu0 %v3439
        %3441 = vmatprep.subr.mxu0 0.0
        %v3442 = vand.u32 %v2957, 4294901760
        %v3443 = vsub.f32 %v2957, %v3442
        %3444 = vmatpush2.msra.mxu0 %v3443
        %v3445 = vand.u32 %v284, 4294901760
        %v3446 = vsub.f32 %v284, %v3445
        %3447 = vmatprep.mubr.f32.mxu0 %v3446
        %v3448 = vand.u32 %v250, 4294901760
        %v3449 = vsub.f32 %v250, %v3448
        %3450 = vmatmul.mubr.f32.gmra.mxu0 %v3449
        %v3451 = vpop.f32.mrf.mxu0
        %v3452 = vadd.f32 %v3314, %v3451
        %v3453 = vpop.f32.mrf.mxu0
        %3454 = vdwg.mxu0
        %3455 = vmatprep.subr.mxu0 0.0
        %v3456 = vand.u32 %v2956, 4294901760
        %3457 = vmatpush1.msra.mxu0 %v3456
        %3458 = vmatprep.subr.mxu0 0.0
        %v3459 = vand.u32 %v2955, 4294901760
        %3460 = vmatpush1.msra.mxu0 %v3459
        %3461 = vmatprep.subr.mxu0 0.0
        %v3462 = vand.u32 %v2954, 4294901760
        %3463 = vmatpush1.msra.mxu0 %v3462
        %3464 = vmatprep.subr.mxu0 0.0
        %v3465 = vand.u32 %v2953, 4294901760
        %3466 = vmatpush1.msra.mxu0 %v3465
        %3467 = vmatprep.subr.mxu0 0.0
        %v3468 = vand.u32 %v2952, 4294901760
        %3469 = vmatpush1.msra.mxu0 %v3468
        %3470 = vmatprep.subr.mxu0 0.0
        %v3471 = vand.u32 %v2951, 4294901760
        %3472 = vmatpush1.msra.mxu0 %v3471
        %3473 = vmatprep.subr.mxu0 0.0
        %v3474 = vand.u32 %v2950, 4294901760
        %3475 = vmatpush1.msra.mxu0 %v3474
        %3476 = vmatprep.subr.mxu0 0.0
        %v3477 = vand.u32 %v2949, 4294901760
        %3478 = vmatpush1.msra.mxu0 %v3477
        %3479 = vmatprep.subr.mxu0 0.0
        %v3480 = vand.u32 %v2948, 4294901760
        %3481 = vmatpush1.msra.mxu0 %v3480
        %3482 = vmatprep.subr.mxu0 0.0
        %v3483 = vand.u32 %v2947, 4294901760
        %3484 = vmatpush1.msra.mxu0 %v3483
        %3485 = vmatprep.subr.mxu0 0.0
        %v3486 = vand.u32 %v2946, 4294901760
        %3487 = vmatpush1.msra.mxu0 %v3486
        %3488 = vmatprep.subr.mxu0 0.0
        %v3489 = vand.u32 %v2945, 4294901760
        %3490 = vmatpush1.msra.mxu0 %v3489
        %3491 = vmatprep.subr.mxu0 0.0
        %v3492 = vand.u32 %v2944, 4294901760
        %3493 = vmatpush1.msra.mxu0 %v3492
        %3494 = vmatprep.subr.mxu0 0.0
        %v3495 = vand.u32 %v2943, 4294901760
        %3496 = vmatpush1.msra.mxu0 %v3495
        %3497 = vmatprep.subr.mxu0 0.0
        %v3498 = vand.u32 %v2942, 4294901760
        %3499 = vmatpush1.msra.mxu0 %v3498
        %3500 = vmatprep.subr.mxu0 0.0
        %v3501 = vand.u32 %v2941, 4294901760
        %3502 = vmatpush1.msra.mxu0 %v3501
        %3503 = vmatprep.subr.mxu0 0.0
        %v3504 = vand.u32 %v2972, 4294901760
        %3505 = vmatpush2.msra.mxu0 %v3504
        %3506 = vmatprep.subr.mxu0 0.0
        %v3507 = vand.u32 %v2971, 4294901760
        %3508 = vmatpush2.msra.mxu0 %v3507
        %3509 = vmatprep.subr.mxu0 0.0
        %v3510 = vand.u32 %v2970, 4294901760
        %3511 = vmatpush2.msra.mxu0 %v3510
        %3512 = vmatprep.subr.mxu0 0.0
        %v3513 = vand.u32 %v2969, 4294901760
        %3514 = vmatpush2.msra.mxu0 %v3513
        %3515 = vmatprep.subr.mxu0 0.0
        %v3516 = vand.u32 %v2968, 4294901760
        %3517 = vmatpush2.msra.mxu0 %v3516
        %3518 = vmatprep.subr.mxu0 0.0
        %v3519 = vand.u32 %v2967, 4294901760
        %3520 = vmatpush2.msra.mxu0 %v3519
        %3521 = vmatprep.subr.mxu0 0.0
        %v3522 = vand.u32 %v2966, 4294901760
        %3523 = vmatpush2.msra.mxu0 %v3522
        %3524 = vmatprep.subr.mxu0 0.0
        %v3525 = vand.u32 %v2965, 4294901760
        %3526 = vmatpush2.msra.mxu0 %v3525
        %3527 = vmatprep.subr.mxu0 0.0
        %v3528 = vand.u32 %v2964, 4294901760
        %3529 = vmatpush2.msra.mxu0 %v3528
        %3530 = vmatprep.subr.mxu0 0.0
        %v3531 = vand.u32 %v2963, 4294901760
        %3532 = vmatpush2.msra.mxu0 %v3531
        %3533 = vmatprep.subr.mxu0 0.0
        %v3534 = vand.u32 %v2962, 4294901760
        %3535 = vmatpush2.msra.mxu0 %v3534
        %3536 = vmatprep.subr.mxu0 0.0
        %v3537 = vand.u32 %v2961, 4294901760
        %3538 = vmatpush2.msra.mxu0 %v3537
        %3539 = vmatprep.subr.mxu0 0.0
        %v3540 = vand.u32 %v2960, 4294901760
        %3541 = vmatpush2.msra.mxu0 %v3540
        %3542 = vmatprep.subr.mxu0 0.0
        %v3543 = vand.u32 %v2959, 4294901760
        %3544 = vmatpush2.msra.mxu0 %v3543
        %3545 = vmatprep.subr.mxu0 0.0
        %v3546 = vand.u32 %v2958, 4294901760
        %3547 = vmatpush2.msra.mxu0 %v3546
        %3548 = vmatprep.subr.mxu0 0.0
        %v3549 = vand.u32 %v2957, 4294901760
        %3550 = vmatpush2.msra.mxu0 %v3549
        %v3551 = vand.u32 %v284, 4294901760
        %v3552 = vsub.f32 %v284, %v3551
        %v3553 = vand.u32 %v3552, 4294901760
        %3554 = vmatprep.mubr.f32.mxu0 %v3553
        %v3555 = vand.u32 %v250, 4294901760
        %v3556 = vsub.f32 %v250, %v3555
        %v3557 = vand.u32 %v3556, 4294901760
        %3558 = vmatmul.mubr.f32.gmra.mxu0 %v3557
        %v3559 = vpop.f32.mrf.mxu0
        %v3560 = vadd.f32 %v3452, %v3559
        %v3561 = vpop.f32.mrf.mxu0
        %3562 = vdwg.mxu0
        %3563 = vmatprep.subr.mxu0 0.0
        %v3564 = vand.u32 %v2956, 4294901760
        %v3565 = vsub.f32 %v2956, %v3564
        %v3566 = vand.u32 %v3565, 4294901760
        %3567 = vmatpush1.msra.mxu0 %v3566
        %3568 = vmatprep.subr.mxu0 0.0
        %v3569 = vand.u32 %v2955, 4294901760
        %v3570 = vsub.f32 %v2955, %v3569
        %v3571 = vand.u32 %v3570, 4294901760
        %3572 = vmatpush1.msra.mxu0 %v3571
        %3573 = vmatprep.subr.mxu0 0.0
        %v3574 = vand.u32 %v2954, 4294901760
        %v3575 = vsub.f32 %v2954, %v3574
        %v3576 = vand.u32 %v3575, 4294901760
        %3577 = vmatpush1.msra.mxu0 %v3576
        %3578 = vmatprep.subr.mxu0 0.0
        %v3579 = vand.u32 %v2953, 4294901760
        %v3580 = vsub.f32 %v2953, %v3579
        %v3581 = vand.u32 %v3580, 4294901760
        %3582 = vmatpush1.msra.mxu0 %v3581
        %3583 = vmatprep.subr.mxu0 0.0
        %v3584 = vand.u32 %v2952, 4294901760
        %v3585 = vsub.f32 %v2952, %v3584
        %v3586 = vand.u32 %v3585, 4294901760
        %3587 = vmatpush1.msra.mxu0 %v3586
        %3588 = vmatprep.subr.mxu0 0.0
        %v3589 = vand.u32 %v2951, 4294901760
        %v3590 = vsub.f32 %v2951, %v3589
        %v3591 = vand.u32 %v3590, 4294901760
        %3592 = vmatpush1.msra.mxu0 %v3591
        %3593 = vmatprep.subr.mxu0 0.0
        %v3594 = vand.u32 %v2950, 4294901760
        %v3595 = vsub.f32 %v2950, %v3594
        %v3596 = vand.u32 %v3595, 4294901760
        %3597 = vmatpush1.msra.mxu0 %v3596
        %3598 = vmatprep.subr.mxu0 0.0
        %v3599 = vand.u32 %v2949, 4294901760
        %v3600 = vsub.f32 %v2949, %v3599
        %v3601 = vand.u32 %v3600, 4294901760
        %3602 = vmatpush1.msra.mxu0 %v3601
        %3603 = vmatprep.subr.mxu0 0.0
        %v3604 = vand.u32 %v2948, 4294901760
        %v3605 = vsub.f32 %v2948, %v3604
        %v3606 = vand.u32 %v3605, 4294901760
        %3607 = vmatpush1.msra.mxu0 %v3606
        %3608 = vmatprep.subr.mxu0 0.0
        %v3609 = vand.u32 %v2947, 4294901760
        %v3610 = vsub.f32 %v2947, %v3609
        %v3611 = vand.u32 %v3610, 4294901760
        %3612 = vmatpush1.msra.mxu0 %v3611
        %3613 = vmatprep.subr.mxu0 0.0
        %v3614 = vand.u32 %v2946, 4294901760
        %v3615 = vsub.f32 %v2946, %v3614
        %v3616 = vand.u32 %v3615, 4294901760
        %3617 = vmatpush1.msra.mxu0 %v3616
        %3618 = vmatprep.subr.mxu0 0.0
        %v3619 = vand.u32 %v2945, 4294901760
        %v3620 = vsub.f32 %v2945, %v3619
        %v3621 = vand.u32 %v3620, 4294901760
        %3622 = vmatpush1.msra.mxu0 %v3621
        %3623 = vmatprep.subr.mxu0 0.0
        %v3624 = vand.u32 %v2944, 4294901760
        %v3625 = vsub.f32 %v2944, %v3624
        %v3626 = vand.u32 %v3625, 4294901760
        %3627 = vmatpush1.msra.mxu0 %v3626
        %3628 = vmatprep.subr.mxu0 0.0
        %v3629 = vand.u32 %v2943, 4294901760
        %v3630 = vsub.f32 %v2943, %v3629
        %v3631 = vand.u32 %v3630, 4294901760
        %3632 = vmatpush1.msra.mxu0 %v3631
        %3633 = vmatprep.subr.mxu0 0.0
        %v3634 = vand.u32 %v2942, 4294901760
        %v3635 = vsub.f32 %v2942, %v3634
        %v3636 = vand.u32 %v3635, 4294901760
        %3637 = vmatpush1.msra.mxu0 %v3636
        %3638 = vmatprep.subr.mxu0 0.0
        %v3639 = vand.u32 %v2941, 4294901760
        %v3640 = vsub.f32 %v2941, %v3639
        %v3641 = vand.u32 %v3640, 4294901760
        %3642 = vmatpush1.msra.mxu0 %v3641
        %3643 = vmatprep.subr.mxu0 0.0
        %v3644 = vand.u32 %v2972, 4294901760
        %v3645 = vsub.f32 %v2972, %v3644
        %v3646 = vand.u32 %v3645, 4294901760
        %3647 = vmatpush2.msra.mxu0 %v3646
        %3648 = vmatprep.subr.mxu0 0.0
        %v3649 = vand.u32 %v2971, 4294901760
        %v3650 = vsub.f32 %v2971, %v3649
        %v3651 = vand.u32 %v3650, 4294901760
        %3652 = vmatpush2.msra.mxu0 %v3651
        %3653 = vmatprep.subr.mxu0 0.0
        %v3654 = vand.u32 %v2970, 4294901760
        %v3655 = vsub.f32 %v2970, %v3654
        %v3656 = vand.u32 %v3655, 4294901760
        %3657 = vmatpush2.msra.mxu0 %v3656
        %3658 = vmatprep.subr.mxu0 0.0
        %v3659 = vand.u32 %v2969, 4294901760
        %v3660 = vsub.f32 %v2969, %v3659
        %v3661 = vand.u32 %v3660, 4294901760
        %3662 = vmatpush2.msra.mxu0 %v3661
        %3663 = vmatprep.subr.mxu0 0.0
        %v3664 = vand.u32 %v2968, 4294901760
        %v3665 = vsub.f32 %v2968, %v3664
        %v3666 = vand.u32 %v3665, 4294901760
        %3667 = vmatpush2.msra.mxu0 %v3666
        %3668 = vmatprep.subr.mxu0 0.0
        %v3669 = vand.u32 %v2967, 4294901760
        %v3670 = vsub.f32 %v2967, %v3669
        %v3671 = vand.u32 %v3670, 4294901760
        %3672 = vmatpush2.msra.mxu0 %v3671
        %3673 = vmatprep.subr.mxu0 0.0
        %v3674 = vand.u32 %v2966, 4294901760
        %v3675 = vsub.f32 %v2966, %v3674
        %v3676 = vand.u32 %v3675, 4294901760
        %3677 = vmatpush2.msra.mxu0 %v3676
        %3678 = vmatprep.subr.mxu0 0.0
        %v3679 = vand.u32 %v2965, 4294901760
        %v3680 = vsub.f32 %v2965, %v3679
        %v3681 = vand.u32 %v3680, 4294901760
        %3682 = vmatpush2.msra.mxu0 %v3681
        %3683 = vmatprep.subr.mxu0 0.0
        %v3684 = vand.u32 %v2964, 4294901760
        %v3685 = vsub.f32 %v2964, %v3684
        %v3686 = vand.u32 %v3685, 4294901760
        %3687 = vmatpush2.msra.mxu0 %v3686
        %3688 = vmatprep.subr.mxu0 0.0
        %v3689 = vand.u32 %v2963, 4294901760
        %v3690 = vsub.f32 %v2963, %v3689
        %v3691 = vand.u32 %v3690, 4294901760
        %3692 = vmatpush2.msra.mxu0 %v3691
        %3693 = vmatprep.subr.mxu0 0.0
        %v3694 = vand.u32 %v2962, 4294901760
        %v3695 = vsub.f32 %v2962, %v3694
        %v3696 = vand.u32 %v3695, 4294901760
        %3697 = vmatpush2.msra.mxu0 %v3696
        %3698 = vmatprep.subr.mxu0 0.0
        %v3699 = vand.u32 %v2961, 4294901760
        %v3700 = vsub.f32 %v2961, %v3699
        %v3701 = vand.u32 %v3700, 4294901760
        %3702 = vmatpush2.msra.mxu0 %v3701
        %3703 = vmatprep.subr.mxu0 0.0
        %v3704 = vand.u32 %v2960, 4294901760
        %v3705 = vsub.f32 %v2960, %v3704
        %v3706 = vand.u32 %v3705, 4294901760
        %3707 = vmatpush2.msra.mxu0 %v3706
        %3708 = vmatprep.subr.mxu0 0.0
        %v3709 = vand.u32 %v2959, 4294901760
        %v3710 = vsub.f32 %v2959, %v3709
        %v3711 = vand.u32 %v3710, 4294901760
        %3712 = vmatpush2.msra.mxu0 %v3711
        %3713 = vmatprep.subr.mxu0 0.0
        %v3714 = vand.u32 %v2958, 4294901760
        %v3715 = vsub.f32 %v2958, %v3714
        %v3716 = vand.u32 %v3715, 4294901760
        %3717 = vmatpush2.msra.mxu0 %v3716
        %3718 = vmatprep.subr.mxu0 0.0
        %v3719 = vand.u32 %v2957, 4294901760
        %v3720 = vsub.f32 %v2957, %v3719
        %v3721 = vand.u32 %v3720, 4294901760
        %3722 = vmatpush2.msra.mxu0 %v3721
        %v3723 = vand.u32 %v284, 4294901760
        %3724 = vmatprep.mubr.f32.mxu0 %v3723
        %v3725 = vand.u32 %v250, 4294901760
        %3726 = vmatmul.mubr.f32.gmra.mxu0 %v3725
        %v3727 = vpop.f32.mrf.mxu0
        %v3728 = vadd.f32 %v3560, %v3727
        %v3729 = vpop.f32.mrf.mxu0
        %3730 = vdwg.mxu0
        %3731 = vmatprep.subr.mxu0 0.0
        %v3732 = vand.u32 %v2956, 4294901760
        %3733 = vmatpush1.msra.mxu0 %v3732
        %3734 = vmatprep.subr.mxu0 0.0
        %v3735 = vand.u32 %v2955, 4294901760
        %3736 = vmatpush1.msra.mxu0 %v3735
        %3737 = vmatprep.subr.mxu0 0.0
        %v3738 = vand.u32 %v2954, 4294901760
        %3739 = vmatpush1.msra.mxu0 %v3738
        %3740 = vmatprep.subr.mxu0 0.0
        %v3741 = vand.u32 %v2953, 4294901760
        %3742 = vmatpush1.msra.mxu0 %v3741
        %3743 = vmatprep.subr.mxu0 0.0
        %v3744 = vand.u32 %v2952, 4294901760
        %3745 = vmatpush1.msra.mxu0 %v3744
        %3746 = vmatprep.subr.mxu0 0.0
        %v3747 = vand.u32 %v2951, 4294901760
        %3748 = vmatpush1.msra.mxu0 %v3747
        %3749 = vmatprep.subr.mxu0 0.0
        %v3750 = vand.u32 %v2950, 4294901760
        %3751 = vmatpush1.msra.mxu0 %v3750
        %3752 = vmatprep.subr.mxu0 0.0
        %v3753 = vand.u32 %v2949, 4294901760
        %3754 = vmatpush1.msra.mxu0 %v3753
        %3755 = vmatprep.subr.mxu0 0.0
        %v3756 = vand.u32 %v2948, 4294901760
        %3757 = vmatpush1.msra.mxu0 %v3756
        %3758 = vmatprep.subr.mxu0 0.0
        %v3759 = vand.u32 %v2947, 4294901760
        %3760 = vmatpush1.msra.mxu0 %v3759
        %3761 = vmatprep.subr.mxu0 0.0
        %v3762 = vand.u32 %v2946, 4294901760
        %3763 = vmatpush1.msra.mxu0 %v3762
        %3764 = vmatprep.subr.mxu0 0.0
        %v3765 = vand.u32 %v2945, 4294901760
        %3766 = vmatpush1.msra.mxu0 %v3765
        %3767 = vmatprep.subr.mxu0 0.0
        %v3768 = vand.u32 %v2944, 4294901760
        %3769 = vmatpush1.msra.mxu0 %v3768
        %3770 = vmatprep.subr.mxu0 0.0
        %v3771 = vand.u32 %v2943, 4294901760
        %3772 = vmatpush1.msra.mxu0 %v3771
        %3773 = vmatprep.subr.mxu0 0.0
        %v3774 = vand.u32 %v2942, 4294901760
        %3775 = vmatpush1.msra.mxu0 %v3774
        %3776 = vmatprep.subr.mxu0 0.0
        %v3777 = vand.u32 %v2941, 4294901760
        %3778 = vmatpush1.msra.mxu0 %v3777
        %3779 = vmatprep.subr.mxu0 0.0
        %v3780 = vand.u32 %v2972, 4294901760
        %3781 = vmatpush2.msra.mxu0 %v3780
        %3782 = vmatprep.subr.mxu0 0.0
        %v3783 = vand.u32 %v2971, 4294901760
        %3784 = vmatpush2.msra.mxu0 %v3783
        %3785 = vmatprep.subr.mxu0 0.0
        %v3786 = vand.u32 %v2970, 4294901760
        %3787 = vmatpush2.msra.mxu0 %v3786
        %3788 = vmatprep.subr.mxu0 0.0
        %v3789 = vand.u32 %v2969, 4294901760
        %3790 = vmatpush2.msra.mxu0 %v3789
        %3791 = vmatprep.subr.mxu0 0.0
        %v3792 = vand.u32 %v2968, 4294901760
        %3793 = vmatpush2.msra.mxu0 %v3792
        %3794 = vmatprep.subr.mxu0 0.0
        %v3795 = vand.u32 %v2967, 4294901760
        %3796 = vmatpush2.msra.mxu0 %v3795
        %3797 = vmatprep.subr.mxu0 0.0
        %v3798 = vand.u32 %v2966, 4294901760
        %3799 = vmatpush2.msra.mxu0 %v3798
        %3800 = vmatprep.subr.mxu0 0.0
        %v3801 = vand.u32 %v2965, 4294901760
        %3802 = vmatpush2.msra.mxu0 %v3801
        %3803 = vmatprep.subr.mxu0 0.0
        %v3804 = vand.u32 %v2964, 4294901760
        %3805 = vmatpush2.msra.mxu0 %v3804
        %3806 = vmatprep.subr.mxu0 0.0
        %v3807 = vand.u32 %v2963, 4294901760
        %3808 = vmatpush2.msra.mxu0 %v3807
        %3809 = vmatprep.subr.mxu0 0.0
        %v3810 = vand.u32 %v2962, 4294901760
        %3811 = vmatpush2.msra.mxu0 %v3810
        %3812 = vmatprep.subr.mxu0 0.0
        %v3813 = vand.u32 %v2961, 4294901760
        %3814 = vmatpush2.msra.mxu0 %v3813
        %3815 = vmatprep.subr.mxu0 0.0
        %v3816 = vand.u32 %v2960, 4294901760
        %3817 = vmatpush2.msra.mxu0 %v3816
        %3818 = vmatprep.subr.mxu0 0.0
        %v3819 = vand.u32 %v2959, 4294901760
        %3820 = vmatpush2.msra.mxu0 %v3819
        %3821 = vmatprep.subr.mxu0 0.0
        %v3822 = vand.u32 %v2958, 4294901760
        %3823 = vmatpush2.msra.mxu0 %v3822
        %3824 = vmatprep.subr.mxu0 0.0
        %v3825 = vand.u32 %v2957, 4294901760
        %3826 = vmatpush2.msra.mxu0 %v3825
        %v3827 = vand.u32 %v284, 4294901760
        %3828 = vmatprep.mubr.f32.mxu0 %v3827
        %v3829 = vand.u32 %v250, 4294901760
        %3830 = vmatmul.mubr.f32.gmra.mxu0 %v3829
        %v3831 = vpop.f32.mrf.mxu0
        %v3832 = vadd.f32 %v3728, %v3831
        %v3833 = vpop.f32.mrf.mxu0
        %3834 = vdwg.mxu0
        %v3835 = vmax.f32 %v2939, %v3832
        %v3836 = vld [vmem:[%s2] sm:$0xff]
        %v3837 = vld [vmem:[%s2 + $0x8] sm:$0xff]
        %v3838 = vld [vmem:[%s2 + $0x10] sm:$0xff]
        %v3839 = vld [vmem:[%s2 + $0x18] sm:$0xff]
        %v3840 = vld [vmem:[%s2 + $0x20] sm:$0xff]
        %v3841 = vld [vmem:[%s2 + $0x28] sm:$0xff]
        %v3842 = vld [vmem:[%s2 + $0x30] sm:$0xff]
        %v3843 = vld [vmem:[%s2 + $0x38] sm:$0xff]
        %v3844 = vld [vmem:[%s2 + $0x40] sm:$0xff]
        %v3845 = vld [vmem:[%s2 + $0x48] sm:$0xff]
        %v3846 = vld [vmem:[%s2 + $0x50] sm:$0xff]
        %v3847 = vld [vmem:[%s2 + $0x58] sm:$0xff]
        %v3848 = vld [vmem:[%s2 + $0x60] sm:$0xff]
        %v3849 = vld [vmem:[%s2 + $0x68] sm:$0xff]
        %v3850 = vld [vmem:[%s2 + $0x70] sm:$0xff]
        %v3851 = vld [vmem:[%s2 + $0x78] sm:$0xff]
        %v3852 = vld [vmem:[%s2 + $0x80] sm:$0xff]
        %v3853 = vld [vmem:[%s2 + $0x88] sm:$0xff]
        %v3854 = vld [vmem:[%s2 + $0x90] sm:$0xff]
        %v3855 = vld [vmem:[%s2 + $0x98] sm:$0xff]
        %v3856 = vld [vmem:[%s2 + $0xa0] sm:$0xff]
        %v3857 = vld [vmem:[%s2 + $0xa8] sm:$0xff]
        %v3858 = vld [vmem:[%s2 + $0xb0] sm:$0xff]
        %v3859 = vld [vmem:[%s2 + $0xb8] sm:$0xff]
        %v3860 = vld [vmem:[%s2 + $0xc0] sm:$0xff]
        %v3861 = vld [vmem:[%s2 + $0xc8] sm:$0xff]
        %v3862 = vld [vmem:[%s2 + $0xd0] sm:$0xff]
        %v3863 = vld [vmem:[%s2 + $0xd8] sm:$0xff]
        %v3864 = vld [vmem:[%s2 + $0xe0] sm:$0xff]
        %v3865 = vld [vmem:[%s2 + $0xe8] sm:$0xff]
        %v3866 = vld [vmem:[%s2 + $0xf0] sm:$0xff]
        %v3867 = vld [vmem:[%s2 + $0xf8] sm:$0xff]
        %3868 = vmatprep.subr.mxu0 0.0
        %3869 = vmatpush1.msra.mxu0 %v3851
        %3870 = vmatprep.subr.mxu0 0.0
        %3871 = vmatpush1.msra.mxu0 %v3850
        %3872 = vmatprep.subr.mxu0 0.0
        %3873 = vmatpush1.msra.mxu0 %v3849
        %3874 = vmatprep.subr.mxu0 0.0
        %3875 = vmatpush1.msra.mxu0 %v3848
        %3876 = vmatprep.subr.mxu0 0.0
        %3877 = vmatpush1.msra.mxu0 %v3847
        %3878 = vmatprep.subr.mxu0 0.0
        %3879 = vmatpush1.msra.mxu0 %v3846
        %3880 = vmatprep.subr.mxu0 0.0
        %3881 = vmatpush1.msra.mxu0 %v3845
        %3882 = vmatprep.subr.mxu0 0.0
        %3883 = vmatpush1.msra.mxu0 %v3844
        %3884 = vmatprep.subr.mxu0 0.0
        %3885 = vmatpush1.msra.mxu0 %v3843
        %3886 = vmatprep.subr.mxu0 0.0
        %3887 = vmatpush1.msra.mxu0 %v3842
        %3888 = vmatprep.subr.mxu0 0.0
        %3889 = vmatpush1.msra.mxu0 %v3841
        %3890 = vmatprep.subr.mxu0 0.0
        %3891 = vmatpush1.msra.mxu0 %v3840
        %3892 = vmatprep.subr.mxu0 0.0
        %3893 = vmatpush1.msra.mxu0 %v3839
        %3894 = vmatprep.subr.mxu0 0.0
        %3895 = vmatpush1.msra.mxu0 %v3838
        %3896 = vmatprep.subr.mxu0 0.0
        %3897 = vmatpush1.msra.mxu0 %v3837
        %3898 = vmatprep.subr.mxu0 0.0
        %3899 = vmatpush1.msra.mxu0 %v3836
        %3900 = vmatprep.subr.mxu0 0.0
        %3901 = vmatpush2.msra.mxu0 %v3867
        %3902 = vmatprep.subr.mxu0 0.0
        %3903 = vmatpush2.msra.mxu0 %v3866
        %3904 = vmatprep.subr.mxu0 0.0
        %3905 = vmatpush2.msra.mxu0 %v3865
        %3906 = vmatprep.subr.mxu0 0.0
        %3907 = vmatpush2.msra.mxu0 %v3864
        %3908 = vmatprep.subr.mxu0 0.0
        %3909 = vmatpush2.msra.mxu0 %v3863
        %3910 = vmatprep.subr.mxu0 0.0
        %3911 = vmatpush2.msra.mxu0 %v3862
        %3912 = vmatprep.subr.mxu0 0.0
        %3913 = vmatpush2.msra.mxu0 %v3861
        %3914 = vmatprep.subr.mxu0 0.0
        %3915 = vmatpush2.msra.mxu0 %v3860
        %3916 = vmatprep.subr.mxu0 0.0
        %3917 = vmatpush2.msra.mxu0 %v3859
        %3918 = vmatprep.subr.mxu0 0.0
        %3919 = vmatpush2.msra.mxu0 %v3858
        %3920 = vmatprep.subr.mxu0 0.0
        %3921 = vmatpush2.msra.mxu0 %v3857
        %3922 = vmatprep.subr.mxu0 0.0
        %3923 = vmatpush2.msra.mxu0 %v3856
        %3924 = vmatprep.subr.mxu0 0.0
        %3925 = vmatpush2.msra.mxu0 %v3855
        %3926 = vmatprep.subr.mxu0 0.0
        %3927 = vmatpush2.msra.mxu0 %v3854
        %3928 = vmatprep.subr.mxu0 0.0
        %3929 = vmatpush2.msra.mxu0 %v3853
        %3930 = vmatprep.subr.mxu0 0.0
        %3931 = vmatpush2.msra.mxu0 %v3852
        %3932 = vmatprep.mubr.f32.mxu0 %v284
        %3933 = vmatmul.mubr.f32.gmra.mxu0 %v250
        %v3934 = vpop.f32.mrf.mxu0
        %v3935 = vadd.f32 0.0, %v3934
        %v3936 = vpop.f32.mrf.mxu0
        %3937 = vdwg.mxu0
        %v3938 = vld [vmem:[%s3] sm:$0xf]
        %v3939 = vld [vmem:[%s4] sm:$0xf]
        %vm3940 = vcmask 31744
        %v3942 = vsel %vm3940, %v3939, 0
        %vm3944 = vcmask 1043456
        %v3946 = vsel %vm3944, %v3935, 0
        %3948 = vmatprep.subr.mxu0 0.0
        %3949 = vmatpush1.msra.mxu0 0.0
        %3950 = vmatprep.subr.mxu0 0.0
        %3951 = vmatpush1.msra.mxu0 0.0
        %3952 = vmatprep.subr.mxu0 0.0
        %3953 = vmatpush1.msra.mxu0 0.0
        %3954 = vmatprep.subr.mxu0 0.0
        %3955 = vmatpush1.msra.mxu0 0.0
        %3956 = vmatprep.subr.mxu0 0.0
        %3957 = vmatpush1.msra.mxu0 0.0
        %3958 = vmatprep.subr.mxu0 0.0
        %3959 = vmatpush1.msra.mxu0 0.0
        %3960 = vmatprep.subr.mxu0 0.0
        %3961 = vmatpush1.msra.mxu0 0.0
        %3962 = vmatprep.subr.mxu0 0.0
        %3963 = vmatpush1.msra.mxu0 0.0
        %3964 = vmatprep.subr.mxu0 0.0
        %3965 = vmatpush1.msra.mxu0 0.0
        %3966 = vmatprep.subr.mxu0 0.0
        %3967 = vmatpush1.msra.mxu0 0.0
        %3968 = vmatprep.subr.mxu0 0.0
        %3969 = vmatpush1.msra.mxu0 0.0
        %3970 = vmatprep.subr.mxu0 0.0
        %3971 = vmatpush1.msra.mxu0 0.0
        %3972 = vmatprep.subr.mxu0 0.0
        %3973 = vmatpush1.msra.mxu0 0.0
        %3974 = vmatprep.subr.mxu0 0.0
        %3975 = vmatpush1.msra.mxu0 0.0
        %3976 = vmatprep.subr.mxu0 0.0
        %3977 = vmatpush1.msra.mxu0 0.0
        %3978 = vmatprep.subr.mxu0 0.0
        %3979 = vmatpush1.msra.mxu0 %v3946
        %3980 = vmatprep.subr.mxu0 0.0
        %3981 = vmatpush2.msra.mxu0 0.0
        %3982 = vmatprep.subr.mxu0 0.0
        %3983 = vmatpush2.msra.mxu0 0.0
        %3984 = vmatprep.subr.mxu0 0.0
        %3985 = vmatpush2.msra.mxu0 0.0
        %3986 = vmatprep.subr.mxu0 0.0
        %3987 = vmatpush2.msra.mxu0 0.0
        %3988 = vmatprep.subr.mxu0 0.0
        %3989 = vmatpush2.msra.mxu0 0.0
        %3990 = vmatprep.subr.mxu0 0.0
        %3991 = vmatpush2.msra.mxu0 0.0
        %3992 = vmatprep.subr.mxu0 0.0
        %3993 = vmatpush2.msra.mxu0 0.0
        %3994 = vmatprep.subr.mxu0 0.0
        %3995 = vmatpush2.msra.mxu0 0.0
        %3996 = vmatprep.subr.mxu0 0.0
        %3997 = vmatpush2.msra.mxu0 0.0
        %3998 = vmatprep.subr.mxu0 0.0
        %3999 = vmatpush2.msra.mxu0 0.0
        %4000 = vmatprep.subr.mxu0 0.0
        %4001 = vmatpush2.msra.mxu0 0.0
        %4002 = vmatprep.subr.mxu0 0.0
        %4003 = vmatpush2.msra.mxu0 0.0
        %4004 = vmatprep.subr.mxu0 0.0
        %4005 = vmatpush2.msra.mxu0 0.0
        %4006 = vmatprep.subr.mxu0 0.0
        %4007 = vmatpush2.msra.mxu0 0.0
        %4008 = vmatprep.subr.mxu0 0.0
        %4009 = vmatpush2.msra.mxu0 0.0
        %4010 = vmatprep.subr.mxu0 0.0
        %4011 = vmatpush2.msra.mxu0 0.0
        %4012 = vmatprep.mubr.f32.mxu0 0.0
        %4013 = vmatmul.mubr.f32.gmra.mxu0 %v3942
        %v4014 = vpop.f32.mrf.mxu0
        %v4015 = vadd.f32 0.0, %v4014
        %v4016 = vpop.f32.mrf.mxu0
        %4017 = vdwg.mxu0
        %v4019 = vsel %vm3940, %v3938, 0
        %v4022 = vsel %vm3944, %v3835, 0
        %4024 = vmatprep.subr.mxu0 0.0
        %4025 = vmatpush1.msra.mxu0 0.0
        %4026 = vmatprep.subr.mxu0 0.0
        %4027 = vmatpush1.msra.mxu0 0.0
        %4028 = vmatprep.subr.mxu0 0.0
        %4029 = vmatpush1.msra.mxu0 0.0
        %4030 = vmatprep.subr.mxu0 0.0
        %4031 = vmatpush1.msra.mxu0 0.0
        %4032 = vmatprep.subr.mxu0 0.0
        %4033 = vmatpush1.msra.mxu0 0.0
        %4034 = vmatprep.subr.mxu0 0.0
        %4035 = vmatpush1.msra.mxu0 0.0
        %4036 = vmatprep.subr.mxu0 0.0
        %4037 = vmatpush1.msra.mxu0 0.0
        %4038 = vmatprep.subr.mxu0 0.0
        %4039 = vmatpush1.msra.mxu0 0.0
        %4040 = vmatprep.subr.mxu0 0.0
        %4041 = vmatpush1.msra.mxu0 0.0
        %4042 = vmatprep.subr.mxu0 0.0
        %4043 = vmatpush1.msra.mxu0 0.0
        %4044 = vmatprep.subr.mxu0 0.0
        %4045 = vmatpush1.msra.mxu0 0.0
        %4046 = vmatprep.subr.mxu0 0.0
        %4047 = vmatpush1.msra.mxu0 0.0
        %4048 = vmatprep.subr.mxu0 0.0
        %4049 = vmatpush1.msra.mxu0 0.0
        %4050 = vmatprep.subr.mxu0 0.0
        %4051 = vmatpush1.msra.mxu0 0.0
        %4052 = vmatprep.subr.mxu0 0.0
        %4053 = vmatpush1.msra.mxu0 0.0
        %4054 = vmatprep.subr.mxu0 0.0
        %4055 = vmatpush1.msra.mxu0 %v4022
        %4056 = vmatprep.subr.mxu0 0.0
        %4057 = vmatpush2.msra.mxu0 0.0
        %4058 = vmatprep.subr.mxu0 0.0
        %4059 = vmatpush2.msra.mxu0 0.0
        %4060 = vmatprep.subr.mxu0 0.0
        %4061 = vmatpush2.msra.mxu0 0.0
        %4062 = vmatprep.subr.mxu0 0.0
        %4063 = vmatpush2.msra.mxu0 0.0
        %4064 = vmatprep.subr.mxu0 0.0
        %4065 = vmatpush2.msra.mxu0 0.0
        %4066 = vmatprep.subr.mxu0 0.0
        %4067 = vmatpush2.msra.mxu0 0.0
        %4068 = vmatprep.subr.mxu0 0.0
        %4069 = vmatpush2.msra.mxu0 0.0
        %4070 = vmatprep.subr.mxu0 0.0
        %4071 = vmatpush2.msra.mxu0 0.0
        %4072 = vmatprep.subr.mxu0 0.0
        %4073 = vmatpush2.msra.mxu0 0.0
        %4074 = vmatprep.subr.mxu0 0.0
        %4075 = vmatpush2.msra.mxu0 0.0
        %4076 = vmatprep.subr.mxu0 0.0
        %4077 = vmatpush2.msra.mxu0 0.0
        %4078 = vmatprep.subr.mxu0 0.0
        %4079 = vmatpush2.msra.mxu0 0.0
        %4080 = vmatprep.subr.mxu0 0.0
        %4081 = vmatpush2.msra.mxu0 0.0
        %4082 = vmatprep.subr.mxu0 0.0
        %4083 = vmatpush2.msra.mxu0 0.0
        %4084 = vmatprep.subr.mxu0 0.0
        %4085 = vmatpush2.msra.mxu0 0.0
        %4086 = vmatprep.subr.mxu0 0.0
        %4087 = vmatpush2.msra.mxu0 0.0
        %4088 = vmatprep.mubr.f32.mxu0 0.0
        %4089 = vmatmul.mubr.f32.gmra.mxu0 %v4019
        %v4090 = vpop.f32.mrf.mxu0
        %v4091 = vadd.f32 %v4015, %v4090
        %v4092 = vpop.f32.mrf.mxu0
        %4093 = vdwg.mxu0
        %v4094 = vld [vmem:[%s5] sm:$0xf]
        %4096 = vset.pattern.permute.xlu0 0
        %4097 = vperm.xlu0 %4096, %v4094
        %v4098 = vpop.permute.xlu0 %4097
        %v4100 = vadd.f32 %v4091, %v4098
        %vm4101 = vcmask 519168
        %4102 = vst.msk [vmem:[%s244] sm:$0xf] %vm4101, %v4100
        %s4103 = sand.u32 %s159, 1
        %s4104 = scalar_lea.sflag [#allocation3], %s4103
        %s4105 = sand.u32 %s159, 1
        %s4106 = smul.addr %s4105, 4
        %s4107 = scalar_lea.vmem [#allocation2], %s4106
        // Predicated region
        $region45: #{tpu_custom_call.1} parent=43 // pred_check
          %p4108 = pneg %p169
        $region46: #{tpu_custom_call.1} parent=43 // pred_check_branch
          %4110 = sbr.rel (%p4108) target = $region48
        $region47: #{tpu_custom_call.1} parent=43 // pred_region
          %s4112 = ssub.s32 64, 64
          %4113 = vsyncadd %s4104, %s4112
          %s4114 = smul.addr %s20, 64
          %s4115 = scalar_lea.hbm %s6, %s4114
          %s4117 = sshll.u32 %s4107, 4
          %s4118 = int_to_ptr.vmem [resolvable:$true] %s4117
          %4120 = dma.vmem_to_hbm [thread:$0]  %s4118, 64, %s4115, %s4104
        $region48: #{tpu_custom_call.1} parent=43 // pred_fallthru
          _
      $region44: #{tpu_custom_call.1} parent=5 // pred_fallthru
        _
      %p4121 = scmp.le.s32.totalorder 2, %s15
      // Predicated region
      $region49: #{tpu_custom_call.1} parent=5 // pred_check
        %p4122 = pneg %p4121
      $region50: #{tpu_custom_call.1} parent=5 // pred_check_branch
        %4124 = sbr.rel (%p4122) target = $region52
      $region51: #{tpu_custom_call.1} parent=5 // pred_region
        %s4125 = ssub.s32 %s15, 2
        // Predicated region
        $region53: #{tpu_custom_call.1} parent=51 // pred_check
          %p4126 = pneg %p175
        $region54: #{tpu_custom_call.1} parent=51 // pred_check_branch
          %4128 = sbr.rel (%p4126) target = $region56
        $region55: #{tpu_custom_call.1} parent=51 // pred_region
          %s4129 = sand.u32 %s160, 1
          %s4130 = scalar_lea.sflag [#allocation3], %s4129
          %s4131 = sand.u32 %s160, 1
          %s4132 = smul.addr %s4131, 4
          %s4133 = scalar_lea.vmem [#allocation2], %s4132
          %4134 = dma.done %s4130, 64
        $region56: #{tpu_custom_call.1} parent=51 // pred_fallthru
          _
      $region52: #{tpu_custom_call.1} parent=5 // pred_fallthru
        _
    $region6: #{tpu_custom_call.1} parent=1 // loop_footer
      %s19 = sadd.s32 1, %s15
    $region7: #{tpu_custom_call.1} parent=1 // loop_footer_branch
      %14 = sbr.rel target = $region3
    $region8: #{tpu_custom_call.1} parent=1 // loop_exit
      _
    %4135 = vsyncpa [#allocation3], 1
    %s4136 = scalar_lea.sflag [#allocation3], 1
    %4137 = vsyncpa %s4136, 1

</llo_original>
